<compile_context>
chip_gen: v6e
topology: v6e:2x2x1
jax: 0.10.0
libtpu: 0.0.40
codegen_flags: <defaults>
</compile_context>

<pallas_src>
import functools

import numpy as np
import jax
import jax.numpy as jnp
from jax import lax
from jax.experimental import pallas as pl
from jax.experimental.pallas import tpu as pltpu


# ------------------------------- fused kernel --------------------------------

def _conv_sequence_kernel(x_ref, w1_ref, b1_ref, wr_ref, br_ref,
                          m1_ref, m2_ref, selp_ref, selo_ref, o_ref,
                          c1_pad, buf_a, buf_b,
                          *, H, W, Cin, Cout):
    f32 = jnp.float32
    bf16 = jnp.bfloat16
    NEG = -1e30                       # finite, bf16-safe "-inf" for the pooling pad
    Ho, Wo = (H + 1) // 2, (W + 1) // 2
    Wp1, Wp2 = W + 2, Wo + 2                      # padded row pitches
    M1, M2 = H * Wp1, Ho * Wp2                    # flat conv-output lengths
    P1, P2 = (H + 3) * Wp1, (Ho + 3) * Wp2        # flat padded buffer lengths
    off1, off2 = Wp1 + 1, Wp2 + 1                 # flat offset of real pixel (0,0)

    mask1 = m1_ref[...] > 0.5                     # (M1, 1) valid-column mask
    mask2 = m2_ref[...] > 0.5                     # (M2, 1)

    def conv3x3(a, M, Wp, w_fold, bias):
        """3x3 'same' conv on a flattened padded image via one K-folded matmul.

        a:      (>= M + 2*Wp + 2, Ci) padded flat image (f32).
        w_fold: (9*Ci, Co) bf16, tap k = dy*3 + dx folded into K.
        Returns (M, Co) f32; within each Wp-wide flat row only cols < Wp-2 are valid.
        """
        cols = [a[dy * Wp + dx: dy * Wp + dx + M, :]
                for dy in range(3) for dx in range(3)]
        lhs = jnp.concatenate(cols, axis=-1).astype(bf16)          # (M, 9*Ci)
        return jnp.dot(lhs, w_fold, preferred_element_type=f32) + bias

    # ---------------- stage 1: conv3x3 (Cin -> Cout) -------------------------
    y1 = conv3x3(x_ref[0], M1, Wp1, w1_ref[...], b1_ref[...])       # (M1, Cout)

    # init only the pad borders of the pool-input buffer (head + tail), then store
    # the masked conv output (junk wrapped columns -> NEG pad).
    c1_pad[0:off1, :] = jnp.full((off1, Cout), NEG, f32)
    c1_pad[off1 + M1:P1, :] = jnp.full((P1 - off1 - M1, Cout), NEG, f32)
    c1_pad[off1:off1 + M1, :] = jnp.where(mask1, y1, NEG)

    # ---------------- stage 2: maxpool 3x3, stride 2, pad 1 ------------------
    c1 = c1_pad[...]
    Mr = M1 + 2
    rowmax = jnp.maximum(jnp.maximum(c1[0:Mr, :], c1[Wp1:Wp1 + Mr, :]),
                         c1[2 * Wp1:2 * Wp1 + Mr, :])               # (M1+2, Cout)
    winmax = jnp.maximum(jnp.maximum(rowmax[0:M1, :], rowmax[1:M1 + 1, :]),
                         rowmax[2:M1 + 2, :])                       # (M1, Cout)
    # one-hot selection matmul: stride-2 row+col downsample + re-layout to pitch Wp2
    pooled = jnp.dot(selp_ref[...], winmax, preferred_element_type=f32)   # (M2, Cout)

    # zero pad borders of the resblock buffers (heads + tails only)
    buf_a[0:off2, :] = jnp.zeros((off2, Cout), f32)
    buf_a[off2 + M2:P2, :] = jnp.zeros((P2 - off2 - M2, Cout), f32)
    buf_b[0:off2, :] = jnp.zeros((off2, Cout), f32)
    buf_b[off2 + M2:P2, :] = jnp.zeros((P2 - off2 - M2, Cout), f32)
    buf_a[off2:off2 + M2, :] = pooled        # junk cols already exactly 0 via selector

    # ---------------- stages 3 & 4: two residual blocks ----------------------
    def res_block(src, dst, w0, b0, w1_, b1_):
        s_val = src[...]
        residual = s_val[off2:off2 + M2, :]
        h = conv3x3(jnp.maximum(s_val, 0.0), M2, Wp2, w0, b0)       # relu hoisted
        dst[off2:off2 + M2, :] = jnp.where(mask2, h, 0.0)
        return conv3x3(jnp.maximum(dst[...], 0.0), M2, Wp2, w1_, b1_) + residual

    y_rb0 = res_block(buf_a, buf_b, wr_ref[0], br_ref[0], wr_ref[1], br_ref[1])
    buf_a[off2:off2 + M2, :] = jnp.where(mask2, y_rb0, 0.0)         # buf_a := rb0 out
    y_rb1 = res_block(buf_a, buf_b, wr_ref[2], br_ref[2], wr_ref[3], br_ref[3])

    # ---------------- single-shot output store -------------------------------
    out = jnp.dot(selo_ref[...], y_rb1, preferred_element_type=f32)  # (Ho*Wo, Cout)
    o_ref[0] = out.astype(o_ref.dtype)


# ------------------------------- wrapper --------------------------------------

def conv_sequence_forward(x_nchw, p):
    """Pallas forward.  Input / output are NCHW like the PyTorch module."""
    N, Cin, H, W = x_nchw.shape
    Cout = p["conv_w"].shape[-1]
    Ho, Wo = (H + 1) // 2, (W + 1) // 2
    Wp1, Wp2 = W + 2, Wo + 2
    M1, M2 = H * Wp1, Ho * Wp2
    P1, P2 = (H + 3) * Wp1, (Ho + 3) * Wp2

    # NCHW -> NHWC, zero-pad (1 top/left, 2 bottom rows / 1 right col), flatten
    # spatial dims: the kernel sees the padded flat (P1, Cin) image directly.
    x = jnp.transpose(x_nchw, (0, 2, 3, 1)).astype(jnp.float32)
    x_pad = jnp.pad(x, ((0, 0), (1, 2), (1, 1), (0, 0)))
    x_flat = x_pad.reshape(N, P1, Cin)

    # conv weights: (3,3,Ci,Co) HWIO -> K-folded (9*Ci, Co), tap k = dy*3+dx, bf16 MXU feed
    w1 = p["conv_w"].reshape(9 * Cin, Cout).astype(jnp.bfloat16)
    b1 = p["conv_b"].reshape(1, Cout).astype(jnp.float32)
    wr = jnp.stack([p["rb0_w0"].reshape(9 * Cout, Cout),
                    p["rb0_w1"].reshape(9 * Cout, Cout),
                    p["rb1_w0"].reshape(9 * Cout, Cout),
                    p["rb1_w1"].reshape(9 * Cout, Cout)]).astype(jnp.bfloat16)
    br = jnp.stack([p["rb0_b0"].reshape(1, Cout),
                    p["rb0_b1"].reshape(1, Cout),
                    p["rb1_b0"].reshape(1, Cout),
                    p["rb1_b1"].reshape(1, Cout)]).astype(jnp.float32)

    # tiny (M,1) valid-column masks (junk wrapped columns of each flat conv-output row)
    m1 = ((np.arange(M1) % Wp1) < W).astype(np.float32)[:, None]
    m2 = ((np.arange(M2) % Wp2) < Wo).astype(np.float32)[:, None]

    # one-hot selectors: (a) pool stride-2 downsample + re-layout to pitch Wp2,
    # (b) final extraction of the valid rows into a dense output slab.
    ho = np.repeat(np.arange(Ho), Wo)
    wo = np.tile(np.arange(Wo), Ho)
    sel_pool = np.zeros((M2, M1), np.float32)
    sel_pool[ho * Wp2 + wo, 2 * ho * Wp1 + 2 * wo] = 1.0
    sel_out = np.zeros((Ho * Wo, M2), np.float32)
    sel_out[np.arange(Ho * Wo), ho * Wp2 + wo] = 1.0

    kernel = functools.partial(_conv_sequence_kernel, H=H, W=W, Cin=Cin, Cout=Cout)
    out = pl.pallas_call(
        kernel,
        out_shape=jax.ShapeDtypeStruct((N, Ho * Wo, Cout), jnp.float32),
        grid=(N,),
        in_specs=[
            pl.BlockSpec((1, P1, Cin), lambda n: (n, 0, 0)),            # padded flat x
            pl.BlockSpec((9 * Cin, Cout), lambda n: (0, 0)),            # conv1 folded W
            pl.BlockSpec((1, Cout), lambda n: (0, 0)),                  # conv1 bias
            pl.BlockSpec((4, 9 * Cout, Cout), lambda n: (0, 0, 0)),     # resblock folded W
            pl.BlockSpec((4, 1, Cout), lambda n: (0, 0, 0)),            # resblock biases
            pl.BlockSpec((M1, 1), lambda n: (0, 0)),                    # mask1
            pl.BlockSpec((M2, 1), lambda n: (0, 0)),                    # mask2
            pl.BlockSpec((M2, M1), lambda n: (0, 0)),                   # pool selector
            pl.BlockSpec((Ho * Wo, M2), lambda n: (0, 0)),              # output selector
        ],
        out_specs=pl.BlockSpec((1, Ho * Wo, Cout), lambda n: (n, 0, 0)),
        scratch_shapes=[
            pltpu.VMEM((P1, Cout), jnp.float32),   # padded conv1 out (NEG borders)
            pltpu.VMEM((P2, Cout), jnp.float32),   # ping buffer (pool / resblock outs)
            pltpu.VMEM((P2, Cout), jnp.float32),   # pong buffer (resblock hidden)
        ],
        compiler_params=pltpu.CompilerParams(dimension_semantics=("parallel",)),
    )(x_flat, w1, b1, wr, br, jnp.asarray(m1), jnp.asarray(m2),
      jnp.asarray(sel_pool), jnp.asarray(sel_out))

    out = out.reshape(N, Ho, Wo, Cout)
    return jnp.transpose(out, (0, 3, 1, 2))                            # NHWC -> NCHW


# --------------------------- params & pure-JAX reference ----------------------

def init_params(key, in_channels, out_channels, k=3):
    keys = jax.random.split(key, 10)

    def w(k_, cin, cout):
        return jax.random.normal(k_, (k, k, cin, cout), jnp.float32) * 0.1

    def bias(k_, cout):
        return jax.random.normal(k_, (cout,), jnp.float32) * 0.1

    return {
        "conv_w": w(keys[0], in_channels, out_channels),
        "conv_b": bias(keys[1], out_channels),
        "rb0_w0": w(keys[2], out_channels, out_channels),
        "rb0_b0": bias(keys[3], out_channels),
        "rb0_w1": w(keys[4], out_channels, out_channels),
        "rb0_b1": bias(keys[5], out_channels),
        "rb1_w0": w(keys[6], out_channels, out_channels),
        "rb1_b0": bias(keys[7], out_channels),
        "rb1_w1": w(keys[8], out_channels, out_channels),
        "rb1_b1": bias(keys[9], out_channels),
    }


def _ref_conv(x, w, b):
    y = lax.conv_general_dilated(
        x, w, window_strides=(1, 1), padding=((1, 1), (1, 1)),
        dimension_numbers=("NHWC", "HWIO", "NHWC"),
        precision=lax.Precision.HIGHEST)
    return y + b


def ref_forward(x_nchw, p):
    x = jnp.transpose(x_nchw, (0, 2, 3, 1))
    x = _ref_conv(x, p["conv_w"], p["conv_b"])
    x = lax.reduce_window(x, -jnp.inf, lax.max,
                          window_dimensions=(1, 3, 3, 1),
                          window_strides=(1, 2, 2, 1),
                          padding=((0, 0), (1, 1), (1, 1), (0, 0)))
    for name in ("rb0", "rb1"):
        inp = x
        h = _ref_conv(jax.nn.relu(x), p[f"{name}_w0"], p[f"{name}_b0"])
        x = _ref_conv(jax.nn.relu(h), p[f"{name}_w1"], p[f"{name}_b1"]) + inp
    return jnp.transpose(x, (0, 3, 1, 2))


# ------------------------------------ main -------------------------------------

if __name__ == "__main__":
    key = jax.random.PRNGKey(0)
    k_x, k_p = jax.random.split(key)

    N, C_in, H, W = 2, 4, 16, 16              # input_shape = (4, 16, 16)
    out_channels = 8

    x = jax.random.normal(k_x, (N, C_in, H, W), jnp.float32)    # NCHW like PyTorch
    params = init_params(k_p, C_in, out_channels)

    out = jax.jit(conv_sequence_forward)(x, params)
    out = jax.block_until_ready(out)

    expected_shape = (N, out_channels, (H + 1) // 2, (W + 1) // 2)
    assert out.shape == expected_shape, (out.shape, expected_shape)

    ref = ref_forward(x, params)
    max_err = float(jnp.max(jnp.abs(out - ref)))
    # Tolerance is sized for the bf16 MXU feeds (f32 accumulation); an all-f32
    # HIGHEST-precision variant of the dots matches the reference to ~1e-4.
    assert jnp.allclose(out, ref, rtol=2e-2, atol=2e-2), max_err

    print("KERNEL_OK")
</pallas_src>

<mosaic_0001>
module attributes {stable_mosaic.version = 11 : i64} {
  func.func @_conv_sequence_kernel(%arg0: i32, %arg1: memref<1x342x4xf32, #tpu.memory_space<vmem>>, %arg2: memref<36x8xbf16, #tpu.memory_space<vmem>>, %arg3: memref<1x8xf32, #tpu.memory_space<vmem>>, %arg4: memref<4x72x8xbf16, #tpu.memory_space<vmem>>, %arg5: memref<4x1x8xf32, #tpu.memory_space<vmem>>, %arg6: memref<288x1xf32, #tpu.memory_space<vmem>>, %arg7: memref<80x1xf32, #tpu.memory_space<vmem>>, %arg8: memref<80x288xf32, #tpu.memory_space<vmem>>, %arg9: memref<64x80xf32, #tpu.memory_space<vmem>>, %arg10: memref<1x64x8xf32, #tpu.memory_space<vmem>>, %arg11: memref<342x8xf32, #tpu.memory_space<vmem>>, %arg12: memref<110x8xf32, #tpu.memory_space<vmem>>, %arg13: memref<110x8xf32, #tpu.memory_space<vmem>>) attributes {dimension_semantics = [#tpu.dimension_semantics<parallel>], iteration_bounds = array<i64: 2>, scalar_prefetch = 0 : i64, scratch_operands = 3 : i64, tpu.core_type = #tpu.core_type<tc>, window_params = [{transform_indices = @transform_0, window_bounds = array<i64: 1, 342, 4>}, {pipeline_mode = #tpu.pipeline_mode<synchronous>, transform_indices = @transform_1, window_bounds = array<i64: 36, 8>}, {pipeline_mode = #tpu.pipeline_mode<synchronous>, transform_indices = @transform_2, window_bounds = array<i64: 1, 8>}, {pipeline_mode = #tpu.pipeline_mode<synchronous>, transform_indices = @transform_3, window_bounds = array<i64: 4, 72, 8>}, {pipeline_mode = #tpu.pipeline_mode<synchronous>, transform_indices = @transform_4, window_bounds = array<i64: 4, 1, 8>}, {pipeline_mode = #tpu.pipeline_mode<synchronous>, transform_indices = @transform_5, window_bounds = array<i64: 288, 1>}, {pipeline_mode = #tpu.pipeline_mode<synchronous>, transform_indices = @transform_6, window_bounds = array<i64: 80, 1>}, {pipeline_mode = #tpu.pipeline_mode<synchronous>, transform_indices = @transform_7, window_bounds = array<i64: 80, 288>}, {pipeline_mode = #tpu.pipeline_mode<synchronous>, transform_indices = @transform_8, window_bounds = array<i64: 64, 80>}, {transform_indices = @transform_9, window_bounds = array<i64: 1, 64, 8>}]} {
    %c0 = arith.constant 0 : index
    %c0_0 = arith.constant 0 : index
    %0 = vector.load %arg6[%c0, %c0_0] : memref<288x1xf32, #tpu.memory_space<vmem>>, vector<288x1xf32>
    %cst = arith.constant 5.000000e-01 : f32
    %1 = vector.broadcast %cst : f32 to vector<288x1xf32>
    %2 = arith.cmpf ogt, %0, %1 : vector<288x1xf32>
    %c0_1 = arith.constant 0 : index
    %c0_2 = arith.constant 0 : index
    %3 = vector.load %arg7[%c0_1, %c0_2] : memref<80x1xf32, #tpu.memory_space<vmem>>, vector<80x1xf32>
    %cst_3 = arith.constant 5.000000e-01 : f32
    %4 = vector.broadcast %cst_3 : f32 to vector<80x1xf32>
    %5 = arith.cmpf ogt, %3, %4 : vector<80x1xf32>
    %c0_4 = arith.constant 0 : index
    %c0_5 = arith.constant 0 : index
    %c0_6 = arith.constant 0 : index
    %6 = vector.load %arg1[%c0_4, %c0_5, %c0_6] : memref<1x342x4xf32, #tpu.memory_space<vmem>>, vector<1x342x4xf32>
    %7 = vector.shape_cast %6 : vector<1x342x4xf32> to vector<342x4xf32>
    %c0_7 = arith.constant 0 : index
    %c0_8 = arith.constant 0 : index
    %8 = vector.load %arg2[%c0_7, %c0_8] : memref<36x8xbf16, #tpu.memory_space<vmem>>, vector<36x8xbf16>
    %c0_9 = arith.constant 0 : index
    %c0_10 = arith.constant 0 : index
    %9 = vector.load %arg3[%c0_9, %c0_10] : memref<1x8xf32, #tpu.memory_space<vmem>>, vector<1x8xf32>
    %10 = vector.extract_strided_slice %7 {offsets = [0, 0], sizes = [288, 4], strides = [1, 1]} : vector<342x4xf32> to vector<288x4xf32>
    %11 = vector.extract_strided_slice %7 {offsets = [1, 0], sizes = [288, 4], strides = [1, 1]} : vector<342x4xf32> to vector<288x4xf32>
    %12 = vector.extract_strided_slice %7 {offsets = [2, 0], sizes = [288, 4], strides = [1, 1]} : vector<342x4xf32> to vector<288x4xf32>
    %13 = vector.extract_strided_slice %7 {offsets = [18, 0], sizes = [288, 4], strides = [1, 1]} : vector<342x4xf32> to vector<288x4xf32>
    %14 = vector.extract_strided_slice %7 {offsets = [19, 0], sizes = [288, 4], strides = [1, 1]} : vector<342x4xf32> to vector<288x4xf32>
    %15 = vector.extract_strided_slice %7 {offsets = [20, 0], sizes = [288, 4], strides = [1, 1]} : vector<342x4xf32> to vector<288x4xf32>
    %16 = vector.extract_strided_slice %7 {offsets = [36, 0], sizes = [288, 4], strides = [1, 1]} : vector<342x4xf32> to vector<288x4xf32>
    %17 = vector.extract_strided_slice %7 {offsets = [37, 0], sizes = [288, 4], strides = [1, 1]} : vector<342x4xf32> to vector<288x4xf32>
    %18 = vector.extract_strided_slice %7 {offsets = [38, 0], sizes = [288, 4], strides = [1, 1]} : vector<342x4xf32> to vector<288x4xf32>
    %19 = tpu.concatenate %10, %11, %12, %13, %14, %15, %16, %17, %18 in 1 : vector<288x4xf32>, vector<288x4xf32>, vector<288x4xf32>, vector<288x4xf32>, vector<288x4xf32>, vector<288x4xf32>, vector<288x4xf32>, vector<288x4xf32>, vector<288x4xf32> -> vector<288x36xf32>
    %20 = arith.truncf %19 : vector<288x36xf32> to vector<288x36xbf16>
    %cst_11 = arith.constant dense<0.000000e+00> : vector<288x8xf32>
    %21 = tpu.matmul %20, %8, %cst_11 {dimension_numbers = #tpu.dot_dimension_numbers<[1], [0], [0], [1], [0, 0, 1, 1], [], []>} : vector<288x36xbf16>, vector<36x8xbf16>, vector<288x8xf32> -> vector<288x8xf32>
    %22 = vector.broadcast %9 : vector<1x8xf32> to vector<288x8xf32>
    %23 = arith.addf %21, %22 : vector<288x8xf32>
    %cst_12 = arith.constant -1.000000e+30 : f32
    %24 = vector.broadcast %cst_12 : f32 to vector<19x8xf32>
    %c0_13 = arith.constant 0 : index
    %c0_14 = arith.constant 0 : index
    %25 = vector.load %arg11[%c0_13, %c0_14] : memref<342x8xf32, #tpu.memory_space<vmem>>, vector<19x8xf32>
    tpu.vector_store %arg11[%c0_13, %c0_14], %24 {strides = array<i32>} : memref<342x8xf32, #tpu.memory_space<vmem>>, vector<19x8xf32>,
    %cst_15 = arith.constant -1.000000e+30 : f32
    %26 = vector.broadcast %cst_15 : f32 to vector<35x8xf32>
    %c307 = arith.constant 307 : index
    %c0_16 = arith.constant 0 : index
    %27 = vector.load %arg11[%c307, %c0_16] : memref<342x8xf32, #tpu.memory_space<vmem>>, vector<35x8xf32>
    tpu.vector_store %arg11[%c307, %c0_16], %26 {strides = array<i32>} : memref<342x8xf32, #tpu.memory_space<vmem>>, vector<35x8xf32>,
    %cst_17 = arith.constant -1.000000e+30 : f32
    %28 = vector.shape_cast %2 : vector<288x1xi1> to vector<288x1xi1>
    %29 = vector.broadcast %28 : vector<288x1xi1> to vector<288x8xi1>
    %30 = vector.broadcast %cst_17 : f32 to vector<288x8xf32>
    %31 = arith.select %29, %23, %30 : vector<288x8xi1>, vector<288x8xf32>
    %c19 = arith.constant 19 : index
    %c0_18 = arith.constant 0 : index
    %32 = vector.load %arg11[%c19, %c0_18] : memref<342x8xf32, #tpu.memory_space<vmem>>, vector<288x8xf32>
    tpu.vector_store %arg11[%c19, %c0_18], %31 {strides = array<i32>} : memref<342x8xf32, #tpu.memory_space<vmem>>, vector<288x8xf32>,
    %c0_19 = arith.constant 0 : index
    %c0_20 = arith.constant 0 : index
    %33 = vector.load %arg11[%c0_19, %c0_20] : memref<342x8xf32, #tpu.memory_space<vmem>>, vector<342x8xf32>
    %34 = vector.extract_strided_slice %33 {offsets = [0, 0], sizes = [290, 8], strides = [1, 1]} : vector<342x8xf32> to vector<290x8xf32>
    %35 = vector.extract_strided_slice %33 {offsets = [18, 0], sizes = [290, 8], strides = [1, 1]} : vector<342x8xf32> to vector<290x8xf32>
    %36 = arith.maximumf %34, %35 : vector<290x8xf32>
    %37 = vector.extract_strided_slice %33 {offsets = [36, 0], sizes = [290, 8], strides = [1, 1]} : vector<342x8xf32> to vector<290x8xf32>
    %38 = arith.maximumf %36, %37 : vector<290x8xf32>
    %39 = vector.extract_strided_slice %38 {offsets = [0, 0], sizes = [288, 8], strides = [1, 1]} : vector<290x8xf32> to vector<288x8xf32>
    %40 = vector.extract_strided_slice %38 {offsets = [1, 0], sizes = [288, 8], strides = [1, 1]} : vector<290x8xf32> to vector<288x8xf32>
    %41 = arith.maximumf %39, %40 : vector<288x8xf32>
    %42 = vector.extract_strided_slice %38 {offsets = [2, 0], sizes = [288, 8], strides = [1, 1]} : vector<290x8xf32> to vector<288x8xf32>
    %43 = arith.maximumf %41, %42 : vector<288x8xf32>
    %c0_21 = arith.constant 0 : index
    %c0_22 = arith.constant 0 : index
    %44 = vector.load %arg8[%c0_21, %c0_22] : memref<80x288xf32, #tpu.memory_space<vmem>>, vector<80x288xf32>
    %cst_23 = arith.constant dense<0.000000e+00> : vector<80x8xf32>
    %45 = tpu.matmul %44, %43, %cst_23 {dimension_numbers = #tpu.dot_dimension_numbers<[1], [0], [0], [1], [0, 0, 1, 1], [], []>} : vector<80x288xf32>, vector<288x8xf32>, vector<80x8xf32> -> vector<80x8xf32>
    %cst_24 = arith.constant 0.000000e+00 : f32
    %46 = vector.broadcast %cst_24 : f32 to vector<11x8xf32>
    %c0_25 = arith.constant 0 : index
    %c0_26 = arith.constant 0 : index
    %47 = vector.load %arg12[%c0_25, %c0_26] : memref<110x8xf32, #tpu.memory_space<vmem>>, vector<11x8xf32>
    tpu.vector_store %arg12[%c0_25, %c0_26], %46 {strides = array<i32>} : memref<110x8xf32, #tpu.memory_space<vmem>>, vector<11x8xf32>,
    %cst_27 = arith.constant 0.000000e+00 : f32
    %48 = vector.broadcast %cst_27 : f32 to vector<19x8xf32>
    %c91 = arith.constant 91 : index
    %c0_28 = arith.constant 0 : index
    %49 = vector.load %arg12[%c91, %c0_28] : memref<110x8xf32, #tpu.memory_space<vmem>>, vector<19x8xf32>
    tpu.vector_store %arg12[%c91, %c0_28], %48 {strides = array<i32>} : memref<110x8xf32, #tpu.memory_space<vmem>>, vector<19x8xf32>,
    %cst_29 = arith.constant 0.000000e+00 : f32
    %50 = vector.broadcast %cst_29 : f32 to vector<11x8xf32>
    %c0_30 = arith.constant 0 : index
    %c0_31 = arith.constant 0 : index
    %51 = vector.load %arg13[%c0_30, %c0_31] : memref<110x8xf32, #tpu.memory_space<vmem>>, vector<11x8xf32>
    tpu.vector_store %arg13[%c0_30, %c0_31], %50 {strides = array<i32>} : memref<110x8xf32, #tpu.memory_space<vmem>>, vector<11x8xf32>,
    %cst_32 = arith.constant 0.000000e+00 : f32
    %52 = vector.broadcast %cst_32 : f32 to vector<19x8xf32>
    %c91_33 = arith.constant 91 : index
    %c0_34 = arith.constant 0 : index
    %53 = vector.load %arg13[%c91_33, %c0_34] : memref<110x8xf32, #tpu.memory_space<vmem>>, vector<19x8xf32>
    tpu.vector_store %arg13[%c91_33, %c0_34], %52 {strides = array<i32>} : memref<110x8xf32, #tpu.memory_space<vmem>>, vector<19x8xf32>,
    %c11 = arith.constant 11 : index
    %c0_35 = arith.constant 0 : index
    %54 = vector.load %arg12[%c11, %c0_35] : memref<110x8xf32, #tpu.memory_space<vmem>>, vector<80x8xf32>
    tpu.vector_store %arg12[%c11, %c0_35], %45 {strides = array<i32>} : memref<110x8xf32, #tpu.memory_space<vmem>>, vector<80x8xf32>,
    %c0_36 = arith.constant 0 : index
    %c0_37 = arith.constant 0 : index
    %c0_38 = arith.constant 0 : index
    %55 = vector.load %arg4[%c0_36, %c0_37, %c0_38] : memref<4x72x8xbf16, #tpu.memory_space<vmem>>, vector<1x72x8xbf16>
    %56 = vector.shape_cast %55 : vector<1x72x8xbf16> to vector<72x8xbf16>
    %c0_39 = arith.constant 0 : index
    %c0_40 = arith.constant 0 : index
    %c0_41 = arith.constant 0 : index
    %57 = vector.load %arg5[%c0_39, %c0_40, %c0_41] : memref<4x1x8xf32, #tpu.memory_space<vmem>>, vector<1x1x8xf32>
    %58 = vector.shape_cast %57 : vector<1x1x8xf32> to vector<1x8xf32>
    %c1 = arith.constant 1 : index
    %c0_42 = arith.constant 0 : index
    %c0_43 = arith.constant 0 : index
    %59 = vector.load %arg4[%c1, %c0_42, %c0_43] : memref<4x72x8xbf16, #tpu.memory_space<vmem>>, vector<1x72x8xbf16>
    %60 = vector.shape_cast %59 : vector<1x72x8xbf16> to vector<72x8xbf16>
    %c1_44 = arith.constant 1 : index
    %c0_45 = arith.constant 0 : index
    %c0_46 = arith.constant 0 : index
    %61 = vector.load %arg5[%c1_44, %c0_45, %c0_46] : memref<4x1x8xf32, #tpu.memory_space<vmem>>, vector<1x1x8xf32>
    %62 = vector.shape_cast %61 : vector<1x1x8xf32> to vector<1x8xf32>
    %c0_47 = arith.constant 0 : index
    %c0_48 = arith.constant 0 : index
    %63 = vector.load %arg12[%c0_47, %c0_48] : memref<110x8xf32, #tpu.memory_space<vmem>>, vector<110x8xf32>
    %64 = vector.extract_strided_slice %63 {offsets = [11, 0], sizes = [80, 8], strides = [1, 1]} : vector<110x8xf32> to vector<80x8xf32>
    %cst_49 = arith.constant 0.000000e+00 : f32
    %65 = vector.broadcast %cst_49 : f32 to vector<110x8xf32>
    %66 = arith.maximumf %63, %65 : vector<110x8xf32>
    %67 = vector.extract_strided_slice %66 {offsets = [0, 0], sizes = [80, 8], strides = [1, 1]} : vector<110x8xf32> to vector<80x8xf32>
    %68 = vector.extract_strided_slice %66 {offsets = [1, 0], sizes = [80, 8], strides = [1, 1]} : vector<110x8xf32> to vector<80x8xf32>
    %69 = vector.extract_strided_slice %66 {offsets = [2, 0], sizes = [80, 8], strides = [1, 1]} : vector<110x8xf32> to vector<80x8xf32>
    %70 = vector.extract_strided_slice %66 {offsets = [10, 0], sizes = [80, 8], strides = [1, 1]} : vector<110x8xf32> to vector<80x8xf32>
    %71 = vector.extract_strided_slice %66 {offsets = [11, 0], sizes = [80, 8], strides = [1, 1]} : vector<110x8xf32> to vector<80x8xf32>
    %72 = vector.extract_strided_slice %66 {offsets = [12, 0], sizes = [80, 8], strides = [1, 1]} : vector<110x8xf32> to vector<80x8xf32>
    %73 = vector.extract_strided_slice %66 {offsets = [20, 0], sizes = [80, 8], strides = [1, 1]} : vector<110x8xf32> to vector<80x8xf32>
    %74 = vector.extract_strided_slice %66 {offsets = [21, 0], sizes = [80, 8], strides = [1, 1]} : vector<110x8xf32> to vector<80x8xf32>
    %75 = vector.extract_strided_slice %66 {offsets = [22, 0], sizes = [80, 8], strides = [1, 1]} : vector<110x8xf32> to vector<80x8xf32>
    %76 = tpu.concatenate %67, %68, %69, %70, %71, %72, %73, %74, %75 in 1 : vector<80x8xf32>, vector<80x8xf32>, vector<80x8xf32>, vector<80x8xf32>, vector<80x8xf32>, vector<80x8xf32>, vector<80x8xf32>, vector<80x8xf32>, vector<80x8xf32> -> vector<80x72xf32>
    %77 = arith.truncf %76 : vector<80x72xf32> to vector<80x72xbf16>
    %cst_50 = arith.constant dense<0.000000e+00> : vector<80x8xf32>
    %78 = tpu.matmul %77, %56, %cst_50 {dimension_numbers = #tpu.dot_dimension_numbers<[1], [0], [0], [1], [0, 0, 1, 1], [], []>} : vector<80x72xbf16>, vector<72x8xbf16>, vector<80x8xf32> -> vector<80x8xf32>
    %79 = vector.broadcast %58 : vector<1x8xf32> to vector<80x8xf32>
    %80 = arith.addf %78, %79 : vector<80x8xf32>
    %cst_51 = arith.constant 0.000000e+00 : f32
    %81 = vector.shape_cast %5 : vector<80x1xi1> to vector<80x1xi1>
    %82 = vector.broadcast %81 : vector<80x1xi1> to vector<80x8xi1>
    %83 = vector.broadcast %cst_51 : f32 to vector<80x8xf32>
    %84 = arith.select %82, %80, %83 : vector<80x8xi1>, vector<80x8xf32>
    %c11_52 = arith.constant 11 : index
    %c0_53 = arith.constant 0 : index
    %85 = vector.load %arg13[%c11_52, %c0_53] : memref<110x8xf32, #tpu.memory_space<vmem>>, vector<80x8xf32>
    tpu.vector_store %arg13[%c11_52, %c0_53], %84 {strides = array<i32>} : memref<110x8xf32, #tpu.memory_space<vmem>>, vector<80x8xf32>,
    %c0_54 = arith.constant 0 : index
    %c0_55 = arith.constant 0 : index
    %86 = vector.load %arg13[%c0_54, %c0_55] : memref<110x8xf32, #tpu.memory_space<vmem>>, vector<110x8xf32>
    %cst_56 = arith.constant 0.000000e+00 : f32
    %87 = vector.broadcast %cst_56 : f32 to vector<110x8xf32>
    %88 = arith.maximumf %86, %87 : vector<110x8xf32>
    %89 = vector.extract_strided_slice %88 {offsets = [0, 0], sizes = [80, 8], strides = [1, 1]} : vector<110x8xf32> to vector<80x8xf32>
    %90 = vector.extract_strided_slice %88 {offsets = [1, 0], sizes = [80, 8], strides = [1, 1]} : vector<110x8xf32> to vector<80x8xf32>
    %91 = vector.extract_strided_slice %88 {offsets = [2, 0], sizes = [80, 8], strides = [1, 1]} : vector<110x8xf32> to vector<80x8xf32>
    %92 = vector.extract_strided_slice %88 {offsets = [10, 0], sizes = [80, 8], strides = [1, 1]} : vector<110x8xf32> to vector<80x8xf32>
    %93 = vector.extract_strided_slice %88 {offsets = [11, 0], sizes = [80, 8], strides = [1, 1]} : vector<110x8xf32> to vector<80x8xf32>
    %94 = vector.extract_strided_slice %88 {offsets = [12, 0], sizes = [80, 8], strides = [1, 1]} : vector<110x8xf32> to vector<80x8xf32>
    %95 = vector.extract_strided_slice %88 {offsets = [20, 0], sizes = [80, 8], strides = [1, 1]} : vector<110x8xf32> to vector<80x8xf32>
    %96 = vector.extract_strided_slice %88 {offsets = [21, 0], sizes = [80, 8], strides = [1, 1]} : vector<110x8xf32> to vector<80x8xf32>
    %97 = vector.extract_strided_slice %88 {offsets = [22, 0], sizes = [80, 8], strides = [1, 1]} : vector<110x8xf32> to vector<80x8xf32>
    %98 = tpu.concatenate %89, %90, %91, %92, %93, %94, %95, %96, %97 in 1 : vector<80x8xf32>, vector<80x8xf32>, vector<80x8xf32>, vector<80x8xf32>, vector<80x8xf32>, vector<80x8xf32>, vector<80x8xf32>, vector<80x8xf32>, vector<80x8xf32> -> vector<80x72xf32>
    %99 = arith.truncf %98 : vector<80x72xf32> to vector<80x72xbf16>
    %cst_57 = arith.constant dense<0.000000e+00> : vector<80x8xf32>
    %100 = tpu.matmul %99, %60, %cst_57 {dimension_numbers = #tpu.dot_dimension_numbers<[1], [0], [0], [1], [0, 0, 1, 1], [], []>} : vector<80x72xbf16>, vector<72x8xbf16>, vector<80x8xf32> -> vector<80x8xf32>
    %101 = vector.broadcast %62 : vector<1x8xf32> to vector<80x8xf32>
    %102 = arith.addf %100, %101 : vector<80x8xf32>
    %103 = arith.addf %102, %64 : vector<80x8xf32>
    %cst_58 = arith.constant 0.000000e+00 : f32
    %104 = vector.shape_cast %5 : vector<80x1xi1> to vector<80x1xi1>
    %105 = vector.broadcast %104 : vector<80x1xi1> to vector<80x8xi1>
    %106 = vector.broadcast %cst_58 : f32 to vector<80x8xf32>
    %107 = arith.select %105, %103, %106 : vector<80x8xi1>, vector<80x8xf32>
    %c11_59 = arith.constant 11 : index
    %c0_60 = arith.constant 0 : index
    %108 = vector.load %arg12[%c11_59, %c0_60] : memref<110x8xf32, #tpu.memory_space<vmem>>, vector<80x8xf32>
    tpu.vector_store %arg12[%c11_59, %c0_60], %107 {strides = array<i32>} : memref<110x8xf32, #tpu.memory_space<vmem>>, vector<80x8xf32>,
    %c2 = arith.constant 2 : index
    %c0_61 = arith.constant 0 : index
    %c0_62 = arith.constant 0 : index
    %109 = vector.load %arg4[%c2, %c0_61, %c0_62] : memref<4x72x8xbf16, #tpu.memory_space<vmem>>, vector<1x72x8xbf16>
    %110 = vector.shape_cast %109 : vector<1x72x8xbf16> to vector<72x8xbf16>
    %c2_63 = arith.constant 2 : index
    %c0_64 = arith.constant 0 : index
    %c0_65 = arith.constant 0 : index
    %111 = vector.load %arg5[%c2_63, %c0_64, %c0_65] : memref<4x1x8xf32, #tpu.memory_space<vmem>>, vector<1x1x8xf32>
    %112 = vector.shape_cast %111 : vector<1x1x8xf32> to vector<1x8xf32>
    %c3 = arith.constant 3 : index
    %c0_66 = arith.constant 0 : index
    %c0_67 = arith.constant 0 : index
    %113 = vector.load %arg4[%c3, %c0_66, %c0_67] : memref<4x72x8xbf16, #tpu.memory_space<vmem>>, vector<1x72x8xbf16>
    %114 = vector.shape_cast %113 : vector<1x72x8xbf16> to vector<72x8xbf16>
    %c3_68 = arith.constant 3 : index
    %c0_69 = arith.constant 0 : index
    %c0_70 = arith.constant 0 : index
    %115 = vector.load %arg5[%c3_68, %c0_69, %c0_70] : memref<4x1x8xf32, #tpu.memory_space<vmem>>, vector<1x1x8xf32>
    %116 = vector.shape_cast %115 : vector<1x1x8xf32> to vector<1x8xf32>
    %c0_71 = arith.constant 0 : index
    %c0_72 = arith.constant 0 : index
    %117 = vector.load %arg12[%c0_71, %c0_72] : memref<110x8xf32, #tpu.memory_space<vmem>>, vector<110x8xf32>
    %118 = vector.extract_strided_slice %117 {offsets = [11, 0], sizes = [80, 8], strides = [1, 1]} : vector<110x8xf32> to vector<80x8xf32>
    %cst_73 = arith.constant 0.000000e+00 : f32
    %119 = vector.broadcast %cst_73 : f32 to vector<110x8xf32>
    %120 = arith.maximumf %117, %119 : vector<110x8xf32>
    %121 = vector.extract_strided_slice %120 {offsets = [0, 0], sizes = [80, 8], strides = [1, 1]} : vector<110x8xf32> to vector<80x8xf32>
    %122 = vector.extract_strided_slice %120 {offsets = [1, 0], sizes = [80, 8], strides = [1, 1]} : vector<110x8xf32> to vector<80x8xf32>
    %123 = vector.extract_strided_slice %120 {offsets = [2, 0], sizes = [80, 8], strides = [1, 1]} : vector<110x8xf32> to vector<80x8xf32>
    %124 = vector.extract_strided_slice %120 {offsets = [10, 0], sizes = [80, 8], strides = [1, 1]} : vector<110x8xf32> to vector<80x8xf32>
    %125 = vector.extract_strided_slice %120 {offsets = [11, 0], sizes = [80, 8], strides = [1, 1]} : vector<110x8xf32> to vector<80x8xf32>
    %126 = vector.extract_strided_slice %120 {offsets = [12, 0], sizes = [80, 8], strides = [1, 1]} : vector<110x8xf32> to vector<80x8xf32>
    %127 = vector.extract_strided_slice %120 {offsets = [20, 0], sizes = [80, 8], strides = [1, 1]} : vector<110x8xf32> to vector<80x8xf32>
    %128 = vector.extract_strided_slice %120 {offsets = [21, 0], sizes = [80, 8], strides = [1, 1]} : vector<110x8xf32> to vector<80x8xf32>
    %129 = vector.extract_strided_slice %120 {offsets = [22, 0], sizes = [80, 8], strides = [1, 1]} : vector<110x8xf32> to vector<80x8xf32>
    %130 = tpu.concatenate %121, %122, %123, %124, %125, %126, %127, %128, %129 in 1 : vector<80x8xf32>, vector<80x8xf32>, vector<80x8xf32>, vector<80x8xf32>, vector<80x8xf32>, vector<80x8xf32>, vector<80x8xf32>, vector<80x8xf32>, vector<80x8xf32> -> vector<80x72xf32>
    %131 = arith.truncf %130 : vector<80x72xf32> to vector<80x72xbf16>
    %cst_74 = arith.constant dense<0.000000e+00> : vector<80x8xf32>
    %132 = tpu.matmul %131, %110, %cst_74 {dimension_numbers = #tpu.dot_dimension_numbers<[1], [0], [0], [1], [0, 0, 1, 1], [], []>} : vector<80x72xbf16>, vector<72x8xbf16>, vector<80x8xf32> -> vector<80x8xf32>
    %133 = vector.broadcast %112 : vector<1x8xf32> to vector<80x8xf32>
    %134 = arith.addf %132, %133 : vector<80x8xf32>
    %cst_75 = arith.constant 0.000000e+00 : f32
    %135 = vector.shape_cast %5 : vector<80x1xi1> to vector<80x1xi1>
    %136 = vector.broadcast %135 : vector<80x1xi1> to vector<80x8xi1>
    %137 = vector.broadcast %cst_75 : f32 to vector<80x8xf32>
    %138 = arith.select %136, %134, %137 : vector<80x8xi1>, vector<80x8xf32>
    %c11_76 = arith.constant 11 : index
    %c0_77 = arith.constant 0 : index
    %139 = vector.load %arg13[%c11_76, %c0_77] : memref<110x8xf32, #tpu.memory_space<vmem>>, vector<80x8xf32>
    tpu.vector_store %arg13[%c11_76, %c0_77], %138 {strides = array<i32>} : memref<110x8xf32, #tpu.memory_space<vmem>>, vector<80x8xf32>,
    %c0_78 = arith.constant 0 : index
    %c0_79 = arith.constant 0 : index
    %140 = vector.load %arg13[%c0_78, %c0_79] : memref<110x8xf32, #tpu.memory_space<vmem>>, vector<110x8xf32>
    %cst_80 = arith.constant 0.000000e+00 : f32
    %141 = vector.broadcast %cst_80 : f32 to vector<110x8xf32>
    %142 = arith.maximumf %140, %141 : vector<110x8xf32>
    %143 = vector.extract_strided_slice %142 {offsets = [0, 0], sizes = [80, 8], strides = [1, 1]} : vector<110x8xf32> to vector<80x8xf32>
    %144 = vector.extract_strided_slice %142 {offsets = [1, 0], sizes = [80, 8], strides = [1, 1]} : vector<110x8xf32> to vector<80x8xf32>
    %145 = vector.extract_strided_slice %142 {offsets = [2, 0], sizes = [80, 8], strides = [1, 1]} : vector<110x8xf32> to vector<80x8xf32>
    %146 = vector.extract_strided_slice %142 {offsets = [10, 0], sizes = [80, 8], strides = [1, 1]} : vector<110x8xf32> to vector<80x8xf32>
    %147 = vector.extract_strided_slice %142 {offsets = [11, 0], sizes = [80, 8], strides = [1, 1]} : vector<110x8xf32> to vector<80x8xf32>
    %148 = vector.extract_strided_slice %142 {offsets = [12, 0], sizes = [80, 8], strides = [1, 1]} : vector<110x8xf32> to vector<80x8xf32>
    %149 = vector.extract_strided_slice %142 {offsets = [20, 0], sizes = [80, 8], strides = [1, 1]} : vector<110x8xf32> to vector<80x8xf32>
    %150 = vector.extract_strided_slice %142 {offsets = [21, 0], sizes = [80, 8], strides = [1, 1]} : vector<110x8xf32> to vector<80x8xf32>
    %151 = vector.extract_strided_slice %142 {offsets = [22, 0], sizes = [80, 8], strides = [1, 1]} : vector<110x8xf32> to vector<80x8xf32>
    %152 = tpu.concatenate %143, %144, %145, %146, %147, %148, %149, %150, %151 in 1 : vector<80x8xf32>, vector<80x8xf32>, vector<80x8xf32>, vector<80x8xf32>, vector<80x8xf32>, vector<80x8xf32>, vector<80x8xf32>, vector<80x8xf32>, vector<80x8xf32> -> vector<80x72xf32>
    %153 = arith.truncf %152 : vector<80x72xf32> to vector<80x72xbf16>
    %cst_81 = arith.constant dense<0.000000e+00> : vector<80x8xf32>
    %154 = tpu.matmul %153, %114, %cst_81 {dimension_numbers = #tpu.dot_dimension_numbers<[1], [0], [0], [1], [0, 0, 1, 1], [], []>} : vector<80x72xbf16>, vector<72x8xbf16>, vector<80x8xf32> -> vector<80x8xf32>
    %155 = vector.broadcast %116 : vector<1x8xf32> to vector<80x8xf32>
    %156 = arith.addf %154, %155 : vector<80x8xf32>
    %157 = arith.addf %156, %118 : vector<80x8xf32>
    %c0_82 = arith.constant 0 : index
    %c0_83 = arith.constant 0 : index
    %158 = vector.load %arg9[%c0_82, %c0_83] : memref<64x80xf32, #tpu.memory_space<vmem>>, vector<64x80xf32>
    %cst_84 = arith.constant dense<0.000000e+00> : vector<64x8xf32>
    %159 = tpu.matmul %158, %157, %cst_84 {dimension_numbers = #tpu.dot_dimension_numbers<[1], [0], [0], [1], [0, 0, 1, 1], [], []>} : vector<64x80xf32>, vector<80x8xf32>, vector<64x8xf32> -> vector<64x8xf32>
    %c0_85 = arith.constant 0 : index
    %c0_86 = arith.constant 0 : index
    %c0_87 = arith.constant 0 : index
    %160 = vector.load %arg10[%c0_85, %c0_86, %c0_87] : memref<1x64x8xf32, #tpu.memory_space<vmem>>, vector<1x64x8xf32>
    %161 = vector.shape_cast %160 : vector<1x64x8xf32> to vector<64x8xf32>
    %162 = vector.shape_cast %159 : vector<64x8xf32> to vector<1x64x8xf32>
    tpu.vector_store %arg10[%c0_85, %c0_86, %c0_87], %162 {strides = array<i32>} : memref<1x64x8xf32, #tpu.memory_space<vmem>>, vector<1x64x8xf32>,
    return
  }
  func.func @transform_0(%arg0: i32) -> (i32, i32, i32) {
    %c0_i32 = arith.constant 0 : i32
    %c0_i32_0 = arith.constant 0 : i32
    %c0_i32_1 = arith.constant 0 : i32
    return %arg0, %c0_i32, %c0_i32_0 : i32, i32, i32
  }
  func.func @transform_1(%arg0: i32) -> (i32, i32) {
    %c0_i32 = arith.constant 0 : i32
    %c0_i32_0 = arith.constant 0 : i32
    %c0_i32_1 = arith.constant 0 : i32
    return %c0_i32, %c0_i32_0 : i32, i32
  }
  func.func @transform_2(%arg0: i32) -> (i32, i32) {
    %c0_i32 = arith.constant 0 : i32
    %c0_i32_0 = arith.constant 0 : i32
    %c0_i32_1 = arith.constant 0 : i32
    return %c0_i32, %c0_i32_0 : i32, i32
  }
  func.func @transform_3(%arg0: i32) -> (i32, i32, i32) {
    %c0_i32 = arith.constant 0 : i32
    %c0_i32_0 = arith.constant 0 : i32
    %c0_i32_1 = arith.constant 0 : i32
    %c0_i32_2 = arith.constant 0 : i32
    return %c0_i32, %c0_i32_0, %c0_i32_1 : i32, i32, i32
  }
  func.func @transform_4(%arg0: i32) -> (i32, i32, i32) {
    %c0_i32 = arith.constant 0 : i32
    %c0_i32_0 = arith.constant 0 : i32
    %c0_i32_1 = arith.constant 0 : i32
    %c0_i32_2 = arith.constant 0 : i32
    return %c0_i32, %c0_i32_0, %c0_i32_1 : i32, i32, i32
  }
  func.func @transform_5(%arg0: i32) -> (i32, i32) {
    %c0_i32 = arith.constant 0 : i32
    %c0_i32_0 = arith.constant 0 : i32
    %c0_i32_1 = arith.constant 0 : i32
    return %c0_i32, %c0_i32_0 : i32, i32
  }
  func.func @transform_6(%arg0: i32) -> (i32, i32) {
    %c0_i32 = arith.constant 0 : i32
    %c0_i32_0 = arith.constant 0 : i32
    %c0_i32_1 = arith.constant 0 : i32
    return %c0_i32, %c0_i32_0 : i32, i32
  }
  func.func @transform_7(%arg0: i32) -> (i32, i32) {
    %c0_i32 = arith.constant 0 : i32
    %c0_i32_0 = arith.constant 0 : i32
    %c0_i32_1 = arith.constant 0 : i32
    return %c0_i32, %c0_i32_0 : i32, i32
  }
  func.func @transform_8(%arg0: i32) -> (i32, i32) {
    %c0_i32 = arith.constant 0 : i32
    %c0_i32_0 = arith.constant 0 : i32
    %c0_i32_1 = arith.constant 0 : i32
    return %c0_i32, %c0_i32_0 : i32, i32
  }
  func.func @transform_9(%arg0: i32) -> (i32, i32, i32) {
    %c0_i32 = arith.constant 0 : i32
    %c0_i32_0 = arith.constant 0 : i32
    %c0_i32_1 = arith.constant 0 : i32
    return %arg0, %c0_i32, %c0_i32_0 : i32, i32, i32
  }
}

</mosaic_0001>

<llo_original>
// kernel: conv_sequence_forward.1
$region0: #{conv_sequence_forward.1}
  #allocation0 [shape = 'u32[]', space=smem, size = 0x4, offset = 0x4, fixed_abs, tag = 'smem constant byte address 0x4 - core index']
  #allocation1 [shape = 'u32[144,128]{1,0:T(1,128)}', space=vmem, size = 0x12000, scoped, tag = 'internal scratch']
  #allocation2 [shape = 'f32[342,8]{1,0:T(8,128)}', space=vmem, size = 0x2b000, scoped, tag = 'scratch operand']
  #allocation3 [shape = 'f32[110,8]{1,0:T(8,128)}', space=vmem, size = 0xe000, scoped, tag = 'scratch operand']
  #allocation4 [shape = 'f32[110,8]{1,0:T(8,128)}', space=vmem, size = 0xe000, scoped, tag = 'scratch operand']
  %s0 = inlined_call_operand.vmem [shape: f32[2,342,4], index: 0, kind: input, shape index: {}]
  %s1 = inlined_call_operand.vmem [shape: bf16[36,8], index: 1, kind: input, shape index: {}]
  %s2 = inlined_call_operand.vmem [shape: f32[1,8], index: 2, kind: input, shape index: {}]
  %s3 = inlined_call_operand.vmem [shape: bf16[4,72,8], index: 3, kind: input, shape index: {}]
  %s4 = inlined_call_operand.vmem [shape: f32[4,1,8], index: 4, kind: input, shape index: {}]
  %s5 = inlined_call_operand.vmem [shape: f32[288,1], index: 5, kind: input, shape index: {}]
  %s6 = inlined_call_operand.vmem [shape: f32[80,1], index: 6, kind: input, shape index: {}]
  %s7 = inlined_call_operand.vmem [shape: f32[80,288], index: 7, kind: input, shape index: {}]
  %s8 = inlined_call_operand.vmem [shape: f32[64,80], index: 8, kind: input, shape index: {}]
  %s9 = inlined_call_operand.vmem [shape: f32[2,64,8], index: 9, kind: output, shape index: {}]
  %s10 = sld [smem:[#allocation0]]
  $region69: #{conv_sequence_forward.1} parent=0
    _
  %s12 = ssub.s32 1, %s10
  %s13 = scalar_select 0, %s12, %s10
  loop: start=0, step=1, limit=4
  $region2: #{conv_sequence_forward.1} parent=0 // loop_pre_header
    _
  $region3: #{conv_sequence_forward.1} parent=0 // loop_header
    %s15 = sphi 0, %s19
    %p16 = scmp.ge.s32.totalorder %s15, 4
    %s25 = sphi 0, %s27
    %s28 = sphi 0, %s25
    %s29 = sphi 0, %s28
    %s45 = sphi 0, %s29
    %s49 = sphi 0, %s49
    %s51 = sphi 0, %s49
    %s52 = sphi 0, %s51
    %s66 = sphi 0, %s52
    %s70 = sphi 0, %s70
    %s72 = sphi 0, %s70
    %s73 = sphi 0, %s72
    %s87 = sphi 0, %s73
    %s91 = sphi 0, %s91
    %s93 = sphi 0, %s91
    %s94 = sphi 0, %s93
    %s108 = sphi 0, %s94
    %s112 = sphi 0, %s112
    %s114 = sphi 0, %s112
    %s115 = sphi 0, %s114
    %s129 = sphi 0, %s115
    %s133 = sphi 0, %s133
    %s135 = sphi 0, %s133
    %s136 = sphi 0, %s135
    %s150 = sphi 0, %s136
    %s154 = sphi 0, %s154
    %s156 = sphi 0, %s154
    %s157 = sphi 0, %s156
    %s171 = sphi 0, %s157
    %s175 = sphi 0, %s175
    %s177 = sphi 0, %s175
    %s178 = sphi 0, %s177
    %s192 = sphi 0, %s178
    %s196 = sphi 0, %s196
    %s198 = sphi 0, %s196
    %s199 = sphi 0, %s198
    %s213 = sphi 0, %s199
    %s219 = sphi 0, %s221
    %s222 = sphi 0, %s219
    %s223 = sphi 0, %s222
    %s239 = sphi 0, %s223
  $region4: #{conv_sequence_forward.1} parent=0 // loop_header_branch
    %18 = sbr.rel (%p16) target = $region8
  $region5: #{conv_sequence_forward.1} parent=0 // loop_body
    %s20 = ssub.s32 %s15, 1
    %s21 = ssub.s32 %s15, 2
    %s22 = sadd.s32 %s15, 1
    %s23 = ssub.s32 %s15, %s22
    %p24 = scmp.eq.s32.totalorder %s23, 0
    %s26 = sadd.s32 %s25, 1
    %s27 = scalar_select %p24, %s25, %s26
    %p30 = pneg %p24
    %p31 = scmp.eq.s32.totalorder %s15, 1
    %p32 = por %p30, %p31
    %p33 = scmp.ne.s32.totalorder %s25, %s28
    %p34 = scmp.eq.s32.totalorder %s15, 0
    %p35 = por %p33, %p34
    %p36 = scmp.ne.s32.totalorder %s25, %s28
    %p37 = scmp.eq.s32.totalorder %s20, 1
    %p38 = por %p36, %p37
    %p39 = scmp.ne.s32.totalorder %s28, %s29
    %p40 = scmp.eq.s32.totalorder %s20, 0
    %p41 = por %p39, %p40
    %p42 = scmp.ne.s32.totalorder %s28, %s29
    %p43 = scmp.eq.s32.totalorder %s21, 1
    %p44 = por %p42, %p43
    %p46 = scmp.ne.s32.totalorder %s29, %s45
    %p47 = scmp.eq.s32.totalorder %s21, 0
    %p48 = por %p46, %p47
    %s50 = sadd.s32 %s49, 1
    %p53 = scmp.eq.s32.totalorder %s15, 1
    %p54 = scmp.ne.s32.totalorder %s49, %s51
    %p55 = scmp.eq.s32.totalorder %s15, 0
    %p56 = por %p54, %p55
    %p57 = scmp.ne.s32.totalorder %s49, %s51
    %p58 = scmp.eq.s32.totalorder %s20, 1
    %p59 = por %p57, %p58
    %p60 = scmp.ne.s32.totalorder %s51, %s52
    %p61 = scmp.eq.s32.totalorder %s20, 0
    %p62 = por %p60, %p61
    %p63 = scmp.ne.s32.totalorder %s51, %s52
    %p64 = scmp.eq.s32.totalorder %s21, 1
    %p65 = por %p63, %p64
    %p67 = scmp.ne.s32.totalorder %s52, %s66
    %p68 = scmp.eq.s32.totalorder %s21, 0
    %p69 = por %p67, %p68
    %s71 = sadd.s32 %s70, 1
    %p74 = scmp.eq.s32.totalorder %s15, 1
    %p75 = scmp.ne.s32.totalorder %s70, %s72
    %p76 = scmp.eq.s32.totalorder %s15, 0
    %p77 = por %p75, %p76
    %p78 = scmp.ne.s32.totalorder %s70, %s72
    %p79 = scmp.eq.s32.totalorder %s20, 1
    %p80 = por %p78, %p79
    %p81 = scmp.ne.s32.totalorder %s72, %s73
    %p82 = scmp.eq.s32.totalorder %s20, 0
    %p83 = por %p81, %p82
    %p84 = scmp.ne.s32.totalorder %s72, %s73
    %p85 = scmp.eq.s32.totalorder %s21, 1
    %p86 = por %p84, %p85
    %p88 = scmp.ne.s32.totalorder %s73, %s87
    %p89 = scmp.eq.s32.totalorder %s21, 0
    %p90 = por %p88, %p89
    %s92 = sadd.s32 %s91, 1
    %p95 = scmp.eq.s32.totalorder %s15, 1
    %p96 = scmp.ne.s32.totalorder %s91, %s93
    %p97 = scmp.eq.s32.totalorder %s15, 0
    %p98 = por %p96, %p97
    %p99 = scmp.ne.s32.totalorder %s91, %s93
    %p100 = scmp.eq.s32.totalorder %s20, 1
    %p101 = por %p99, %p100
    %p102 = scmp.ne.s32.totalorder %s93, %s94
    %p103 = scmp.eq.s32.totalorder %s20, 0
    %p104 = por %p102, %p103
    %p105 = scmp.ne.s32.totalorder %s93, %s94
    %p106 = scmp.eq.s32.totalorder %s21, 1
    %p107 = por %p105, %p106
    %p109 = scmp.ne.s32.totalorder %s94, %s108
    %p110 = scmp.eq.s32.totalorder %s21, 0
    %p111 = por %p109, %p110
    %s113 = sadd.s32 %s112, 1
    %p116 = scmp.eq.s32.totalorder %s15, 1
    %p117 = scmp.ne.s32.totalorder %s112, %s114
    %p118 = scmp.eq.s32.totalorder %s15, 0
    %p119 = por %p117, %p118
    %p120 = scmp.ne.s32.totalorder %s112, %s114
    %p121 = scmp.eq.s32.totalorder %s20, 1
    %p122 = por %p120, %p121
    %p123 = scmp.ne.s32.totalorder %s114, %s115
    %p124 = scmp.eq.s32.totalorder %s20, 0
    %p125 = por %p123, %p124
    %p126 = scmp.ne.s32.totalorder %s114, %s115
    %p127 = scmp.eq.s32.totalorder %s21, 1
    %p128 = por %p126, %p127
    %p130 = scmp.ne.s32.totalorder %s115, %s129
    %p131 = scmp.eq.s32.totalorder %s21, 0
    %p132 = por %p130, %p131
    %s134 = sadd.s32 %s133, 1
    %p137 = scmp.eq.s32.totalorder %s15, 1
    %p138 = scmp.ne.s32.totalorder %s133, %s135
    %p139 = scmp.eq.s32.totalorder %s15, 0
    %p140 = por %p138, %p139
    %p141 = scmp.ne.s32.totalorder %s133, %s135
    %p142 = scmp.eq.s32.totalorder %s20, 1
    %p143 = por %p141, %p142
    %p144 = scmp.ne.s32.totalorder %s135, %s136
    %p145 = scmp.eq.s32.totalorder %s20, 0
    %p146 = por %p144, %p145
    %p147 = scmp.ne.s32.totalorder %s135, %s136
    %p148 = scmp.eq.s32.totalorder %s21, 1
    %p149 = por %p147, %p148
    %p151 = scmp.ne.s32.totalorder %s136, %s150
    %p152 = scmp.eq.s32.totalorder %s21, 0
    %p153 = por %p151, %p152
    %s155 = sadd.s32 %s154, 1
    %p158 = scmp.eq.s32.totalorder %s15, 1
    %p159 = scmp.ne.s32.totalorder %s154, %s156
    %p160 = scmp.eq.s32.totalorder %s15, 0
    %p161 = por %p159, %p160
    %p162 = scmp.ne.s32.totalorder %s154, %s156
    %p163 = scmp.eq.s32.totalorder %s20, 1
    %p164 = por %p162, %p163
    %p165 = scmp.ne.s32.totalorder %s156, %s157
    %p166 = scmp.eq.s32.totalorder %s20, 0
    %p167 = por %p165, %p166
    %p168 = scmp.ne.s32.totalorder %s156, %s157
    %p169 = scmp.eq.s32.totalorder %s21, 1
    %p170 = por %p168, %p169
    %p172 = scmp.ne.s32.totalorder %s157, %s171
    %p173 = scmp.eq.s32.totalorder %s21, 0
    %p174 = por %p172, %p173
    %s176 = sadd.s32 %s175, 1
    %p179 = scmp.eq.s32.totalorder %s15, 1
    %p180 = scmp.ne.s32.totalorder %s175, %s177
    %p181 = scmp.eq.s32.totalorder %s15, 0
    %p182 = por %p180, %p181
    %p183 = scmp.ne.s32.totalorder %s175, %s177
    %p184 = scmp.eq.s32.totalorder %s20, 1
    %p185 = por %p183, %p184
    %p186 = scmp.ne.s32.totalorder %s177, %s178
    %p187 = scmp.eq.s32.totalorder %s20, 0
    %p188 = por %p186, %p187
    %p189 = scmp.ne.s32.totalorder %s177, %s178
    %p190 = scmp.eq.s32.totalorder %s21, 1
    %p191 = por %p189, %p190
    %p193 = scmp.ne.s32.totalorder %s178, %s192
    %p194 = scmp.eq.s32.totalorder %s21, 0
    %p195 = por %p193, %p194
    %s197 = sadd.s32 %s196, 1
    %p200 = scmp.eq.s32.totalorder %s15, 1
    %p201 = scmp.ne.s32.totalorder %s196, %s198
    %p202 = scmp.eq.s32.totalorder %s15, 0
    %p203 = por %p201, %p202
    %p204 = scmp.ne.s32.totalorder %s196, %s198
    %p205 = scmp.eq.s32.totalorder %s20, 1
    %p206 = por %p204, %p205
    %p207 = scmp.ne.s32.totalorder %s198, %s199
    %p208 = scmp.eq.s32.totalorder %s20, 0
    %p209 = por %p207, %p208
    %p210 = scmp.ne.s32.totalorder %s198, %s199
    %p211 = scmp.eq.s32.totalorder %s21, 1
    %p212 = por %p210, %p211
    %p214 = scmp.ne.s32.totalorder %s199, %s213
    %p215 = scmp.eq.s32.totalorder %s21, 0
    %p216 = por %p214, %p215
    %s217 = ssub.s32 %s15, %s22
    %p218 = scmp.eq.s32.totalorder %s217, 0
    %s220 = sadd.s32 %s219, 1
    %s221 = scalar_select %p218, %s219, %s220
    %p224 = pneg %p218
    %p225 = scmp.eq.s32.totalorder %s15, 1
    %p226 = por %p224, %p225
    %p227 = scmp.ne.s32.totalorder %s219, %s222
    %p228 = scmp.eq.s32.totalorder %s15, 0
    %p229 = por %p227, %p228
    %p230 = scmp.ne.s32.totalorder %s219, %s222
    %p231 = scmp.eq.s32.totalorder %s20, 1
    %p232 = por %p230, %p231
    %p233 = scmp.ne.s32.totalorder %s222, %s223
    %p234 = scmp.eq.s32.totalorder %s20, 0
    %p235 = por %p233, %p234
    %p236 = scmp.ne.s32.totalorder %s222, %s223
    %p237 = scmp.eq.s32.totalorder %s21, 1
    %p238 = por %p236, %p237
    %p240 = scmp.ne.s32.totalorder %s223, %s239
    %p241 = scmp.eq.s32.totalorder %s21, 0
    %p242 = por %p240, %p241
    %p243 = scmp.le.s32.totalorder 1, %s15
    %p244 = scmp.lt.s32.totalorder %s15, 3
    %p245 = pnand %p243, %p244
    %p246 = pneg %p245
    // Predicated region
    $region9: #{conv_sequence_forward.1} parent=5 // pred_check
      _
    $region10: #{conv_sequence_forward.1} parent=5 // pred_check_branch
      %248 = sbr.rel (%p245) target = $region12
    $region11: #{conv_sequence_forward.1} parent=5 // pred_region
      %s249 = ssub.s32 %s15, 1
      // Predicated region
      $region13: #{conv_sequence_forward.1} parent=11 // pred_check
        %p250 = pneg %p62
      $region14: #{conv_sequence_forward.1} parent=11 // pred_check_branch
        %252 = sbr.rel (%p250) target = $region16
      $region15: #{conv_sequence_forward.1} parent=11 // pred_region
        _
      $region16: #{conv_sequence_forward.1} parent=11 // pred_fallthru
        _
      // Predicated region
      $region17: #{conv_sequence_forward.1} parent=11 // pred_check
        %p253 = pneg %p83
      $region18: #{conv_sequence_forward.1} parent=11 // pred_check_branch
        %255 = sbr.rel (%p253) target = $region20
      $region19: #{conv_sequence_forward.1} parent=11 // pred_region
        _
      $region20: #{conv_sequence_forward.1} parent=11 // pred_fallthru
        _
      // Predicated region
      $region21: #{conv_sequence_forward.1} parent=11 // pred_check
        %p256 = pneg %p104
      $region22: #{conv_sequence_forward.1} parent=11 // pred_check_branch
        %258 = sbr.rel (%p256) target = $region24
      $region23: #{conv_sequence_forward.1} parent=11 // pred_region
        _
      $region24: #{conv_sequence_forward.1} parent=11 // pred_fallthru
        _
      // Predicated region
      $region25: #{conv_sequence_forward.1} parent=11 // pred_check
        %p259 = pneg %p125
      $region26: #{conv_sequence_forward.1} parent=11 // pred_check_branch
        %261 = sbr.rel (%p259) target = $region28
      $region27: #{conv_sequence_forward.1} parent=11 // pred_region
        _
      $region28: #{conv_sequence_forward.1} parent=11 // pred_fallthru
        _
      // Predicated region
      $region29: #{conv_sequence_forward.1} parent=11 // pred_check
        %p262 = pneg %p146
      $region30: #{conv_sequence_forward.1} parent=11 // pred_check_branch
        %264 = sbr.rel (%p262) target = $region32
      $region31: #{conv_sequence_forward.1} parent=11 // pred_region
        _
      $region32: #{conv_sequence_forward.1} parent=11 // pred_fallthru
        _
      // Predicated region
      $region33: #{conv_sequence_forward.1} parent=11 // pred_check
        %p265 = pneg %p167
      $region34: #{conv_sequence_forward.1} parent=11 // pred_check_branch
        %267 = sbr.rel (%p265) target = $region36
      $region35: #{conv_sequence_forward.1} parent=11 // pred_region
        _
      $region36: #{conv_sequence_forward.1} parent=11 // pred_fallthru
        _
      // Predicated region
      $region37: #{conv_sequence_forward.1} parent=11 // pred_check
        %p268 = pneg %p188
      $region38: #{conv_sequence_forward.1} parent=11 // pred_check_branch
        %270 = sbr.rel (%p268) target = $region40
      $region39: #{conv_sequence_forward.1} parent=11 // pred_region
        _
      $region40: #{conv_sequence_forward.1} parent=11 // pred_fallthru
        _
      // Predicated region
      $region41: #{conv_sequence_forward.1} parent=11 // pred_check
        %p271 = pneg %p209
      $region42: #{conv_sequence_forward.1} parent=11 // pred_check_branch
        %273 = sbr.rel (%p271) target = $region44
      $region43: #{conv_sequence_forward.1} parent=11 // pred_region
        _
      $region44: #{conv_sequence_forward.1} parent=11 // pred_fallthru
        _
    $region12: #{conv_sequence_forward.1} parent=5 // pred_fallthru
      _
    %p274 = scmp.lt.s32.totalorder %s15, 2
    // Predicated region
    $region45: #{conv_sequence_forward.1} parent=5 // pred_check
      %p275 = pneg %p274
    $region46: #{conv_sequence_forward.1} parent=5 // pred_check_branch
      %277 = sbr.rel (%p275) target = $region48
    $region47: #{conv_sequence_forward.1} parent=5 // pred_region
      // Predicated region
      $region49: #{conv_sequence_forward.1} parent=47 // pred_check
        %p278 = pneg %p35
      $region50: #{conv_sequence_forward.1} parent=47 // pred_check_branch
        %280 = sbr.rel (%p278) target = $region52
      $region51: #{conv_sequence_forward.1} parent=47 // pred_region
        %p281 = scmp.lt.s32.totalorder %s15, 1
        %s282 = scalar_select %p281, %s15, 1
        %s283 = smul.addr %s282, 43
        %s284 = smul.addr %s283, 8
        %s285 = scalar_lea.vmem %s0, %s284
      $region52: #{conv_sequence_forward.1} parent=47 // pred_fallthru
        _
    $region48: #{conv_sequence_forward.1} parent=5 // pred_fallthru
      _
    %p286 = scmp.le.s32.totalorder 1, %s15
    %p287 = scmp.lt.s32.totalorder %s15, 3
    %p288 = pnand %p286, %p287
    %p289 = pneg %p288
    // Predicated region
    $region53: #{conv_sequence_forward.1} parent=5 // pred_check
      _
    $region54: #{conv_sequence_forward.1} parent=5 // pred_check_branch
      %291 = sbr.rel (%p288) target = $region56
    $region55: #{conv_sequence_forward.1} parent=5 // pred_region
      %s292 = ssub.s32 %s15, 1
      %p293 = scmp.lt.s32.totalorder %s20, 1
      %s294 = scalar_select %p293, %s20, 1
      %s295 = smul.addr %s294, 43
      %s296 = smul.addr %s295, 8
      %s297 = scalar_lea.vmem %s0, %s296
      %p298 = pneg %p41
      %p299 = pneg %p38
      %p300 = pneg %p62
      %p301 = pneg %p59
      %p302 = pneg %p83
      %p303 = pneg %p80
      %p304 = pneg %p104
      %p305 = pneg %p101
      %p306 = pneg %p125
      %p307 = pneg %p122
      %p308 = pneg %p146
      %p309 = pneg %p143
      %p310 = pneg %p167
      %p311 = pneg %p164
      %p312 = pneg %p188
      %p313 = pneg %p185
      %p314 = pneg %p209
      %p315 = pneg %p206
      %p316 = pneg %p235
      %p317 = pneg %p232
      %p318 = scmp.lt.s32.totalorder %s20, 1
      %s319 = scalar_select %p318, %s20, 1
      %s320 = smul.addr %s319, 8
      %s321 = smul.addr %s320, 8
      %s322 = scalar_lea.vmem %s9, %s321
      %p323 = scmp.lt.s32.totalorder %s20, 1
      %s324 = scalar_select %p323, %s20, 1
      %s325 = smul.addr %s324, 43
      %s326 = smul.addr %s325, 8
      %s327 = scalar_lea.vmem %s0, %s326
      %p328 = scmp.lt.s32.totalorder %s20, 1
      %s329 = scalar_select %p328, %s20, 1
      %s330 = smul.addr %s329, 8
      %s331 = smul.addr %s330, 8
      %s332 = scalar_lea.vmem %s9, %s331
      %v334 = vld [vmem:[%s5] sm:$0xff]
      %v335 = vld [vmem:[%s5 + $0x8] sm:$0xff]
      %v336 = vld [vmem:[%s5 + $0x10] sm:$0xff]
      %v337 = vld [vmem:[%s5 + $0x18] sm:$0xff]
      %v338 = vld [vmem:[%s5 + $0x20] sm:$0xff]
      %v339 = vld [vmem:[%s5 + $0x28] sm:$0xff]
      %v340 = vld [vmem:[%s5 + $0x30] sm:$0xff]
      %v341 = vld [vmem:[%s5 + $0x38] sm:$0xff]
      %v342 = vld [vmem:[%s5 + $0x40] sm:$0xff]
      %v343 = vld [vmem:[%s5 + $0x48] sm:$0xff]
      %v344 = vld [vmem:[%s5 + $0x50] sm:$0xff]
      %v345 = vld [vmem:[%s5 + $0x58] sm:$0xff]
      %v346 = vld [vmem:[%s5 + $0x60] sm:$0xff]
      %v347 = vld [vmem:[%s5 + $0x68] sm:$0xff]
      %v348 = vld [vmem:[%s5 + $0x70] sm:$0xff]
      %v349 = vld [vmem:[%s5 + $0x78] sm:$0xff]
      %v350 = vld [vmem:[%s5 + $0x80] sm:$0xff]
      %v351 = vld [vmem:[%s5 + $0x88] sm:$0xff]
      %v352 = vld [vmem:[%s5 + $0x90] sm:$0xff]
      %v353 = vld [vmem:[%s5 + $0x98] sm:$0xff]
      %v354 = vld [vmem:[%s5 + $0xa0] sm:$0xff]
      %v355 = vld [vmem:[%s5 + $0xa8] sm:$0xff]
      %v356 = vld [vmem:[%s5 + $0xb0] sm:$0xff]
      %v357 = vld [vmem:[%s5 + $0xb8] sm:$0xff]
      %v358 = vld [vmem:[%s5 + $0xc0] sm:$0xff]
      %v359 = vld [vmem:[%s5 + $0xc8] sm:$0xff]
      %v360 = vld [vmem:[%s5 + $0xd0] sm:$0xff]
      %v361 = vld [vmem:[%s5 + $0xd8] sm:$0xff]
      %v362 = vld [vmem:[%s5 + $0xe0] sm:$0xff]
      %v363 = vld [vmem:[%s5 + $0xe8] sm:$0xff]
      %v364 = vld [vmem:[%s5 + $0xf0] sm:$0xff]
      %v365 = vld [vmem:[%s5 + $0xf8] sm:$0xff]
      %v366 = vld [vmem:[%s5 + $0x100] sm:$0xff]
      %v367 = vld [vmem:[%s5 + $0x108] sm:$0xff]
      %v368 = vld [vmem:[%s5 + $0x110] sm:$0xff]
      %v369 = vld [vmem:[%s5 + $0x118] sm:$0xff]
      %vm370 = vcmp.gt.f32.partialorder %v334, 0.5
      %vm371 = vcmp.gt.f32.partialorder %v335, 0.5
      %vm372 = vcmp.gt.f32.partialorder %v336, 0.5
      %vm373 = vcmp.gt.f32.partialorder %v337, 0.5
      %vm374 = vcmp.gt.f32.partialorder %v338, 0.5
      %vm375 = vcmp.gt.f32.partialorder %v339, 0.5
      %vm376 = vcmp.gt.f32.partialorder %v340, 0.5
      %vm377 = vcmp.gt.f32.partialorder %v341, 0.5
      %vm378 = vcmp.gt.f32.partialorder %v342, 0.5
      %vm379 = vcmp.gt.f32.partialorder %v343, 0.5
      %vm380 = vcmp.gt.f32.partialorder %v344, 0.5
      %vm381 = vcmp.gt.f32.partialorder %v345, 0.5
      %vm382 = vcmp.gt.f32.partialorder %v346, 0.5
      %vm383 = vcmp.gt.f32.partialorder %v347, 0.5
      %vm384 = vcmp.gt.f32.partialorder %v348, 0.5
      %vm385 = vcmp.gt.f32.partialorder %v349, 0.5
      %vm386 = vcmp.gt.f32.partialorder %v350, 0.5
      %vm387 = vcmp.gt.f32.partialorder %v351, 0.5
      %vm388 = vcmp.gt.f32.partialorder %v352, 0.5
      %vm389 = vcmp.gt.f32.partialorder %v353, 0.5
      %vm390 = vcmp.gt.f32.partialorder %v354, 0.5
      %vm391 = vcmp.gt.f32.partialorder %v355, 0.5
      %vm392 = vcmp.gt.f32.partialorder %v356, 0.5
      %vm393 = vcmp.gt.f32.partialorder %v357, 0.5
      %vm394 = vcmp.gt.f32.partialorder %v358, 0.5
      %vm395 = vcmp.gt.f32.partialorder %v359, 0.5
      %vm396 = vcmp.gt.f32.partialorder %v360, 0.5
      %vm397 = vcmp.gt.f32.partialorder %v361, 0.5
      %vm398 = vcmp.gt.f32.partialorder %v362, 0.5
      %vm399 = vcmp.gt.f32.partialorder %v363, 0.5
      %vm400 = vcmp.gt.f32.partialorder %v364, 0.5
      %vm401 = vcmp.gt.f32.partialorder %v365, 0.5
      %vm402 = vcmp.gt.f32.partialorder %v366, 0.5
      %vm403 = vcmp.gt.f32.partialorder %v367, 0.5
      %vm404 = vcmp.gt.f32.partialorder %v368, 0.5
      %vm405 = vcmp.gt.f32.partialorder %v369, 0.5
      %v406 = vld [vmem:[%s6] sm:$0xff]
      %v407 = vld [vmem:[%s6 + $0x8] sm:$0xff]
      %v408 = vld [vmem:[%s6 + $0x10] sm:$0xff]
      %v409 = vld [vmem:[%s6 + $0x18] sm:$0xff]
      %v410 = vld [vmem:[%s6 + $0x20] sm:$0xff]
      %v411 = vld [vmem:[%s6 + $0x28] sm:$0xff]
      %v412 = vld [vmem:[%s6 + $0x30] sm:$0xff]
      %v413 = vld [vmem:[%s6 + $0x38] sm:$0xff]
      %v414 = vld [vmem:[%s6 + $0x40] sm:$0xff]
      %v415 = vld [vmem:[%s6 + $0x48] sm:$0xff]
      %vm416 = vcmp.gt.f32.partialorder %v406, 0.5
      %vm417 = vcmp.gt.f32.partialorder %v407, 0.5
      %vm418 = vcmp.gt.f32.partialorder %v408, 0.5
      %vm419 = vcmp.gt.f32.partialorder %v409, 0.5
      %vm420 = vcmp.gt.f32.partialorder %v410, 0.5
      %vm421 = vcmp.gt.f32.partialorder %v411, 0.5
      %vm422 = vcmp.gt.f32.partialorder %v412, 0.5
      %vm423 = vcmp.gt.f32.partialorder %v413, 0.5
      %vm424 = vcmp.gt.f32.partialorder %v414, 0.5
      %vm425 = vcmp.gt.f32.partialorder %v415, 0.5
      %v426 = vld [vmem:[%s327] sm:$0xff]
      %v427 = vld [vmem:[%s327 + $0x8] sm:$0xff]
      %v428 = vld [vmem:[%s327 + $0x10] sm:$0xff]
      %v429 = vld [vmem:[%s327 + $0x18] sm:$0xff]
      %v430 = vld [vmem:[%s327 + $0x20] sm:$0xff]
      %v431 = vld [vmem:[%s327 + $0x28] sm:$0xff]
      %v432 = vld [vmem:[%s327 + $0x30] sm:$0xff]
      %v433 = vld [vmem:[%s327 + $0x38] sm:$0xff]
      %v434 = vld [vmem:[%s327 + $0x40] sm:$0xff]
      %v435 = vld [vmem:[%s327 + $0x48] sm:$0xff]
      %v436 = vld [vmem:[%s327 + $0x50] sm:$0xff]
      %v437 = vld [vmem:[%s327 + $0x58] sm:$0xff]
      %v438 = vld [vmem:[%s327 + $0x60] sm:$0xff]
      %v439 = vld [vmem:[%s327 + $0x68] sm:$0xff]
      %v440 = vld [vmem:[%s327 + $0x70] sm:$0xff]
      %v441 = vld [vmem:[%s327 + $0x78] sm:$0xff]
      %v442 = vld [vmem:[%s327 + $0x80] sm:$0xff]
      %v443 = vld [vmem:[%s327 + $0x88] sm:$0xff]
      %v444 = vld [vmem:[%s327 + $0x90] sm:$0xff]
      %v445 = vld [vmem:[%s327 + $0x98] sm:$0xff]
      %v446 = vld [vmem:[%s327 + $0xa0] sm:$0xff]
      %v447 = vld [vmem:[%s327 + $0xa8] sm:$0xff]
      %v448 = vld [vmem:[%s327 + $0xb0] sm:$0xff]
      %v449 = vld [vmem:[%s327 + $0xb8] sm:$0xff]
      %v450 = vld [vmem:[%s327 + $0xc0] sm:$0xff]
      %v451 = vld [vmem:[%s327 + $0xc8] sm:$0xff]
      %v452 = vld [vmem:[%s327 + $0xd0] sm:$0xff]
      %v453 = vld [vmem:[%s327 + $0xd8] sm:$0xff]
      %v454 = vld [vmem:[%s327 + $0xe0] sm:$0xff]
      %v455 = vld [vmem:[%s327 + $0xe8] sm:$0xff]
      %v456 = vld [vmem:[%s327 + $0xf0] sm:$0xff]
      %v457 = vld [vmem:[%s327 + $0xf8] sm:$0xff]
      %v458 = vld [vmem:[%s327 + $0x100] sm:$0xff]
      %v459 = vld [vmem:[%s327 + $0x108] sm:$0xff]
      %v460 = vld [vmem:[%s327 + $0x110] sm:$0xff]
      %v461 = vld [vmem:[%s327 + $0x118] sm:$0xff]
      %v462 = vld [vmem:[%s327 + $0x120] sm:$0xff]
      %v463 = vld [vmem:[%s327 + $0x128] sm:$0xff]
      %v464 = vld [vmem:[%s327 + $0x130] sm:$0xff]
      %v465 = vld [vmem:[%s327 + $0x138] sm:$0xff]
      %v466 = vld [vmem:[%s327 + $0x140] sm:$0xff]
      %v467 = vld [vmem:[%s1] sm:$0xf]
      %v468 = vld [vmem:[%s1 + $0x4] sm:$0xf]
      %v469 = vld [vmem:[%s1 + $0x8] sm:$0xf]
      %v470 = vld [vmem:[%s1 + $0xc] sm:$0xf]
      %v471 = vld [vmem:[%s1 + $0x10] sm:$0x3]
      %v472 = vld [vmem:[%s2] sm:$0x1]
      %vm510 = vcmask 1046528
      %v511 = vrot.slane %v426, 1
      %v512 = vrot.slane %v427, 1
      %v513 = vsel %vm510, %v511, %v512
      %v514 = vrot.slane %v428, 1
      %v515 = vsel %vm510, %v512, %v514
      %v516 = vrot.slane %v429, 1
      %v517 = vsel %vm510, %v514, %v516
      %v518 = vrot.slane %v430, 1
      %v519 = vsel %vm510, %v516, %v518
      %v520 = vrot.slane %v431, 1
      %v521 = vsel %vm510, %v518, %v520
      %v522 = vrot.slane %v432, 1
      %v523 = vsel %vm510, %v520, %v522
      %v524 = vrot.slane %v433, 1
      %v525 = vsel %vm510, %v522, %v524
      %v526 = vrot.slane %v434, 1
      %v527 = vsel %vm510, %v524, %v526
      %v528 = vrot.slane %v435, 1
      %v529 = vsel %vm510, %v526, %v528
      %v530 = vrot.slane %v436, 1
      %v531 = vsel %vm510, %v528, %v530
      %v532 = vrot.slane %v437, 1
      %v533 = vsel %vm510, %v530, %v532
      %v534 = vrot.slane %v438, 1
      %v535 = vsel %vm510, %v532, %v534
      %v536 = vrot.slane %v439, 1
      %v537 = vsel %vm510, %v534, %v536
      %v538 = vrot.slane %v440, 1
      %v539 = vsel %vm510, %v536, %v538
      %v540 = vrot.slane %v441, 1
      %v541 = vsel %vm510, %v538, %v540
      %v542 = vrot.slane %v442, 1
      %v543 = vsel %vm510, %v540, %v542
      %v544 = vrot.slane %v443, 1
      %v545 = vsel %vm510, %v542, %v544
      %v546 = vrot.slane %v444, 1
      %v547 = vsel %vm510, %v544, %v546
      %v548 = vrot.slane %v445, 1
      %v549 = vsel %vm510, %v546, %v548
      %v550 = vrot.slane %v446, 1
      %v551 = vsel %vm510, %v548, %v550
      %v552 = vrot.slane %v447, 1
      %v553 = vsel %vm510, %v550, %v552
      %v554 = vrot.slane %v448, 1
      %v555 = vsel %vm510, %v552, %v554
      %v556 = vrot.slane %v449, 1
      %v557 = vsel %vm510, %v554, %v556
      %v558 = vrot.slane %v450, 1
      %v559 = vsel %vm510, %v556, %v558
      %v560 = vrot.slane %v451, 1
      %v561 = vsel %vm510, %v558, %v560
      %v562 = vrot.slane %v452, 1
      %v563 = vsel %vm510, %v560, %v562
      %v564 = vrot.slane %v453, 1
      %v565 = vsel %vm510, %v562, %v564
      %v566 = vrot.slane %v454, 1
      %v567 = vsel %vm510, %v564, %v566
      %v568 = vrot.slane %v455, 1
      %v569 = vsel %vm510, %v566, %v568
      %v570 = vrot.slane %v456, 1
      %v571 = vsel %vm510, %v568, %v570
      %v572 = vrot.slane %v457, 1
      %v573 = vsel %vm510, %v570, %v572
      %v574 = vrot.slane %v458, 1
      %v575 = vsel %vm510, %v572, %v574
      %v576 = vrot.slane %v459, 1
      %v577 = vsel %vm510, %v574, %v576
      %v578 = vrot.slane %v460, 1
      %v579 = vsel %vm510, %v576, %v578
      %v580 = vrot.slane %v461, 1
      %v581 = vsel %vm510, %v578, %v580
      %v582 = vrot.slane %v462, 1
      %v583 = vsel %vm510, %v580, %v582
      %584 = vrot.lane.b32.xlu0 %v513, 4
      %v585 = vpop.permute.xlu0 %584
      %586 = vrot.lane.b32.xlu0 %v515, 4
      %v587 = vpop.permute.xlu0 %586
      %588 = vrot.lane.b32.xlu0 %v517, 4
      %v589 = vpop.permute.xlu0 %588
      %590 = vrot.lane.b32.xlu0 %v519, 4
      %v591 = vpop.permute.xlu0 %590
      %592 = vrot.lane.b32.xlu0 %v521, 4
      %v593 = vpop.permute.xlu0 %592
      %594 = vrot.lane.b32.xlu0 %v523, 4
      %v595 = vpop.permute.xlu0 %594
      %596 = vrot.lane.b32.xlu0 %v525, 4
      %v597 = vpop.permute.xlu0 %596
      %598 = vrot.lane.b32.xlu0 %v527, 4
      %v599 = vpop.permute.xlu0 %598
      %600 = vrot.lane.b32.xlu0 %v529, 4
      %v601 = vpop.permute.xlu0 %600
      %602 = vrot.lane.b32.xlu0 %v531, 4
      %v603 = vpop.permute.xlu0 %602
      %604 = vrot.lane.b32.xlu0 %v533, 4
      %v605 = vpop.permute.xlu0 %604
      %606 = vrot.lane.b32.xlu0 %v535, 4
      %v607 = vpop.permute.xlu0 %606
      %608 = vrot.lane.b32.xlu0 %v537, 4
      %v609 = vpop.permute.xlu0 %608
      %610 = vrot.lane.b32.xlu0 %v539, 4
      %v611 = vpop.permute.xlu0 %610
      %612 = vrot.lane.b32.xlu0 %v541, 4
      %v613 = vpop.permute.xlu0 %612
      %614 = vrot.lane.b32.xlu0 %v543, 4
      %v615 = vpop.permute.xlu0 %614
      %616 = vrot.lane.b32.xlu0 %v545, 4
      %v617 = vpop.permute.xlu0 %616
      %618 = vrot.lane.b32.xlu0 %v547, 4
      %v619 = vpop.permute.xlu0 %618
      %620 = vrot.lane.b32.xlu0 %v549, 4
      %v621 = vpop.permute.xlu0 %620
      %622 = vrot.lane.b32.xlu0 %v551, 4
      %v623 = vpop.permute.xlu0 %622
      %624 = vrot.lane.b32.xlu0 %v553, 4
      %v625 = vpop.permute.xlu0 %624
      %626 = vrot.lane.b32.xlu0 %v555, 4
      %v627 = vpop.permute.xlu0 %626
      %628 = vrot.lane.b32.xlu0 %v557, 4
      %v629 = vpop.permute.xlu0 %628
      %630 = vrot.lane.b32.xlu0 %v559, 4
      %v631 = vpop.permute.xlu0 %630
      %632 = vrot.lane.b32.xlu0 %v561, 4
      %v633 = vpop.permute.xlu0 %632
      %634 = vrot.lane.b32.xlu0 %v563, 4
      %v635 = vpop.permute.xlu0 %634
      %636 = vrot.lane.b32.xlu0 %v565, 4
      %v637 = vpop.permute.xlu0 %636
      %638 = vrot.lane.b32.xlu0 %v567, 4
      %v639 = vpop.permute.xlu0 %638
      %640 = vrot.lane.b32.xlu0 %v569, 4
      %v641 = vpop.permute.xlu0 %640
      %642 = vrot.lane.b32.xlu0 %v571, 4
      %v643 = vpop.permute.xlu0 %642
      %644 = vrot.lane.b32.xlu0 %v573, 4
      %v645 = vpop.permute.xlu0 %644
      %646 = vrot.lane.b32.xlu0 %v575, 4
      %v647 = vpop.permute.xlu0 %646
      %648 = vrot.lane.b32.xlu0 %v577, 4
      %v649 = vpop.permute.xlu0 %648
      %650 = vrot.lane.b32.xlu0 %v579, 4
      %v651 = vpop.permute.xlu0 %650
      %652 = vrot.lane.b32.xlu0 %v581, 4
      %v653 = vpop.permute.xlu0 %652
      %654 = vrot.lane.b32.xlu0 %v583, 4
      %v655 = vpop.permute.xlu0 %654
      %vm692 = vcmask 1045504
      %v693 = vrot.slane %v426, 2
      %v694 = vrot.slane %v427, 2
      %v695 = vsel %vm692, %v693, %v694
      %v696 = vrot.slane %v428, 2
      %v697 = vsel %vm692, %v694, %v696
      %v698 = vrot.slane %v429, 2
      %v699 = vsel %vm692, %v696, %v698
      %v700 = vrot.slane %v430, 2
      %v701 = vsel %vm692, %v698, %v700
      %v702 = vrot.slane %v431, 2
      %v703 = vsel %vm692, %v700, %v702
      %v704 = vrot.slane %v432, 2
      %v705 = vsel %vm692, %v702, %v704
      %v706 = vrot.slane %v433, 2
      %v707 = vsel %vm692, %v704, %v706
      %v708 = vrot.slane %v434, 2
      %v709 = vsel %vm692, %v706, %v708
      %v710 = vrot.slane %v435, 2
      %v711 = vsel %vm692, %v708, %v710
      %v712 = vrot.slane %v436, 2
      %v713 = vsel %vm692, %v710, %v712
      %v714 = vrot.slane %v437, 2
      %v715 = vsel %vm692, %v712, %v714
      %v716 = vrot.slane %v438, 2
      %v717 = vsel %vm692, %v714, %v716
      %v718 = vrot.slane %v439, 2
      %v719 = vsel %vm692, %v716, %v718
      %v720 = vrot.slane %v440, 2
      %v721 = vsel %vm692, %v718, %v720
      %v722 = vrot.slane %v441, 2
      %v723 = vsel %vm692, %v720, %v722
      %v724 = vrot.slane %v442, 2
      %v725 = vsel %vm692, %v722, %v724
      %v726 = vrot.slane %v443, 2
      %v727 = vsel %vm692, %v724, %v726
      %v728 = vrot.slane %v444, 2
      %v729 = vsel %vm692, %v726, %v728
      %v730 = vrot.slane %v445, 2
      %v731 = vsel %vm692, %v728, %v730
      %v732 = vrot.slane %v446, 2
      %v733 = vsel %vm692, %v730, %v732
      %v734 = vrot.slane %v447, 2
      %v735 = vsel %vm692, %v732, %v734
      %v736 = vrot.slane %v448, 2
      %v737 = vsel %vm692, %v734, %v736
      %v738 = vrot.slane %v449, 2
      %v739 = vsel %vm692, %v736, %v738
      %v740 = vrot.slane %v450, 2
      %v741 = vsel %vm692, %v738, %v740
      %v742 = vrot.slane %v451, 2
      %v743 = vsel %vm692, %v740, %v742
      %v744 = vrot.slane %v452, 2
      %v745 = vsel %vm692, %v742, %v744
      %v746 = vrot.slane %v453, 2
      %v747 = vsel %vm692, %v744, %v746
      %v748 = vrot.slane %v454, 2
      %v749 = vsel %vm692, %v746, %v748
      %v750 = vrot.slane %v455, 2
      %v751 = vsel %vm692, %v748, %v750
      %v752 = vrot.slane %v456, 2
      %v753 = vsel %vm692, %v750, %v752
      %v754 = vrot.slane %v457, 2
      %v755 = vsel %vm692, %v752, %v754
      %v756 = vrot.slane %v458, 2
      %v757 = vsel %vm692, %v754, %v756
      %v758 = vrot.slane %v459, 2
      %v759 = vsel %vm692, %v756, %v758
      %v760 = vrot.slane %v460, 2
      %v761 = vsel %vm692, %v758, %v760
      %v762 = vrot.slane %v461, 2
      %v763 = vsel %vm692, %v760, %v762
      %v764 = vrot.slane %v462, 2
      %v765 = vsel %vm692, %v762, %v764
      %766 = vrot.lane.b32.xlu0 %v695, 8
      %v767 = vpop.permute.xlu0 %766
      %768 = vrot.lane.b32.xlu0 %v697, 8
      %v769 = vpop.permute.xlu0 %768
      %770 = vrot.lane.b32.xlu0 %v699, 8
      %v771 = vpop.permute.xlu0 %770
      %772 = vrot.lane.b32.xlu0 %v701, 8
      %v773 = vpop.permute.xlu0 %772
      %774 = vrot.lane.b32.xlu0 %v703, 8
      %v775 = vpop.permute.xlu0 %774
      %776 = vrot.lane.b32.xlu0 %v705, 8
      %v777 = vpop.permute.xlu0 %776
      %778 = vrot.lane.b32.xlu0 %v707, 8
      %v779 = vpop.permute.xlu0 %778
      %780 = vrot.lane.b32.xlu0 %v709, 8
      %v781 = vpop.permute.xlu0 %780
      %782 = vrot.lane.b32.xlu0 %v711, 8
      %v783 = vpop.permute.xlu0 %782
      %784 = vrot.lane.b32.xlu0 %v713, 8
      %v785 = vpop.permute.xlu0 %784
      %786 = vrot.lane.b32.xlu0 %v715, 8
      %v787 = vpop.permute.xlu0 %786
      %788 = vrot.lane.b32.xlu0 %v717, 8
      %v789 = vpop.permute.xlu0 %788
      %790 = vrot.lane.b32.xlu0 %v719, 8
      %v791 = vpop.permute.xlu0 %790
      %792 = vrot.lane.b32.xlu0 %v721, 8
      %v793 = vpop.permute.xlu0 %792
      %794 = vrot.lane.b32.xlu0 %v723, 8
      %v795 = vpop.permute.xlu0 %794
      %796 = vrot.lane.b32.xlu0 %v725, 8
      %v797 = vpop.permute.xlu0 %796
      %798 = vrot.lane.b32.xlu0 %v727, 8
      %v799 = vpop.permute.xlu0 %798
      %800 = vrot.lane.b32.xlu0 %v729, 8
      %v801 = vpop.permute.xlu0 %800
      %802 = vrot.lane.b32.xlu0 %v731, 8
      %v803 = vpop.permute.xlu0 %802
      %804 = vrot.lane.b32.xlu0 %v733, 8
      %v805 = vpop.permute.xlu0 %804
      %806 = vrot.lane.b32.xlu0 %v735, 8
      %v807 = vpop.permute.xlu0 %806
      %808 = vrot.lane.b32.xlu0 %v737, 8
      %v809 = vpop.permute.xlu0 %808
      %810 = vrot.lane.b32.xlu0 %v739, 8
      %v811 = vpop.permute.xlu0 %810
      %812 = vrot.lane.b32.xlu0 %v741, 8
      %v813 = vpop.permute.xlu0 %812
      %814 = vrot.lane.b32.xlu0 %v743, 8
      %v815 = vpop.permute.xlu0 %814
      %816 = vrot.lane.b32.xlu0 %v745, 8
      %v817 = vpop.permute.xlu0 %816
      %818 = vrot.lane.b32.xlu0 %v747, 8
      %v819 = vpop.permute.xlu0 %818
      %820 = vrot.lane.b32.xlu0 %v749, 8
      %v821 = vpop.permute.xlu0 %820
      %822 = vrot.lane.b32.xlu0 %v751, 8
      %v823 = vpop.permute.xlu0 %822
      %824 = vrot.lane.b32.xlu0 %v753, 8
      %v825 = vpop.permute.xlu0 %824
      %826 = vrot.lane.b32.xlu0 %v755, 8
      %v827 = vpop.permute.xlu0 %826
      %828 = vrot.lane.b32.xlu0 %v757, 8
      %v829 = vpop.permute.xlu0 %828
      %830 = vrot.lane.b32.xlu0 %v759, 8
      %v831 = vpop.permute.xlu0 %830
      %832 = vrot.lane.b32.xlu0 %v761, 8
      %v833 = vpop.permute.xlu0 %832
      %834 = vrot.lane.b32.xlu0 %v763, 8
      %v835 = vpop.permute.xlu0 %834
      %836 = vrot.lane.b32.xlu0 %v765, 8
      %v837 = vpop.permute.xlu0 %836
      %v876 = vrot.slane %v463, 2
      %v877 = vsel %vm692, %v764, %v876
      %v878 = vrot.slane %v464, 2
      %v879 = vsel %vm692, %v876, %v878
      %880 = vrot.lane.b32.xlu0 %v699, 12
      %v881 = vpop.permute.xlu0 %880
      %882 = vrot.lane.b32.xlu0 %v701, 12
      %v883 = vpop.permute.xlu0 %882
      %884 = vrot.lane.b32.xlu0 %v703, 12
      %v885 = vpop.permute.xlu0 %884
      %886 = vrot.lane.b32.xlu0 %v705, 12
      %v887 = vpop.permute.xlu0 %886
      %888 = vrot.lane.b32.xlu0 %v707, 12
      %v889 = vpop.permute.xlu0 %888
      %890 = vrot.lane.b32.xlu0 %v709, 12
      %v891 = vpop.permute.xlu0 %890
      %892 = vrot.lane.b32.xlu0 %v711, 12
      %v893 = vpop.permute.xlu0 %892
      %894 = vrot.lane.b32.xlu0 %v713, 12
      %v895 = vpop.permute.xlu0 %894
      %896 = vrot.lane.b32.xlu0 %v715, 12
      %v897 = vpop.permute.xlu0 %896
      %898 = vrot.lane.b32.xlu0 %v717, 12
      %v899 = vpop.permute.xlu0 %898
      %900 = vrot.lane.b32.xlu0 %v719, 12
      %v901 = vpop.permute.xlu0 %900
      %902 = vrot.lane.b32.xlu0 %v721, 12
      %v903 = vpop.permute.xlu0 %902
      %904 = vrot.lane.b32.xlu0 %v723, 12
      %v905 = vpop.permute.xlu0 %904
      %906 = vrot.lane.b32.xlu0 %v725, 12
      %v907 = vpop.permute.xlu0 %906
      %908 = vrot.lane.b32.xlu0 %v727, 12
      %v909 = vpop.permute.xlu0 %908
      %910 = vrot.lane.b32.xlu0 %v729, 12
      %v911 = vpop.permute.xlu0 %910
      %912 = vrot.lane.b32.xlu0 %v731, 12
      %v913 = vpop.permute.xlu0 %912
      %914 = vrot.lane.b32.xlu0 %v733, 12
      %v915 = vpop.permute.xlu0 %914
      %916 = vrot.lane.b32.xlu0 %v735, 12
      %v917 = vpop.permute.xlu0 %916
      %918 = vrot.lane.b32.xlu0 %v737, 12
      %v919 = vpop.permute.xlu0 %918
      %920 = vrot.lane.b32.xlu0 %v739, 12
      %v921 = vpop.permute.xlu0 %920
      %922 = vrot.lane.b32.xlu0 %v741, 12
      %v923 = vpop.permute.xlu0 %922
      %924 = vrot.lane.b32.xlu0 %v743, 12
      %v925 = vpop.permute.xlu0 %924
      %926 = vrot.lane.b32.xlu0 %v745, 12
      %v927 = vpop.permute.xlu0 %926
      %928 = vrot.lane.b32.xlu0 %v747, 12
      %v929 = vpop.permute.xlu0 %928
      %930 = vrot.lane.b32.xlu0 %v749, 12
      %v931 = vpop.permute.xlu0 %930
      %932 = vrot.lane.b32.xlu0 %v751, 12
      %v933 = vpop.permute.xlu0 %932
      %934 = vrot.lane.b32.xlu0 %v753, 12
      %v935 = vpop.permute.xlu0 %934
      %936 = vrot.lane.b32.xlu0 %v755, 12
      %v937 = vpop.permute.xlu0 %936
      %938 = vrot.lane.b32.xlu0 %v757, 12
      %v939 = vpop.permute.xlu0 %938
      %940 = vrot.lane.b32.xlu0 %v759, 12
      %v941 = vpop.permute.xlu0 %940
      %942 = vrot.lane.b32.xlu0 %v761, 12
      %v943 = vpop.permute.xlu0 %942
      %944 = vrot.lane.b32.xlu0 %v763, 12
      %v945 = vpop.permute.xlu0 %944
      %946 = vrot.lane.b32.xlu0 %v765, 12
      %v947 = vpop.permute.xlu0 %946
      %948 = vrot.lane.b32.xlu0 %v877, 12
      %v949 = vpop.permute.xlu0 %948
      %950 = vrot.lane.b32.xlu0 %v879, 12
      %v951 = vpop.permute.xlu0 %950
      %vm988 = vcmask 1044480
      %v989 = vrot.slane %v428, 3
      %v990 = vrot.slane %v429, 3
      %v991 = vsel %vm988, %v989, %v990
      %v992 = vrot.slane %v430, 3
      %v993 = vsel %vm988, %v990, %v992
      %v994 = vrot.slane %v431, 3
      %v995 = vsel %vm988, %v992, %v994
      %v996 = vrot.slane %v432, 3
      %v997 = vsel %vm988, %v994, %v996
      %v998 = vrot.slane %v433, 3
      %v999 = vsel %vm988, %v996, %v998
      %v1000 = vrot.slane %v434, 3
      %v1001 = vsel %vm988, %v998, %v1000
      %v1002 = vrot.slane %v435, 3
      %v1003 = vsel %vm988, %v1000, %v1002
      %v1004 = vrot.slane %v436, 3
      %v1005 = vsel %vm988, %v1002, %v1004
      %v1006 = vrot.slane %v437, 3
      %v1007 = vsel %vm988, %v1004, %v1006
      %v1008 = vrot.slane %v438, 3
      %v1009 = vsel %vm988, %v1006, %v1008
      %v1010 = vrot.slane %v439, 3
      %v1011 = vsel %vm988, %v1008, %v1010
      %v1012 = vrot.slane %v440, 3
      %v1013 = vsel %vm988, %v1010, %v1012
      %v1014 = vrot.slane %v441, 3
      %v1015 = vsel %vm988, %v1012, %v1014
      %v1016 = vrot.slane %v442, 3
      %v1017 = vsel %vm988, %v1014, %v1016
      %v1018 = vrot.slane %v443, 3
      %v1019 = vsel %vm988, %v1016, %v1018
      %v1020 = vrot.slane %v444, 3
      %v1021 = vsel %vm988, %v1018, %v1020
      %v1022 = vrot.slane %v445, 3
      %v1023 = vsel %vm988, %v1020, %v1022
      %v1024 = vrot.slane %v446, 3
      %v1025 = vsel %vm988, %v1022, %v1024
      %v1026 = vrot.slane %v447, 3
      %v1027 = vsel %vm988, %v1024, %v1026
      %v1028 = vrot.slane %v448, 3
      %v1029 = vsel %vm988, %v1026, %v1028
      %v1030 = vrot.slane %v449, 3
      %v1031 = vsel %vm988, %v1028, %v1030
      %v1032 = vrot.slane %v450, 3
      %v1033 = vsel %vm988, %v1030, %v1032
      %v1034 = vrot.slane %v451, 3
      %v1035 = vsel %vm988, %v1032, %v1034
      %v1036 = vrot.slane %v452, 3
      %v1037 = vsel %vm988, %v1034, %v1036
      %v1038 = vrot.slane %v453, 3
      %v1039 = vsel %vm988, %v1036, %v1038
      %v1040 = vrot.slane %v454, 3
      %v1041 = vsel %vm988, %v1038, %v1040
      %v1042 = vrot.slane %v455, 3
      %v1043 = vsel %vm988, %v1040, %v1042
      %v1044 = vrot.slane %v456, 3
      %v1045 = vsel %vm988, %v1042, %v1044
      %v1046 = vrot.slane %v457, 3
      %v1047 = vsel %vm988, %v1044, %v1046
      %v1048 = vrot.slane %v458, 3
      %v1049 = vsel %vm988, %v1046, %v1048
      %v1050 = vrot.slane %v459, 3
      %v1051 = vsel %vm988, %v1048, %v1050
      %v1052 = vrot.slane %v460, 3
      %v1053 = vsel %vm988, %v1050, %v1052
      %v1054 = vrot.slane %v461, 3
      %v1055 = vsel %vm988, %v1052, %v1054
      %v1056 = vrot.slane %v462, 3
      %v1057 = vsel %vm988, %v1054, %v1056
      %v1058 = vrot.slane %v463, 3
      %v1059 = vsel %vm988, %v1056, %v1058
      %v1060 = vrot.slane %v464, 3
      %v1061 = vsel %vm988, %v1058, %v1060
      %1062 = vrot.lane.b32.xlu0 %v991, 16
      %v1063 = vpop.permute.xlu0 %1062
      %1064 = vrot.lane.b32.xlu0 %v993, 16
      %v1065 = vpop.permute.xlu0 %1064
      %1066 = vrot.lane.b32.xlu0 %v995, 16
      %v1067 = vpop.permute.xlu0 %1066
      %1068 = vrot.lane.b32.xlu0 %v997, 16
      %v1069 = vpop.permute.xlu0 %1068
      %1070 = vrot.lane.b32.xlu0 %v999, 16
      %v1071 = vpop.permute.xlu0 %1070
      %1072 = vrot.lane.b32.xlu0 %v1001, 16
      %v1073 = vpop.permute.xlu0 %1072
      %1074 = vrot.lane.b32.xlu0 %v1003, 16
      %v1075 = vpop.permute.xlu0 %1074
      %1076 = vrot.lane.b32.xlu0 %v1005, 16
      %v1077 = vpop.permute.xlu0 %1076
      %1078 = vrot.lane.b32.xlu0 %v1007, 16
      %v1079 = vpop.permute.xlu0 %1078
      %1080 = vrot.lane.b32.xlu0 %v1009, 16
      %v1081 = vpop.permute.xlu0 %1080
      %1082 = vrot.lane.b32.xlu0 %v1011, 16
      %v1083 = vpop.permute.xlu0 %1082
      %1084 = vrot.lane.b32.xlu0 %v1013, 16
      %v1085 = vpop.permute.xlu0 %1084
      %1086 = vrot.lane.b32.xlu0 %v1015, 16
      %v1087 = vpop.permute.xlu0 %1086
      %1088 = vrot.lane.b32.xlu0 %v1017, 16
      %v1089 = vpop.permute.xlu0 %1088
      %1090 = vrot.lane.b32.xlu0 %v1019, 16
      %v1091 = vpop.permute.xlu0 %1090
      %1092 = vrot.lane.b32.xlu0 %v1021, 16
      %v1093 = vpop.permute.xlu0 %1092
      %1094 = vrot.lane.b32.xlu0 %v1023, 16
      %v1095 = vpop.permute.xlu0 %1094
      %1096 = vrot.lane.b32.xlu0 %v1025, 16
      %v1097 = vpop.permute.xlu0 %1096
      %1098 = vrot.lane.b32.xlu0 %v1027, 16
      %v1099 = vpop.permute.xlu0 %1098
      %1100 = vrot.lane.b32.xlu0 %v1029, 16
      %v1101 = vpop.permute.xlu0 %1100
      %1102 = vrot.lane.b32.xlu0 %v1031, 16
      %v1103 = vpop.permute.xlu0 %1102
      %1104 = vrot.lane.b32.xlu0 %v1033, 16
      %v1105 = vpop.permute.xlu0 %1104
      %1106 = vrot.lane.b32.xlu0 %v1035, 16
      %v1107 = vpop.permute.xlu0 %1106
      %1108 = vrot.lane.b32.xlu0 %v1037, 16
      %v1109 = vpop.permute.xlu0 %1108
      %1110 = vrot.lane.b32.xlu0 %v1039, 16
      %v1111 = vpop.permute.xlu0 %1110
      %1112 = vrot.lane.b32.xlu0 %v1041, 16
      %v1113 = vpop.permute.xlu0 %1112
      %1114 = vrot.lane.b32.xlu0 %v1043, 16
      %v1115 = vpop.permute.xlu0 %1114
      %1116 = vrot.lane.b32.xlu0 %v1045, 16
      %v1117 = vpop.permute.xlu0 %1116
      %1118 = vrot.lane.b32.xlu0 %v1047, 16
      %v1119 = vpop.permute.xlu0 %1118
      %1120 = vrot.lane.b32.xlu0 %v1049, 16
      %v1121 = vpop.permute.xlu0 %1120
      %1122 = vrot.lane.b32.xlu0 %v1051, 16
      %v1123 = vpop.permute.xlu0 %1122
      %1124 = vrot.lane.b32.xlu0 %v1053, 16
      %v1125 = vpop.permute.xlu0 %1124
      %1126 = vrot.lane.b32.xlu0 %v1055, 16
      %v1127 = vpop.permute.xlu0 %1126
      %1128 = vrot.lane.b32.xlu0 %v1057, 16
      %v1129 = vpop.permute.xlu0 %1128
      %1130 = vrot.lane.b32.xlu0 %v1059, 16
      %v1131 = vpop.permute.xlu0 %1130
      %1132 = vrot.lane.b32.xlu0 %v1061, 16
      %v1133 = vpop.permute.xlu0 %1132
      %vm1170 = vcmask 1043456
      %v1171 = vrot.slane %v428, 4
      %v1172 = vrot.slane %v429, 4
      %v1173 = vsel %vm1170, %v1171, %v1172
      %v1174 = vrot.slane %v430, 4
      %v1175 = vsel %vm1170, %v1172, %v1174
      %v1176 = vrot.slane %v431, 4
      %v1177 = vsel %vm1170, %v1174, %v1176
      %v1178 = vrot.slane %v432, 4
      %v1179 = vsel %vm1170, %v1176, %v1178
      %v1180 = vrot.slane %v433, 4
      %v1181 = vsel %vm1170, %v1178, %v1180
      %v1182 = vrot.slane %v434, 4
      %v1183 = vsel %vm1170, %v1180, %v1182
      %v1184 = vrot.slane %v435, 4
      %v1185 = vsel %vm1170, %v1182, %v1184
      %v1186 = vrot.slane %v436, 4
      %v1187 = vsel %vm1170, %v1184, %v1186
      %v1188 = vrot.slane %v437, 4
      %v1189 = vsel %vm1170, %v1186, %v1188
      %v1190 = vrot.slane %v438, 4
      %v1191 = vsel %vm1170, %v1188, %v1190
      %v1192 = vrot.slane %v439, 4
      %v1193 = vsel %vm1170, %v1190, %v1192
      %v1194 = vrot.slane %v440, 4
      %v1195 = vsel %vm1170, %v1192, %v1194
      %v1196 = vrot.slane %v441, 4
      %v1197 = vsel %vm1170, %v1194, %v1196
      %v1198 = vrot.slane %v442, 4
      %v1199 = vsel %vm1170, %v1196, %v1198
      %v1200 = vrot.slane %v443, 4
      %v1201 = vsel %vm1170, %v1198, %v1200
      %v1202 = vrot.slane %v444, 4
      %v1203 = vsel %vm1170, %v1200, %v1202
      %v1204 = vrot.slane %v445, 4
      %v1205 = vsel %vm1170, %v1202, %v1204
      %v1206 = vrot.slane %v446, 4
      %v1207 = vsel %vm1170, %v1204, %v1206
      %v1208 = vrot.slane %v447, 4
      %v1209 = vsel %vm1170, %v1206, %v1208
      %v1210 = vrot.slane %v448, 4
      %v1211 = vsel %vm1170, %v1208, %v1210
      %v1212 = vrot.slane %v449, 4
      %v1213 = vsel %vm1170, %v1210, %v1212
      %v1214 = vrot.slane %v450, 4
      %v1215 = vsel %vm1170, %v1212, %v1214
      %v1216 = vrot.slane %v451, 4
      %v1217 = vsel %vm1170, %v1214, %v1216
      %v1218 = vrot.slane %v452, 4
      %v1219 = vsel %vm1170, %v1216, %v1218
      %v1220 = vrot.slane %v453, 4
      %v1221 = vsel %vm1170, %v1218, %v1220
      %v1222 = vrot.slane %v454, 4
      %v1223 = vsel %vm1170, %v1220, %v1222
      %v1224 = vrot.slane %v455, 4
      %v1225 = vsel %vm1170, %v1222, %v1224
      %v1226 = vrot.slane %v456, 4
      %v1227 = vsel %vm1170, %v1224, %v1226
      %v1228 = vrot.slane %v457, 4
      %v1229 = vsel %vm1170, %v1226, %v1228
      %v1230 = vrot.slane %v458, 4
      %v1231 = vsel %vm1170, %v1228, %v1230
      %v1232 = vrot.slane %v459, 4
      %v1233 = vsel %vm1170, %v1230, %v1232
      %v1234 = vrot.slane %v460, 4
      %v1235 = vsel %vm1170, %v1232, %v1234
      %v1236 = vrot.slane %v461, 4
      %v1237 = vsel %vm1170, %v1234, %v1236
      %v1238 = vrot.slane %v462, 4
      %v1239 = vsel %vm1170, %v1236, %v1238
      %v1240 = vrot.slane %v463, 4
      %v1241 = vsel %vm1170, %v1238, %v1240
      %v1242 = vrot.slane %v464, 4
      %v1243 = vsel %vm1170, %v1240, %v1242
      %1244 = vrot.lane.b32.xlu0 %v1173, 20
      %v1245 = vpop.permute.xlu0 %1244
      %1246 = vrot.lane.b32.xlu0 %v1175, 20
      %v1247 = vpop.permute.xlu0 %1246
      %1248 = vrot.lane.b32.xlu0 %v1177, 20
      %v1249 = vpop.permute.xlu0 %1248
      %1250 = vrot.lane.b32.xlu0 %v1179, 20
      %v1251 = vpop.permute.xlu0 %1250
      %1252 = vrot.lane.b32.xlu0 %v1181, 20
      %v1253 = vpop.permute.xlu0 %1252
      %1254 = vrot.lane.b32.xlu0 %v1183, 20
      %v1255 = vpop.permute.xlu0 %1254
      %1256 = vrot.lane.b32.xlu0 %v1185, 20
      %v1257 = vpop.permute.xlu0 %1256
      %1258 = vrot.lane.b32.xlu0 %v1187, 20
      %v1259 = vpop.permute.xlu0 %1258
      %1260 = vrot.lane.b32.xlu0 %v1189, 20
      %v1261 = vpop.permute.xlu0 %1260
      %1262 = vrot.lane.b32.xlu0 %v1191, 20
      %v1263 = vpop.permute.xlu0 %1262
      %1264 = vrot.lane.b32.xlu0 %v1193, 20
      %v1265 = vpop.permute.xlu0 %1264
      %1266 = vrot.lane.b32.xlu0 %v1195, 20
      %v1267 = vpop.permute.xlu0 %1266
      %1268 = vrot.lane.b32.xlu0 %v1197, 20
      %v1269 = vpop.permute.xlu0 %1268
      %1270 = vrot.lane.b32.xlu0 %v1199, 20
      %v1271 = vpop.permute.xlu0 %1270
      %1272 = vrot.lane.b32.xlu0 %v1201, 20
      %v1273 = vpop.permute.xlu0 %1272
      %1274 = vrot.lane.b32.xlu0 %v1203, 20
      %v1275 = vpop.permute.xlu0 %1274
      %1276 = vrot.lane.b32.xlu0 %v1205, 20
      %v1277 = vpop.permute.xlu0 %1276
      %1278 = vrot.lane.b32.xlu0 %v1207, 20
      %v1279 = vpop.permute.xlu0 %1278
      %1280 = vrot.lane.b32.xlu0 %v1209, 20
      %v1281 = vpop.permute.xlu0 %1280
      %1282 = vrot.lane.b32.xlu0 %v1211, 20
      %v1283 = vpop.permute.xlu0 %1282
      %1284 = vrot.lane.b32.xlu0 %v1213, 20
      %v1285 = vpop.permute.xlu0 %1284
      %1286 = vrot.lane.b32.xlu0 %v1215, 20
      %v1287 = vpop.permute.xlu0 %1286
      %1288 = vrot.lane.b32.xlu0 %v1217, 20
      %v1289 = vpop.permute.xlu0 %1288
      %1290 = vrot.lane.b32.xlu0 %v1219, 20
      %v1291 = vpop.permute.xlu0 %1290
      %1292 = vrot.lane.b32.xlu0 %v1221, 20
      %v1293 = vpop.permute.xlu0 %1292
      %1294 = vrot.lane.b32.xlu0 %v1223, 20
      %v1295 = vpop.permute.xlu0 %1294
      %1296 = vrot.lane.b32.xlu0 %v1225, 20
      %v1297 = vpop.permute.xlu0 %1296
      %1298 = vrot.lane.b32.xlu0 %v1227, 20
      %v1299 = vpop.permute.xlu0 %1298
      %1300 = vrot.lane.b32.xlu0 %v1229, 20
      %v1301 = vpop.permute.xlu0 %1300
      %1302 = vrot.lane.b32.xlu0 %v1231, 20
      %v1303 = vpop.permute.xlu0 %1302
      %1304 = vrot.lane.b32.xlu0 %v1233, 20
      %v1305 = vpop.permute.xlu0 %1304
      %1306 = vrot.lane.b32.xlu0 %v1235, 20
      %v1307 = vpop.permute.xlu0 %1306
      %1308 = vrot.lane.b32.xlu0 %v1237, 20
      %v1309 = vpop.permute.xlu0 %1308
      %1310 = vrot.lane.b32.xlu0 %v1239, 20
      %v1311 = vpop.permute.xlu0 %1310
      %1312 = vrot.lane.b32.xlu0 %v1241, 20
      %v1313 = vpop.permute.xlu0 %1312
      %1314 = vrot.lane.b32.xlu0 %v1243, 20
      %v1315 = vpop.permute.xlu0 %1314
      %v1354 = vrot.slane %v465, 4
      %v1355 = vsel %vm1170, %v1242, %v1354
      %v1356 = vrot.slane %v466, 4
      %v1357 = vsel %vm1170, %v1354, %v1356
      %1358 = vrot.lane.b32.xlu0 %v1177, 24
      %v1359 = vpop.permute.xlu0 %1358
      %1360 = vrot.lane.b32.xlu0 %v1179, 24
      %v1361 = vpop.permute.xlu0 %1360
      %1362 = vrot.lane.b32.xlu0 %v1181, 24
      %v1363 = vpop.permute.xlu0 %1362
      %1364 = vrot.lane.b32.xlu0 %v1183, 24
      %v1365 = vpop.permute.xlu0 %1364
      %1366 = vrot.lane.b32.xlu0 %v1185, 24
      %v1367 = vpop.permute.xlu0 %1366
      %1368 = vrot.lane.b32.xlu0 %v1187, 24
      %v1369 = vpop.permute.xlu0 %1368
      %1370 = vrot.lane.b32.xlu0 %v1189, 24
      %v1371 = vpop.permute.xlu0 %1370
      %1372 = vrot.lane.b32.xlu0 %v1191, 24
      %v1373 = vpop.permute.xlu0 %1372
      %1374 = vrot.lane.b32.xlu0 %v1193, 24
      %v1375 = vpop.permute.xlu0 %1374
      %1376 = vrot.lane.b32.xlu0 %v1195, 24
      %v1377 = vpop.permute.xlu0 %1376
      %1378 = vrot.lane.b32.xlu0 %v1197, 24
      %v1379 = vpop.permute.xlu0 %1378
      %1380 = vrot.lane.b32.xlu0 %v1199, 24
      %v1381 = vpop.permute.xlu0 %1380
      %1382 = vrot.lane.b32.xlu0 %v1201, 24
      %v1383 = vpop.permute.xlu0 %1382
      %1384 = vrot.lane.b32.xlu0 %v1203, 24
      %v1385 = vpop.permute.xlu0 %1384
      %1386 = vrot.lane.b32.xlu0 %v1205, 24
      %v1387 = vpop.permute.xlu0 %1386
      %1388 = vrot.lane.b32.xlu0 %v1207, 24
      %v1389 = vpop.permute.xlu0 %1388
      %1390 = vrot.lane.b32.xlu0 %v1209, 24
      %v1391 = vpop.permute.xlu0 %1390
      %1392 = vrot.lane.b32.xlu0 %v1211, 24
      %v1393 = vpop.permute.xlu0 %1392
      %1394 = vrot.lane.b32.xlu0 %v1213, 24
      %v1395 = vpop.permute.xlu0 %1394
      %1396 = vrot.lane.b32.xlu0 %v1215, 24
      %v1397 = vpop.permute.xlu0 %1396
      %1398 = vrot.lane.b32.xlu0 %v1217, 24
      %v1399 = vpop.permute.xlu0 %1398
      %1400 = vrot.lane.b32.xlu0 %v1219, 24
      %v1401 = vpop.permute.xlu0 %1400
      %1402 = vrot.lane.b32.xlu0 %v1221, 24
      %v1403 = vpop.permute.xlu0 %1402
      %1404 = vrot.lane.b32.xlu0 %v1223, 24
      %v1405 = vpop.permute.xlu0 %1404
      %1406 = vrot.lane.b32.xlu0 %v1225, 24
      %v1407 = vpop.permute.xlu0 %1406
      %1408 = vrot.lane.b32.xlu0 %v1227, 24
      %v1409 = vpop.permute.xlu0 %1408
      %1410 = vrot.lane.b32.xlu0 %v1229, 24
      %v1411 = vpop.permute.xlu0 %1410
      %1412 = vrot.lane.b32.xlu0 %v1231, 24
      %v1413 = vpop.permute.xlu0 %1412
      %1414 = vrot.lane.b32.xlu0 %v1233, 24
      %v1415 = vpop.permute.xlu0 %1414
      %1416 = vrot.lane.b32.xlu0 %v1235, 24
      %v1417 = vpop.permute.xlu0 %1416
      %1418 = vrot.lane.b32.xlu0 %v1237, 24
      %v1419 = vpop.permute.xlu0 %1418
      %1420 = vrot.lane.b32.xlu0 %v1239, 24
      %v1421 = vpop.permute.xlu0 %1420
      %1422 = vrot.lane.b32.xlu0 %v1241, 24
      %v1423 = vpop.permute.xlu0 %1422
      %1424 = vrot.lane.b32.xlu0 %v1243, 24
      %v1425 = vpop.permute.xlu0 %1424
      %1426 = vrot.lane.b32.xlu0 %v1355, 24
      %v1427 = vpop.permute.xlu0 %1426
      %1428 = vrot.lane.b32.xlu0 %v1357, 24
      %v1429 = vpop.permute.xlu0 %1428
      %vm1466 = vcmask 1042432
      %v1467 = vrot.slane %v430, 5
      %v1468 = vrot.slane %v431, 5
      %v1469 = vsel %vm1466, %v1467, %v1468
      %v1470 = vrot.slane %v432, 5
      %v1471 = vsel %vm1466, %v1468, %v1470
      %v1472 = vrot.slane %v433, 5
      %v1473 = vsel %vm1466, %v1470, %v1472
      %v1474 = vrot.slane %v434, 5
      %v1475 = vsel %vm1466, %v1472, %v1474
      %v1476 = vrot.slane %v435, 5
      %v1477 = vsel %vm1466, %v1474, %v1476
      %v1478 = vrot.slane %v436, 5
      %v1479 = vsel %vm1466, %v1476, %v1478
      %v1480 = vrot.slane %v437, 5
      %v1481 = vsel %vm1466, %v1478, %v1480
      %v1482 = vrot.slane %v438, 5
      %v1483 = vsel %vm1466, %v1480, %v1482
      %v1484 = vrot.slane %v439, 5
      %v1485 = vsel %vm1466, %v1482, %v1484
      %v1486 = vrot.slane %v440, 5
      %v1487 = vsel %vm1466, %v1484, %v1486
      %v1488 = vrot.slane %v441, 5
      %v1489 = vsel %vm1466, %v1486, %v1488
      %v1490 = vrot.slane %v442, 5
      %v1491 = vsel %vm1466, %v1488, %v1490
      %v1492 = vrot.slane %v443, 5
      %v1493 = vsel %vm1466, %v1490, %v1492
      %v1494 = vrot.slane %v444, 5
      %v1495 = vsel %vm1466, %v1492, %v1494
      %v1496 = vrot.slane %v445, 5
      %v1497 = vsel %vm1466, %v1494, %v1496
      %v1498 = vrot.slane %v446, 5
      %v1499 = vsel %vm1466, %v1496, %v1498
      %v1500 = vrot.slane %v447, 5
      %v1501 = vsel %vm1466, %v1498, %v1500
      %v1502 = vrot.slane %v448, 5
      %v1503 = vsel %vm1466, %v1500, %v1502
      %v1504 = vrot.slane %v449, 5
      %v1505 = vsel %vm1466, %v1502, %v1504
      %v1506 = vrot.slane %v450, 5
      %v1507 = vsel %vm1466, %v1504, %v1506
      %v1508 = vrot.slane %v451, 5
      %v1509 = vsel %vm1466, %v1506, %v1508
      %v1510 = vrot.slane %v452, 5
      %v1511 = vsel %vm1466, %v1508, %v1510
      %v1512 = vrot.slane %v453, 5
      %v1513 = vsel %vm1466, %v1510, %v1512
      %v1514 = vrot.slane %v454, 5
      %v1515 = vsel %vm1466, %v1512, %v1514
      %v1516 = vrot.slane %v455, 5
      %v1517 = vsel %vm1466, %v1514, %v1516
      %v1518 = vrot.slane %v456, 5
      %v1519 = vsel %vm1466, %v1516, %v1518
      %v1520 = vrot.slane %v457, 5
      %v1521 = vsel %vm1466, %v1518, %v1520
      %v1522 = vrot.slane %v458, 5
      %v1523 = vsel %vm1466, %v1520, %v1522
      %v1524 = vrot.slane %v459, 5
      %v1525 = vsel %vm1466, %v1522, %v1524
      %v1526 = vrot.slane %v460, 5
      %v1527 = vsel %vm1466, %v1524, %v1526
      %v1528 = vrot.slane %v461, 5
      %v1529 = vsel %vm1466, %v1526, %v1528
      %v1530 = vrot.slane %v462, 5
      %v1531 = vsel %vm1466, %v1528, %v1530
      %v1532 = vrot.slane %v463, 5
      %v1533 = vsel %vm1466, %v1530, %v1532
      %v1534 = vrot.slane %v464, 5
      %v1535 = vsel %vm1466, %v1532, %v1534
      %v1536 = vrot.slane %v465, 5
      %v1537 = vsel %vm1466, %v1534, %v1536
      %v1538 = vrot.slane %v466, 5
      %v1539 = vsel %vm1466, %v1536, %v1538
      %1540 = vrot.lane.b32.xlu0 %v1469, 28
      %v1541 = vpop.permute.xlu0 %1540
      %1542 = vrot.lane.b32.xlu0 %v1471, 28
      %v1543 = vpop.permute.xlu0 %1542
      %1544 = vrot.lane.b32.xlu0 %v1473, 28
      %v1545 = vpop.permute.xlu0 %1544
      %1546 = vrot.lane.b32.xlu0 %v1475, 28
      %v1547 = vpop.permute.xlu0 %1546
      %1548 = vrot.lane.b32.xlu0 %v1477, 28
      %v1549 = vpop.permute.xlu0 %1548
      %1550 = vrot.lane.b32.xlu0 %v1479, 28
      %v1551 = vpop.permute.xlu0 %1550
      %1552 = vrot.lane.b32.xlu0 %v1481, 28
      %v1553 = vpop.permute.xlu0 %1552
      %1554 = vrot.lane.b32.xlu0 %v1483, 28
      %v1555 = vpop.permute.xlu0 %1554
      %1556 = vrot.lane.b32.xlu0 %v1485, 28
      %v1557 = vpop.permute.xlu0 %1556
      %1558 = vrot.lane.b32.xlu0 %v1487, 28
      %v1559 = vpop.permute.xlu0 %1558
      %1560 = vrot.lane.b32.xlu0 %v1489, 28
      %v1561 = vpop.permute.xlu0 %1560
      %1562 = vrot.lane.b32.xlu0 %v1491, 28
      %v1563 = vpop.permute.xlu0 %1562
      %1564 = vrot.lane.b32.xlu0 %v1493, 28
      %v1565 = vpop.permute.xlu0 %1564
      %1566 = vrot.lane.b32.xlu0 %v1495, 28
      %v1567 = vpop.permute.xlu0 %1566
      %1568 = vrot.lane.b32.xlu0 %v1497, 28
      %v1569 = vpop.permute.xlu0 %1568
      %1570 = vrot.lane.b32.xlu0 %v1499, 28
      %v1571 = vpop.permute.xlu0 %1570
      %1572 = vrot.lane.b32.xlu0 %v1501, 28
      %v1573 = vpop.permute.xlu0 %1572
      %1574 = vrot.lane.b32.xlu0 %v1503, 28
      %v1575 = vpop.permute.xlu0 %1574
      %1576 = vrot.lane.b32.xlu0 %v1505, 28
      %v1577 = vpop.permute.xlu0 %1576
      %1578 = vrot.lane.b32.xlu0 %v1507, 28
      %v1579 = vpop.permute.xlu0 %1578
      %1580 = vrot.lane.b32.xlu0 %v1509, 28
      %v1581 = vpop.permute.xlu0 %1580
      %1582 = vrot.lane.b32.xlu0 %v1511, 28
      %v1583 = vpop.permute.xlu0 %1582
      %1584 = vrot.lane.b32.xlu0 %v1513, 28
      %v1585 = vpop.permute.xlu0 %1584
      %1586 = vrot.lane.b32.xlu0 %v1515, 28
      %v1587 = vpop.permute.xlu0 %1586
      %1588 = vrot.lane.b32.xlu0 %v1517, 28
      %v1589 = vpop.permute.xlu0 %1588
      %1590 = vrot.lane.b32.xlu0 %v1519, 28
      %v1591 = vpop.permute.xlu0 %1590
      %1592 = vrot.lane.b32.xlu0 %v1521, 28
      %v1593 = vpop.permute.xlu0 %1592
      %1594 = vrot.lane.b32.xlu0 %v1523, 28
      %v1595 = vpop.permute.xlu0 %1594
      %1596 = vrot.lane.b32.xlu0 %v1525, 28
      %v1597 = vpop.permute.xlu0 %1596
      %1598 = vrot.lane.b32.xlu0 %v1527, 28
      %v1599 = vpop.permute.xlu0 %1598
      %1600 = vrot.lane.b32.xlu0 %v1529, 28
      %v1601 = vpop.permute.xlu0 %1600
      %1602 = vrot.lane.b32.xlu0 %v1531, 28
      %v1603 = vpop.permute.xlu0 %1602
      %1604 = vrot.lane.b32.xlu0 %v1533, 28
      %v1605 = vpop.permute.xlu0 %1604
      %1606 = vrot.lane.b32.xlu0 %v1535, 28
      %v1607 = vpop.permute.xlu0 %1606
      %1608 = vrot.lane.b32.xlu0 %v1537, 28
      %v1609 = vpop.permute.xlu0 %1608
      %1610 = vrot.lane.b32.xlu0 %v1539, 28
      %v1611 = vpop.permute.xlu0 %1610
      %vm1648 = vcmask 1041408
      %v1649 = vrot.slane %v430, 6
      %v1650 = vrot.slane %v431, 6
      %v1651 = vsel %vm1648, %v1649, %v1650
      %v1652 = vrot.slane %v432, 6
      %v1653 = vsel %vm1648, %v1650, %v1652
      %v1654 = vrot.slane %v433, 6
      %v1655 = vsel %vm1648, %v1652, %v1654
      %v1656 = vrot.slane %v434, 6
      %v1657 = vsel %vm1648, %v1654, %v1656
      %v1658 = vrot.slane %v435, 6
      %v1659 = vsel %vm1648, %v1656, %v1658
      %v1660 = vrot.slane %v436, 6
      %v1661 = vsel %vm1648, %v1658, %v1660
      %v1662 = vrot.slane %v437, 6
      %v1663 = vsel %vm1648, %v1660, %v1662
      %v1664 = vrot.slane %v438, 6
      %v1665 = vsel %vm1648, %v1662, %v1664
      %v1666 = vrot.slane %v439, 6
      %v1667 = vsel %vm1648, %v1664, %v1666
      %v1668 = vrot.slane %v440, 6
      %v1669 = vsel %vm1648, %v1666, %v1668
      %v1670 = vrot.slane %v441, 6
      %v1671 = vsel %vm1648, %v1668, %v1670
      %v1672 = vrot.slane %v442, 6
      %v1673 = vsel %vm1648, %v1670, %v1672
      %v1674 = vrot.slane %v443, 6
      %v1675 = vsel %vm1648, %v1672, %v1674
      %v1676 = vrot.slane %v444, 6
      %v1677 = vsel %vm1648, %v1674, %v1676
      %v1678 = vrot.slane %v445, 6
      %v1679 = vsel %vm1648, %v1676, %v1678
      %v1680 = vrot.slane %v446, 6
      %v1681 = vsel %vm1648, %v1678, %v1680
      %v1682 = vrot.slane %v447, 6
      %v1683 = vsel %vm1648, %v1680, %v1682
      %v1684 = vrot.slane %v448, 6
      %v1685 = vsel %vm1648, %v1682, %v1684
      %v1686 = vrot.slane %v449, 6
      %v1687 = vsel %vm1648, %v1684, %v1686
      %v1688 = vrot.slane %v450, 6
      %v1689 = vsel %vm1648, %v1686, %v1688
      %v1690 = vrot.slane %v451, 6
      %v1691 = vsel %vm1648, %v1688, %v1690
      %v1692 = vrot.slane %v452, 6
      %v1693 = vsel %vm1648, %v1690, %v1692
      %v1694 = vrot.slane %v453, 6
      %v1695 = vsel %vm1648, %v1692, %v1694
      %v1696 = vrot.slane %v454, 6
      %v1697 = vsel %vm1648, %v1694, %v1696
      %v1698 = vrot.slane %v455, 6
      %v1699 = vsel %vm1648, %v1696, %v1698
      %v1700 = vrot.slane %v456, 6
      %v1701 = vsel %vm1648, %v1698, %v1700
      %v1702 = vrot.slane %v457, 6
      %v1703 = vsel %vm1648, %v1700, %v1702
      %v1704 = vrot.slane %v458, 6
      %v1705 = vsel %vm1648, %v1702, %v1704
      %v1706 = vrot.slane %v459, 6
      %v1707 = vsel %vm1648, %v1704, %v1706
      %v1708 = vrot.slane %v460, 6
      %v1709 = vsel %vm1648, %v1706, %v1708
      %v1710 = vrot.slane %v461, 6
      %v1711 = vsel %vm1648, %v1708, %v1710
      %v1712 = vrot.slane %v462, 6
      %v1713 = vsel %vm1648, %v1710, %v1712
      %v1714 = vrot.slane %v463, 6
      %v1715 = vsel %vm1648, %v1712, %v1714
      %v1716 = vrot.slane %v464, 6
      %v1717 = vsel %vm1648, %v1714, %v1716
      %v1718 = vrot.slane %v465, 6
      %v1719 = vsel %vm1648, %v1716, %v1718
      %v1720 = vrot.slane %v466, 6
      %v1721 = vsel %vm1648, %v1718, %v1720
      %1722 = vrot.lane.b32.xlu0 %v1651, 32
      %v1723 = vpop.permute.xlu0 %1722
      %1724 = vrot.lane.b32.xlu0 %v1653, 32
      %v1725 = vpop.permute.xlu0 %1724
      %1726 = vrot.lane.b32.xlu0 %v1655, 32
      %v1727 = vpop.permute.xlu0 %1726
      %1728 = vrot.lane.b32.xlu0 %v1657, 32
      %v1729 = vpop.permute.xlu0 %1728
      %1730 = vrot.lane.b32.xlu0 %v1659, 32
      %v1731 = vpop.permute.xlu0 %1730
      %1732 = vrot.lane.b32.xlu0 %v1661, 32
      %v1733 = vpop.permute.xlu0 %1732
      %1734 = vrot.lane.b32.xlu0 %v1663, 32
      %v1735 = vpop.permute.xlu0 %1734
      %1736 = vrot.lane.b32.xlu0 %v1665, 32
      %v1737 = vpop.permute.xlu0 %1736
      %1738 = vrot.lane.b32.xlu0 %v1667, 32
      %v1739 = vpop.permute.xlu0 %1738
      %1740 = vrot.lane.b32.xlu0 %v1669, 32
      %v1741 = vpop.permute.xlu0 %1740
      %1742 = vrot.lane.b32.xlu0 %v1671, 32
      %v1743 = vpop.permute.xlu0 %1742
      %1744 = vrot.lane.b32.xlu0 %v1673, 32
      %v1745 = vpop.permute.xlu0 %1744
      %1746 = vrot.lane.b32.xlu0 %v1675, 32
      %v1747 = vpop.permute.xlu0 %1746
      %1748 = vrot.lane.b32.xlu0 %v1677, 32
      %v1749 = vpop.permute.xlu0 %1748
      %1750 = vrot.lane.b32.xlu0 %v1679, 32
      %v1751 = vpop.permute.xlu0 %1750
      %1752 = vrot.lane.b32.xlu0 %v1681, 32
      %v1753 = vpop.permute.xlu0 %1752
      %1754 = vrot.lane.b32.xlu0 %v1683, 32
      %v1755 = vpop.permute.xlu0 %1754
      %1756 = vrot.lane.b32.xlu0 %v1685, 32
      %v1757 = vpop.permute.xlu0 %1756
      %1758 = vrot.lane.b32.xlu0 %v1687, 32
      %v1759 = vpop.permute.xlu0 %1758
      %1760 = vrot.lane.b32.xlu0 %v1689, 32
      %v1761 = vpop.permute.xlu0 %1760
      %1762 = vrot.lane.b32.xlu0 %v1691, 32
      %v1763 = vpop.permute.xlu0 %1762
      %1764 = vrot.lane.b32.xlu0 %v1693, 32
      %v1765 = vpop.permute.xlu0 %1764
      %1766 = vrot.lane.b32.xlu0 %v1695, 32
      %v1767 = vpop.permute.xlu0 %1766
      %1768 = vrot.lane.b32.xlu0 %v1697, 32
      %v1769 = vpop.permute.xlu0 %1768
      %1770 = vrot.lane.b32.xlu0 %v1699, 32
      %v1771 = vpop.permute.xlu0 %1770
      %1772 = vrot.lane.b32.xlu0 %v1701, 32
      %v1773 = vpop.permute.xlu0 %1772
      %1774 = vrot.lane.b32.xlu0 %v1703, 32
      %v1775 = vpop.permute.xlu0 %1774
      %1776 = vrot.lane.b32.xlu0 %v1705, 32
      %v1777 = vpop.permute.xlu0 %1776
      %1778 = vrot.lane.b32.xlu0 %v1707, 32
      %v1779 = vpop.permute.xlu0 %1778
      %1780 = vrot.lane.b32.xlu0 %v1709, 32
      %v1781 = vpop.permute.xlu0 %1780
      %1782 = vrot.lane.b32.xlu0 %v1711, 32
      %v1783 = vpop.permute.xlu0 %1782
      %1784 = vrot.lane.b32.xlu0 %v1713, 32
      %v1785 = vpop.permute.xlu0 %1784
      %1786 = vrot.lane.b32.xlu0 %v1715, 32
      %v1787 = vpop.permute.xlu0 %1786
      %1788 = vrot.lane.b32.xlu0 %v1717, 32
      %v1789 = vpop.permute.xlu0 %1788
      %1790 = vrot.lane.b32.xlu0 %v1719, 32
      %v1791 = vpop.permute.xlu0 %1790
      %1792 = vrot.lane.b32.xlu0 %v1721, 32
      %v1793 = vpop.permute.xlu0 %1792
      %vm1830 = vcmask 31744
      %v1831 = vsel %vm1830, %v426, %v585
      %v1832 = vsel %vm1830, %v427, %v587
      %v1833 = vsel %vm1830, %v428, %v589
      %v1834 = vsel %vm1830, %v429, %v591
      %v1835 = vsel %vm1830, %v430, %v593
      %v1836 = vsel %vm1830, %v431, %v595
      %v1837 = vsel %vm1830, %v432, %v597
      %v1838 = vsel %vm1830, %v433, %v599
      %v1839 = vsel %vm1830, %v434, %v601
      %v1840 = vsel %vm1830, %v435, %v603
      %v1841 = vsel %vm1830, %v436, %v605
      %v1842 = vsel %vm1830, %v437, %v607
      %v1843 = vsel %vm1830, %v438, %v609
      %v1844 = vsel %vm1830, %v439, %v611
      %v1845 = vsel %vm1830, %v440, %v613
      %v1846 = vsel %vm1830, %v441, %v615
      %v1847 = vsel %vm1830, %v442, %v617
      %v1848 = vsel %vm1830, %v443, %v619
      %v1849 = vsel %vm1830, %v444, %v621
      %v1850 = vsel %vm1830, %v445, %v623
      %v1851 = vsel %vm1830, %v446, %v625
      %v1852 = vsel %vm1830, %v447, %v627
      %v1853 = vsel %vm1830, %v448, %v629
      %v1854 = vsel %vm1830, %v449, %v631
      %v1855 = vsel %vm1830, %v450, %v633
      %v1856 = vsel %vm1830, %v451, %v635
      %v1857 = vsel %vm1830, %v452, %v637
      %v1858 = vsel %vm1830, %v453, %v639
      %v1859 = vsel %vm1830, %v454, %v641
      %v1860 = vsel %vm1830, %v455, %v643
      %v1861 = vsel %vm1830, %v456, %v645
      %v1862 = vsel %vm1830, %v457, %v647
      %v1863 = vsel %vm1830, %v458, %v649
      %v1864 = vsel %vm1830, %v459, %v651
      %v1865 = vsel %vm1830, %v460, %v653
      %v1866 = vsel %vm1830, %v461, %v655
      %vm1867 = vcmask 64512
      %v1868 = vsel %vm1867, %v1831, %v767
      %v1869 = vsel %vm1867, %v1832, %v769
      %v1870 = vsel %vm1867, %v1833, %v771
      %v1871 = vsel %vm1867, %v1834, %v773
      %v1872 = vsel %vm1867, %v1835, %v775
      %v1873 = vsel %vm1867, %v1836, %v777
      %v1874 = vsel %vm1867, %v1837, %v779
      %v1875 = vsel %vm1867, %v1838, %v781
      %v1876 = vsel %vm1867, %v1839, %v783
      %v1877 = vsel %vm1867, %v1840, %v785
      %v1878 = vsel %vm1867, %v1841, %v787
      %v1879 = vsel %vm1867, %v1842, %v789
      %v1880 = vsel %vm1867, %v1843, %v791
      %v1881 = vsel %vm1867, %v1844, %v793
      %v1882 = vsel %vm1867, %v1845, %v795
      %v1883 = vsel %vm1867, %v1846, %v797
      %v1884 = vsel %vm1867, %v1847, %v799
      %v1885 = vsel %vm1867, %v1848, %v801
      %v1886 = vsel %vm1867, %v1849, %v803
      %v1887 = vsel %vm1867, %v1850, %v805
      %v1888 = vsel %vm1867, %v1851, %v807
      %v1889 = vsel %vm1867, %v1852, %v809
      %v1890 = vsel %vm1867, %v1853, %v811
      %v1891 = vsel %vm1867, %v1854, %v813
      %v1892 = vsel %vm1867, %v1855, %v815
      %v1893 = vsel %vm1867, %v1856, %v817
      %v1894 = vsel %vm1867, %v1857, %v819
      %v1895 = vsel %vm1867, %v1858, %v821
      %v1896 = vsel %vm1867, %v1859, %v823
      %v1897 = vsel %vm1867, %v1860, %v825
      %v1898 = vsel %vm1867, %v1861, %v827
      %v1899 = vsel %vm1867, %v1862, %v829
      %v1900 = vsel %vm1867, %v1863, %v831
      %v1901 = vsel %vm1867, %v1864, %v833
      %v1902 = vsel %vm1867, %v1865, %v835
      %v1903 = vsel %vm1867, %v1866, %v837
      %vm1904 = vcmask 97280
      %v1905 = vsel %vm1904, %v1868, %v881
      %v1906 = vsel %vm1904, %v1869, %v883
      %v1907 = vsel %vm1904, %v1870, %v885
      %v1908 = vsel %vm1904, %v1871, %v887
      %v1909 = vsel %vm1904, %v1872, %v889
      %v1910 = vsel %vm1904, %v1873, %v891
      %v1911 = vsel %vm1904, %v1874, %v893
      %v1912 = vsel %vm1904, %v1875, %v895
      %v1913 = vsel %vm1904, %v1876, %v897
      %v1914 = vsel %vm1904, %v1877, %v899
      %v1915 = vsel %vm1904, %v1878, %v901
      %v1916 = vsel %vm1904, %v1879, %v903
      %v1917 = vsel %vm1904, %v1880, %v905
      %v1918 = vsel %vm1904, %v1881, %v907
      %v1919 = vsel %vm1904, %v1882, %v909
      %v1920 = vsel %vm1904, %v1883, %v911
      %v1921 = vsel %vm1904, %v1884, %v913
      %v1922 = vsel %vm1904, %v1885, %v915
      %v1923 = vsel %vm1904, %v1886, %v917
      %v1924 = vsel %vm1904, %v1887, %v919
      %v1925 = vsel %vm1904, %v1888, %v921
      %v1926 = vsel %vm1904, %v1889, %v923
      %v1927 = vsel %vm1904, %v1890, %v925
      %v1928 = vsel %vm1904, %v1891, %v927
      %v1929 = vsel %vm1904, %v1892, %v929
      %v1930 = vsel %vm1904, %v1893, %v931
      %v1931 = vsel %vm1904, %v1894, %v933
      %v1932 = vsel %vm1904, %v1895, %v935
      %v1933 = vsel %vm1904, %v1896, %v937
      %v1934 = vsel %vm1904, %v1897, %v939
      %v1935 = vsel %vm1904, %v1898, %v941
      %v1936 = vsel %vm1904, %v1899, %v943
      %v1937 = vsel %vm1904, %v1900, %v945
      %v1938 = vsel %vm1904, %v1901, %v947
      %v1939 = vsel %vm1904, %v1902, %v949
      %v1940 = vsel %vm1904, %v1903, %v951
      %vm1941 = vcmask 130048
      %v1942 = vsel %vm1941, %v1905, %v1063
      %v1943 = vsel %vm1941, %v1906, %v1065
      %v1944 = vsel %vm1941, %v1907, %v1067
      %v1945 = vsel %vm1941, %v1908, %v1069
      %v1946 = vsel %vm1941, %v1909, %v1071
      %v1947 = vsel %vm1941, %v1910, %v1073
      %v1948 = vsel %vm1941, %v1911, %v1075
      %v1949 = vsel %vm1941, %v1912, %v1077
      %v1950 = vsel %vm1941, %v1913, %v1079
      %v1951 = vsel %vm1941, %v1914, %v1081
      %v1952 = vsel %vm1941, %v1915, %v1083
      %v1953 = vsel %vm1941, %v1916, %v1085
      %v1954 = vsel %vm1941, %v1917, %v1087
      %v1955 = vsel %vm1941, %v1918, %v1089
      %v1956 = vsel %vm1941, %v1919, %v1091
      %v1957 = vsel %vm1941, %v1920, %v1093
      %v1958 = vsel %vm1941, %v1921, %v1095
      %v1959 = vsel %vm1941, %v1922, %v1097
      %v1960 = vsel %vm1941, %v1923, %v1099
      %v1961 = vsel %vm1941, %v1924, %v1101
      %v1962 = vsel %vm1941, %v1925, %v1103
      %v1963 = vsel %vm1941, %v1926, %v1105
      %v1964 = vsel %vm1941, %v1927, %v1107
      %v1965 = vsel %vm1941, %v1928, %v1109
      %v1966 = vsel %vm1941, %v1929, %v1111
      %v1967 = vsel %vm1941, %v1930, %v1113
      %v1968 = vsel %vm1941, %v1931, %v1115
      %v1969 = vsel %vm1941, %v1932, %v1117
      %v1970 = vsel %vm1941, %v1933, %v1119
      %v1971 = vsel %vm1941, %v1934, %v1121
      %v1972 = vsel %vm1941, %v1935, %v1123
      %v1973 = vsel %vm1941, %v1936, %v1125
      %v1974 = vsel %vm1941, %v1937, %v1127
      %v1975 = vsel %vm1941, %v1938, %v1129
      %v1976 = vsel %vm1941, %v1939, %v1131
      %v1977 = vsel %vm1941, %v1940, %v1133
      %vm1978 = vcmask 162816
      %v1979 = vsel %vm1978, %v1942, %v1245
      %v1980 = vsel %vm1978, %v1943, %v1247
      %v1981 = vsel %vm1978, %v1944, %v1249
      %v1982 = vsel %vm1978, %v1945, %v1251
      %v1983 = vsel %vm1978, %v1946, %v1253
      %v1984 = vsel %vm1978, %v1947, %v1255
      %v1985 = vsel %vm1978, %v1948, %v1257
      %v1986 = vsel %vm1978, %v1949, %v1259
      %v1987 = vsel %vm1978, %v1950, %v1261
      %v1988 = vsel %vm1978, %v1951, %v1263
      %v1989 = vsel %vm1978, %v1952, %v1265
      %v1990 = vsel %vm1978, %v1953, %v1267
      %v1991 = vsel %vm1978, %v1954, %v1269
      %v1992 = vsel %vm1978, %v1955, %v1271
      %v1993 = vsel %vm1978, %v1956, %v1273
      %v1994 = vsel %vm1978, %v1957, %v1275
      %v1995 = vsel %vm1978, %v1958, %v1277
      %v1996 = vsel %vm1978, %v1959, %v1279
      %v1997 = vsel %vm1978, %v1960, %v1281
      %v1998 = vsel %vm1978, %v1961, %v1283
      %v1999 = vsel %vm1978, %v1962, %v1285
      %v2000 = vsel %vm1978, %v1963, %v1287
      %v2001 = vsel %vm1978, %v1964, %v1289
      %v2002 = vsel %vm1978, %v1965, %v1291
      %v2003 = vsel %vm1978, %v1966, %v1293
      %v2004 = vsel %vm1978, %v1967, %v1295
      %v2005 = vsel %vm1978, %v1968, %v1297
      %v2006 = vsel %vm1978, %v1969, %v1299
      %v2007 = vsel %vm1978, %v1970, %v1301
      %v2008 = vsel %vm1978, %v1971, %v1303
      %v2009 = vsel %vm1978, %v1972, %v1305
      %v2010 = vsel %vm1978, %v1973, %v1307
      %v2011 = vsel %vm1978, %v1974, %v1309
      %v2012 = vsel %vm1978, %v1975, %v1311
      %v2013 = vsel %vm1978, %v1976, %v1313
      %v2014 = vsel %vm1978, %v1977, %v1315
      %vm2015 = vcmask 195584
      %v2016 = vsel %vm2015, %v1979, %v1359
      %v2017 = vsel %vm2015, %v1980, %v1361
      %v2018 = vsel %vm2015, %v1981, %v1363
      %v2019 = vsel %vm2015, %v1982, %v1365
      %v2020 = vsel %vm2015, %v1983, %v1367
      %v2021 = vsel %vm2015, %v1984, %v1369
      %v2022 = vsel %vm2015, %v1985, %v1371
      %v2023 = vsel %vm2015, %v1986, %v1373
      %v2024 = vsel %vm2015, %v1987, %v1375
      %v2025 = vsel %vm2015, %v1988, %v1377
      %v2026 = vsel %vm2015, %v1989, %v1379
      %v2027 = vsel %vm2015, %v1990, %v1381
      %v2028 = vsel %vm2015, %v1991, %v1383
      %v2029 = vsel %vm2015, %v1992, %v1385
      %v2030 = vsel %vm2015, %v1993, %v1387
      %v2031 = vsel %vm2015, %v1994, %v1389
      %v2032 = vsel %vm2015, %v1995, %v1391
      %v2033 = vsel %vm2015, %v1996, %v1393
      %v2034 = vsel %vm2015, %v1997, %v1395
      %v2035 = vsel %vm2015, %v1998, %v1397
      %v2036 = vsel %vm2015, %v1999, %v1399
      %v2037 = vsel %vm2015, %v2000, %v1401
      %v2038 = vsel %vm2015, %v2001, %v1403
      %v2039 = vsel %vm2015, %v2002, %v1405
      %v2040 = vsel %vm2015, %v2003, %v1407
      %v2041 = vsel %vm2015, %v2004, %v1409
      %v2042 = vsel %vm2015, %v2005, %v1411
      %v2043 = vsel %vm2015, %v2006, %v1413
      %v2044 = vsel %vm2015, %v2007, %v1415
      %v2045 = vsel %vm2015, %v2008, %v1417
      %v2046 = vsel %vm2015, %v2009, %v1419
      %v2047 = vsel %vm2015, %v2010, %v1421
      %v2048 = vsel %vm2015, %v2011, %v1423
      %v2049 = vsel %vm2015, %v2012, %v1425
      %v2050 = vsel %vm2015, %v2013, %v1427
      %v2051 = vsel %vm2015, %v2014, %v1429
      %vm2052 = vcmask 228352
      %v2053 = vsel %vm2052, %v2016, %v1541
      %v2054 = vsel %vm2052, %v2017, %v1543
      %v2055 = vsel %vm2052, %v2018, %v1545
      %v2056 = vsel %vm2052, %v2019, %v1547
      %v2057 = vsel %vm2052, %v2020, %v1549
      %v2058 = vsel %vm2052, %v2021, %v1551
      %v2059 = vsel %vm2052, %v2022, %v1553
      %v2060 = vsel %vm2052, %v2023, %v1555
      %v2061 = vsel %vm2052, %v2024, %v1557
      %v2062 = vsel %vm2052, %v2025, %v1559
      %v2063 = vsel %vm2052, %v2026, %v1561
      %v2064 = vsel %vm2052, %v2027, %v1563
      %v2065 = vsel %vm2052, %v2028, %v1565
      %v2066 = vsel %vm2052, %v2029, %v1567
      %v2067 = vsel %vm2052, %v2030, %v1569
      %v2068 = vsel %vm2052, %v2031, %v1571
      %v2069 = vsel %vm2052, %v2032, %v1573
      %v2070 = vsel %vm2052, %v2033, %v1575
      %v2071 = vsel %vm2052, %v2034, %v1577
      %v2072 = vsel %vm2052, %v2035, %v1579
      %v2073 = vsel %vm2052, %v2036, %v1581
      %v2074 = vsel %vm2052, %v2037, %v1583
      %v2075 = vsel %vm2052, %v2038, %v1585
      %v2076 = vsel %vm2052, %v2039, %v1587
      %v2077 = vsel %vm2052, %v2040, %v1589
      %v2078 = vsel %vm2052, %v2041, %v1591
      %v2079 = vsel %vm2052, %v2042, %v1593
      %v2080 = vsel %vm2052, %v2043, %v1595
      %v2081 = vsel %vm2052, %v2044, %v1597
      %v2082 = vsel %vm2052, %v2045, %v1599
      %v2083 = vsel %vm2052, %v2046, %v1601
      %v2084 = vsel %vm2052, %v2047, %v1603
      %v2085 = vsel %vm2052, %v2048, %v1605
      %v2086 = vsel %vm2052, %v2049, %v1607
      %v2087 = vsel %vm2052, %v2050, %v1609
      %v2088 = vsel %vm2052, %v2051, %v1611
      %vm2089 = vcmask 261120
      %v2090 = vsel %vm2089, %v2053, %v1723
      %v2091 = vsel %vm2089, %v2054, %v1725
      %v2092 = vsel %vm2089, %v2055, %v1727
      %v2093 = vsel %vm2089, %v2056, %v1729
      %v2094 = vsel %vm2089, %v2057, %v1731
      %v2095 = vsel %vm2089, %v2058, %v1733
      %v2096 = vsel %vm2089, %v2059, %v1735
      %v2097 = vsel %vm2089, %v2060, %v1737
      %v2098 = vsel %vm2089, %v2061, %v1739
      %v2099 = vsel %vm2089, %v2062, %v1741
      %v2100 = vsel %vm2089, %v2063, %v1743
      %v2101 = vsel %vm2089, %v2064, %v1745
      %v2102 = vsel %vm2089, %v2065, %v1747
      %v2103 = vsel %vm2089, %v2066, %v1749
      %v2104 = vsel %vm2089, %v2067, %v1751
      %v2105 = vsel %vm2089, %v2068, %v1753
      %v2106 = vsel %vm2089, %v2069, %v1755
      %v2107 = vsel %vm2089, %v2070, %v1757
      %v2108 = vsel %vm2089, %v2071, %v1759
      %v2109 = vsel %vm2089, %v2072, %v1761
      %v2110 = vsel %vm2089, %v2073, %v1763
      %v2111 = vsel %vm2089, %v2074, %v1765
      %v2112 = vsel %vm2089, %v2075, %v1767
      %v2113 = vsel %vm2089, %v2076, %v1769
      %v2114 = vsel %vm2089, %v2077, %v1771
      %v2115 = vsel %vm2089, %v2078, %v1773
      %v2116 = vsel %vm2089, %v2079, %v1775
      %v2117 = vsel %vm2089, %v2080, %v1777
      %v2118 = vsel %vm2089, %v2081, %v1779
      %v2119 = vsel %vm2089, %v2082, %v1781
      %v2120 = vsel %vm2089, %v2083, %v1783
      %v2121 = vsel %vm2089, %v2084, %v1785
      %v2122 = vsel %vm2089, %v2085, %v1787
      %v2123 = vsel %vm2089, %v2086, %v1789
      %v2124 = vsel %vm2089, %v2087, %v1791
      %v2125 = vsel %vm2089, %v2088, %v1793
      %v2126 = vpack.c.bf16 %v2091, %v2090
      %v2127 = vpack.c.bf16 %v2093, %v2092
      %v2128 = vpack.c.bf16 %v2095, %v2094
      %v2129 = vpack.c.bf16 %v2097, %v2096
      %v2130 = vpack.c.bf16 %v2099, %v2098
      %v2131 = vpack.c.bf16 %v2101, %v2100
      %v2132 = vpack.c.bf16 %v2103, %v2102
      %v2133 = vpack.c.bf16 %v2105, %v2104
      %v2134 = vpack.c.bf16 %v2107, %v2106
      %v2135 = vpack.c.bf16 %v2109, %v2108
      %v2136 = vpack.c.bf16 %v2111, %v2110
      %v2137 = vpack.c.bf16 %v2113, %v2112
      %v2138 = vpack.c.bf16 %v2115, %v2114
      %v2139 = vpack.c.bf16 %v2117, %v2116
      %v2140 = vpack.c.bf16 %v2119, %v2118
      %v2141 = vpack.c.bf16 %v2121, %v2120
      %v2142 = vpack.c.bf16 %v2123, %v2122
      %v2143 = vpack.c.bf16 %v2125, %v2124
      %v2145 = vlaneseq
      %v2146 = vshrl.u32 %v2145, 7
      %v2147 = vsub.s32 0, %v2146
      %v2148 = vrot.slane %v472, %v2147
      %v2155 = vunpack.c.l.b16 %v467
      %v2156 = vunpack.c.l.b16 %v468
      %v2157 = vunpack.c.l.b16 %v469
      %v2158 = vunpack.c.l.b16 %v470
      %v2159 = vunpack.c.l.b16 %v471
      %v2160 = vpack.c.b16 %v2156, %v2155
      %v2161 = vpack.c.b16 %v2158, %v2157
      %v2162 = vpack.c.b16 %v2159, %v2159
      %vm2165 = vcmask 293888
      %v2167 = vsel %vm2165, %v2126, 0
      %v2170 = vsel %vm2165, %v2127, 0
      %v2173 = vsel %vm2165, %v2128, 0
      %v2176 = vsel %vm2165, %v2129, 0
      %v2179 = vsel %vm2165, %v2130, 0
      %v2182 = vsel %vm2165, %v2131, 0
      %v2185 = vsel %vm2165, %v2132, 0
      %v2188 = vsel %vm2165, %v2133, 0
      %v2191 = vsel %vm2165, %v2134, 0
      %v2194 = vsel %vm2165, %v2135, 0
      %v2197 = vsel %vm2165, %v2136, 0
      %v2200 = vsel %vm2165, %v2137, 0
      %v2203 = vsel %vm2165, %v2138, 0
      %v2206 = vsel %vm2165, %v2139, 0
      %v2209 = vsel %vm2165, %v2140, 0
      %v2212 = vsel %vm2165, %v2141, 0
      %v2215 = vsel %vm2165, %v2142, 0
      %v2218 = vsel %vm2165, %v2143, 0
      %v2221 = vsel %vm1648, %v2162, 0
      %2223 = vmatprep.subr.bf16.mxu0 0
      %2224 = vmatpush1.bf16.msra.mxu0 0
      %2225 = vmatprep.subr.bf16.mxu0 0
      %2226 = vmatpush1.bf16.msra.mxu0 0
      %2227 = vmatprep.subr.bf16.mxu0 0
      %2228 = vmatpush1.bf16.msra.mxu0 0
      %2229 = vmatprep.subr.bf16.mxu0 0
      %2230 = vmatpush1.bf16.msra.mxu0 0
      %2231 = vmatprep.subr.bf16.mxu0 0
      %2232 = vmatpush1.bf16.msra.mxu0 0
      %2233 = vmatprep.subr.bf16.mxu0 0
      %2234 = vmatpush1.bf16.msra.mxu0 %v2221
      %2235 = vmatprep.subr.bf16.mxu0 0
      %2236 = vmatpush1.bf16.msra.mxu0 %v2161
      %2237 = vmatprep.subr.bf16.mxu0 0
      %2238 = vmatpush1.bf16.msra.mxu0 %v2160
      %2239 = vmatprep.subr.bf16.mxu0 0
      %2240 = vmatpush2.bf16.msra.mxu0 0
      %2241 = vmatprep.subr.bf16.mxu0 0
      %2242 = vmatpush2.bf16.msra.mxu0 0
      %2243 = vmatprep.subr.bf16.mxu0 0
      %2244 = vmatpush2.bf16.msra.mxu0 0
      %2245 = vmatprep.subr.bf16.mxu0 0
      %2246 = vmatpush2.bf16.msra.mxu0 0
      %2247 = vmatprep.subr.bf16.mxu0 0
      %2248 = vmatpush2.bf16.msra.mxu0 0
      %2249 = vmatprep.subr.bf16.mxu0 0
      %2250 = vmatpush2.bf16.msra.mxu0 0
      %2251 = vmatprep.subr.bf16.mxu0 0
      %2252 = vmatpush2.bf16.msra.mxu0 0
      %2253 = vmatprep.subr.bf16.mxu0 0
      %2254 = vmatpush2.bf16.msra.mxu0 0
      %2255 = vmatprep.mubr.bf16.mxu0 0
      %2256 = vmatmul.mubr.bf16.gmra.mxu0 %v2167
      %v2257 = vpop.f32.mrf.mxu0
      %v2258 = vadd.f32 %v2148, %v2257
      %v2259 = vpop.f32.mrf.mxu0
      %v2260 = vpop.f32.mrf.mxu0
      %v2261 = vadd.f32 %v2148, %v2260
      %v2262 = vpop.f32.mrf.mxu0
      %2263 = vmatprep.mubr.bf16.mxu0 0
      %2264 = vmatmul.mubr.bf16.gmra.mxu0 %v2170
      %v2265 = vpop.f32.mrf.mxu0
      %v2266 = vadd.f32 %v2148, %v2265
      %v2267 = vpop.f32.mrf.mxu0
      %v2268 = vpop.f32.mrf.mxu0
      %v2269 = vadd.f32 %v2148, %v2268
      %v2270 = vpop.f32.mrf.mxu0
      %2271 = vmatprep.mubr.bf16.mxu0 0
      %2272 = vmatmul.mubr.bf16.gmra.mxu0 %v2173
      %v2273 = vpop.f32.mrf.mxu0
      %v2274 = vadd.f32 %v2148, %v2273
      %v2275 = vpop.f32.mrf.mxu0
      %v2276 = vpop.f32.mrf.mxu0
      %v2277 = vadd.f32 %v2148, %v2276
      %v2278 = vpop.f32.mrf.mxu0
      %2279 = vmatprep.mubr.bf16.mxu0 0
      %2280 = vmatmul.mubr.bf16.gmra.mxu0 %v2176
      %v2281 = vpop.f32.mrf.mxu0
      %v2282 = vadd.f32 %v2148, %v2281
      %v2283 = vpop.f32.mrf.mxu0
      %v2284 = vpop.f32.mrf.mxu0
      %v2285 = vadd.f32 %v2148, %v2284
      %v2286 = vpop.f32.mrf.mxu0
      %2287 = vmatprep.mubr.bf16.mxu0 0
      %2288 = vmatmul.mubr.bf16.gmra.mxu0 %v2179
      %v2289 = vpop.f32.mrf.mxu0
      %v2290 = vadd.f32 %v2148, %v2289
      %v2291 = vpop.f32.mrf.mxu0
      %v2292 = vpop.f32.mrf.mxu0
      %v2293 = vadd.f32 %v2148, %v2292
      %v2294 = vpop.f32.mrf.mxu0
      %2295 = vmatprep.mubr.bf16.mxu0 0
      %2296 = vmatmul.mubr.bf16.gmra.mxu0 %v2182
      %v2297 = vpop.f32.mrf.mxu0
      %v2298 = vadd.f32 %v2148, %v2297
      %v2299 = vpop.f32.mrf.mxu0
      %v2300 = vpop.f32.mrf.mxu0
      %v2301 = vadd.f32 %v2148, %v2300
      %v2302 = vpop.f32.mrf.mxu0
      %2303 = vmatprep.mubr.bf16.mxu0 0
      %2304 = vmatmul.mubr.bf16.gmra.mxu0 %v2185
      %v2305 = vpop.f32.mrf.mxu0
      %v2306 = vadd.f32 %v2148, %v2305
      %v2307 = vpop.f32.mrf.mxu0
      %v2308 = vpop.f32.mrf.mxu0
      %v2309 = vadd.f32 %v2148, %v2308
      %v2310 = vpop.f32.mrf.mxu0
      %2311 = vmatprep.mubr.bf16.mxu0 0
      %2312 = vmatmul.mubr.bf16.gmra.mxu0 %v2188
      %v2313 = vpop.f32.mrf.mxu0
      %v2314 = vadd.f32 %v2148, %v2313
      %v2315 = vpop.f32.mrf.mxu0
      %v2316 = vpop.f32.mrf.mxu0
      %v2317 = vadd.f32 %v2148, %v2316
      %v2318 = vpop.f32.mrf.mxu0
      %2319 = vmatprep.mubr.bf16.mxu0 0
      %2320 = vmatmul.mubr.bf16.gmra.mxu0 %v2191
      %v2321 = vpop.f32.mrf.mxu0
      %v2322 = vadd.f32 %v2148, %v2321
      %v2323 = vpop.f32.mrf.mxu0
      %v2324 = vpop.f32.mrf.mxu0
      %v2325 = vadd.f32 %v2148, %v2324
      %v2326 = vpop.f32.mrf.mxu0
      %2327 = vmatprep.mubr.bf16.mxu0 0
      %2328 = vmatmul.mubr.bf16.gmra.mxu0 %v2194
      %v2329 = vpop.f32.mrf.mxu0
      %v2330 = vadd.f32 %v2148, %v2329
      %v2331 = vpop.f32.mrf.mxu0
      %v2332 = vpop.f32.mrf.mxu0
      %v2333 = vadd.f32 %v2148, %v2332
      %v2334 = vpop.f32.mrf.mxu0
      %2335 = vmatprep.mubr.bf16.mxu0 0
      %2336 = vmatmul.mubr.bf16.gmra.mxu0 %v2197
      %v2337 = vpop.f32.mrf.mxu0
      %v2338 = vadd.f32 %v2148, %v2337
      %v2339 = vpop.f32.mrf.mxu0
      %v2340 = vpop.f32.mrf.mxu0
      %v2341 = vadd.f32 %v2148, %v2340
      %v2342 = vpop.f32.mrf.mxu0
      %2343 = vmatprep.mubr.bf16.mxu0 0
      %2344 = vmatmul.mubr.bf16.gmra.mxu0 %v2200
      %v2345 = vpop.f32.mrf.mxu0
      %v2346 = vadd.f32 %v2148, %v2345
      %v2347 = vpop.f32.mrf.mxu0
      %v2348 = vpop.f32.mrf.mxu0
      %v2349 = vadd.f32 %v2148, %v2348
      %v2350 = vpop.f32.mrf.mxu0
      %2351 = vmatprep.mubr.bf16.mxu0 0
      %2352 = vmatmul.mubr.bf16.gmra.mxu0 %v2203
      %v2353 = vpop.f32.mrf.mxu0
      %v2354 = vadd.f32 %v2148, %v2353
      %v2355 = vpop.f32.mrf.mxu0
      %v2356 = vpop.f32.mrf.mxu0
      %v2357 = vadd.f32 %v2148, %v2356
      %v2358 = vpop.f32.mrf.mxu0
      %2359 = vmatprep.mubr.bf16.mxu0 0
      %2360 = vmatmul.mubr.bf16.gmra.mxu0 %v2206
      %v2361 = vpop.f32.mrf.mxu0
      %v2362 = vadd.f32 %v2148, %v2361
      %v2363 = vpop.f32.mrf.mxu0
      %v2364 = vpop.f32.mrf.mxu0
      %v2365 = vadd.f32 %v2148, %v2364
      %v2366 = vpop.f32.mrf.mxu0
      %2367 = vmatprep.mubr.bf16.mxu0 0
      %2368 = vmatmul.mubr.bf16.gmra.mxu0 %v2209
      %v2369 = vpop.f32.mrf.mxu0
      %v2370 = vadd.f32 %v2148, %v2369
      %v2371 = vpop.f32.mrf.mxu0
      %v2372 = vpop.f32.mrf.mxu0
      %v2373 = vadd.f32 %v2148, %v2372
      %v2374 = vpop.f32.mrf.mxu0
      %2375 = vmatprep.mubr.bf16.mxu0 0
      %2376 = vmatmul.mubr.bf16.gmra.mxu0 %v2212
      %v2377 = vpop.f32.mrf.mxu0
      %v2378 = vadd.f32 %v2148, %v2377
      %v2379 = vpop.f32.mrf.mxu0
      %v2380 = vpop.f32.mrf.mxu0
      %v2381 = vadd.f32 %v2148, %v2380
      %v2382 = vpop.f32.mrf.mxu0
      %2383 = vmatprep.mubr.bf16.mxu0 0
      %2384 = vmatmul.mubr.bf16.gmra.mxu0 %v2215
      %v2385 = vpop.f32.mrf.mxu0
      %v2386 = vadd.f32 %v2148, %v2385
      %v2387 = vpop.f32.mrf.mxu0
      %v2388 = vpop.f32.mrf.mxu0
      %v2389 = vadd.f32 %v2148, %v2388
      %v2390 = vpop.f32.mrf.mxu0
      %2391 = vmatprep.mubr.bf16.mxu0 0
      %2392 = vmatmul.mubr.bf16.gmra.mxu0 %v2218
      %v2393 = vpop.f32.mrf.mxu0
      %v2394 = vadd.f32 %v2148, %v2393
      %v2395 = vpop.f32.mrf.mxu0
      %v2396 = vpop.f32.mrf.mxu0
      %v2397 = vadd.f32 %v2148, %v2396
      %v2398 = vpop.f32.mrf.mxu0
      %2399 = vdwg.mxu0
      %2400 = vst.msk [vmem:[#allocation2] sm:$0xff] %vm1867, -1e+30
      %2401 = vst.msk [vmem:[#allocation2 + $0x8] sm:$0xff] %vm1867, -1e+30
      %vm2402 = vcmask 59392
      %2403 = vst.msk [vmem:[#allocation2 + $0x10] sm:$0x7] %vm2402, -1e+30
      %2404 = vst.msk [vmem:[#allocation2 + $0x133] sm:$0xff] %vm1867, -1e+30
      %2405 = vst.msk [vmem:[#allocation2 + $0x13b] sm:$0xff] %vm1867, -1e+30
      %2406 = vst.msk [vmem:[#allocation2 + $0x143] sm:$0xff] %vm1867, -1e+30
      %2407 = vst.msk [vmem:[#allocation2 + $0x14b] sm:$0xff] %vm1867, -1e+30
      %2408 = vst.msk [vmem:[#allocation2 + $0x153] sm:$0x7] %vm2402, -1e+30
      %v2409 = vsel %vm370, 1, 0
      %v2410 = vsel %vm371, 1, 0
      %v2411 = vsel %vm372, 1, 0
      %v2412 = vsel %vm373, 1, 0
      %v2413 = vsel %vm374, 1, 0
      %v2414 = vsel %vm375, 1, 0
      %v2415 = vsel %vm376, 1, 0
      %v2416 = vsel %vm377, 1, 0
      %v2417 = vsel %vm378, 1, 0
      %v2418 = vsel %vm379, 1, 0
      %v2419 = vsel %vm380, 1, 0
      %v2420 = vsel %vm381, 1, 0
      %v2421 = vsel %vm382, 1, 0
      %v2422 = vsel %vm383, 1, 0
      %v2423 = vsel %vm384, 1, 0
      %v2424 = vsel %vm385, 1, 0
      %v2425 = vsel %vm386, 1, 0
      %v2426 = vsel %vm387, 1, 0
      %v2427 = vsel %vm388, 1, 0
      %v2428 = vsel %vm389, 1, 0
      %v2429 = vsel %vm390, 1, 0
      %v2430 = vsel %vm391, 1, 0
      %v2431 = vsel %vm392, 1, 0
      %v2432 = vsel %vm393, 1, 0
      %v2433 = vsel %vm394, 1, 0
      %v2434 = vsel %vm395, 1, 0
      %v2435 = vsel %vm396, 1, 0
      %v2436 = vsel %vm397, 1, 0
      %v2437 = vsel %vm398, 1, 0
      %v2438 = vsel %vm399, 1, 0
      %v2439 = vsel %vm400, 1, 0
      %v2440 = vsel %vm401, 1, 0
      %v2441 = vsel %vm402, 1, 0
      %v2442 = vsel %vm403, 1, 0
      %v2443 = vsel %vm404, 1, 0
      %v2444 = vsel %vm405, 1, 0
      %2445 = vset.pattern.permute.xlu0 0
      %2446 = vperm.xlu0 %2445, %v2409
      %v2447 = vpop.permute.xlu0 %2446
      %2448 = vset.pattern.permute.xlu0 0
      %2449 = vperm.xlu0 %2448, %v2410
      %v2450 = vpop.permute.xlu0 %2449
      %2451 = vset.pattern.permute.xlu0 0
      %2452 = vperm.xlu0 %2451, %v2411
      %v2453 = vpop.permute.xlu0 %2452
      %2454 = vset.pattern.permute.xlu0 0
      %2455 = vperm.xlu0 %2454, %v2412
      %v2456 = vpop.permute.xlu0 %2455
      %2457 = vset.pattern.permute.xlu0 0
      %2458 = vperm.xlu0 %2457, %v2413
      %v2459 = vpop.permute.xlu0 %2458
      %2460 = vset.pattern.permute.xlu0 0
      %2461 = vperm.xlu0 %2460, %v2414
      %v2462 = vpop.permute.xlu0 %2461
      %2463 = vset.pattern.permute.xlu0 0
      %2464 = vperm.xlu0 %2463, %v2415
      %v2465 = vpop.permute.xlu0 %2464
      %2466 = vset.pattern.permute.xlu0 0
      %2467 = vperm.xlu0 %2466, %v2416
      %v2468 = vpop.permute.xlu0 %2467
      %2469 = vset.pattern.permute.xlu0 0
      %2470 = vperm.xlu0 %2469, %v2417
      %v2471 = vpop.permute.xlu0 %2470
      %2472 = vset.pattern.permute.xlu0 0
      %2473 = vperm.xlu0 %2472, %v2418
      %v2474 = vpop.permute.xlu0 %2473
      %2475 = vset.pattern.permute.xlu0 0
      %2476 = vperm.xlu0 %2475, %v2419
      %v2477 = vpop.permute.xlu0 %2476
      %2478 = vset.pattern.permute.xlu0 0
      %2479 = vperm.xlu0 %2478, %v2420
      %v2480 = vpop.permute.xlu0 %2479
      %2481 = vset.pattern.permute.xlu0 0
      %2482 = vperm.xlu0 %2481, %v2421
      %v2483 = vpop.permute.xlu0 %2482
      %2484 = vset.pattern.permute.xlu0 0
      %2485 = vperm.xlu0 %2484, %v2422
      %v2486 = vpop.permute.xlu0 %2485
      %2487 = vset.pattern.permute.xlu0 0
      %2488 = vperm.xlu0 %2487, %v2423
      %v2489 = vpop.permute.xlu0 %2488
      %2490 = vset.pattern.permute.xlu0 0
      %2491 = vperm.xlu0 %2490, %v2424
      %v2492 = vpop.permute.xlu0 %2491
      %2493 = vset.pattern.permute.xlu0 0
      %2494 = vperm.xlu0 %2493, %v2425
      %v2495 = vpop.permute.xlu0 %2494
      %2496 = vset.pattern.permute.xlu0 0
      %2497 = vperm.xlu0 %2496, %v2426
      %v2498 = vpop.permute.xlu0 %2497
      %2499 = vset.pattern.permute.xlu0 0
      %2500 = vperm.xlu0 %2499, %v2427
      %v2501 = vpop.permute.xlu0 %2500
      %2502 = vset.pattern.permute.xlu0 0
      %2503 = vperm.xlu0 %2502, %v2428
      %v2504 = vpop.permute.xlu0 %2503
      %2505 = vset.pattern.permute.xlu0 0
      %2506 = vperm.xlu0 %2505, %v2429
      %v2507 = vpop.permute.xlu0 %2506
      %2508 = vset.pattern.permute.xlu0 0
      %2509 = vperm.xlu0 %2508, %v2430
      %v2510 = vpop.permute.xlu0 %2509
      %2511 = vset.pattern.permute.xlu0 0
      %2512 = vperm.xlu0 %2511, %v2431
      %v2513 = vpop.permute.xlu0 %2512
      %2514 = vset.pattern.permute.xlu0 0
      %2515 = vperm.xlu0 %2514, %v2432
      %v2516 = vpop.permute.xlu0 %2515
      %2517 = vset.pattern.permute.xlu0 0
      %2518 = vperm.xlu0 %2517, %v2433
      %v2519 = vpop.permute.xlu0 %2518
      %2520 = vset.pattern.permute.xlu0 0
      %2521 = vperm.xlu0 %2520, %v2434
      %v2522 = vpop.permute.xlu0 %2521
      %2523 = vset.pattern.permute.xlu0 0
      %2524 = vperm.xlu0 %2523, %v2435
      %v2525 = vpop.permute.xlu0 %2524
      %2526 = vset.pattern.permute.xlu0 0
      %2527 = vperm.xlu0 %2526, %v2436
      %v2528 = vpop.permute.xlu0 %2527
      %2529 = vset.pattern.permute.xlu0 0
      %2530 = vperm.xlu0 %2529, %v2437
      %v2531 = vpop.permute.xlu0 %2530
      %2532 = vset.pattern.permute.xlu0 0
      %2533 = vperm.xlu0 %2532, %v2438
      %v2534 = vpop.permute.xlu0 %2533
      %2535 = vset.pattern.permute.xlu0 0
      %2536 = vperm.xlu0 %2535, %v2439
      %v2537 = vpop.permute.xlu0 %2536
      %2538 = vset.pattern.permute.xlu0 0
      %2539 = vperm.xlu0 %2538, %v2440
      %v2540 = vpop.permute.xlu0 %2539
      %2541 = vset.pattern.permute.xlu0 0
      %2542 = vperm.xlu0 %2541, %v2441
      %v2543 = vpop.permute.xlu0 %2542
      %2544 = vset.pattern.permute.xlu0 0
      %2545 = vperm.xlu0 %2544, %v2442
      %v2546 = vpop.permute.xlu0 %2545
      %2547 = vset.pattern.permute.xlu0 0
      %2548 = vperm.xlu0 %2547, %v2443
      %v2549 = vpop.permute.xlu0 %2548
      %2550 = vset.pattern.permute.xlu0 0
      %2551 = vperm.xlu0 %2550, %v2444
      %v2552 = vpop.permute.xlu0 %2551
      %vm2553 = vcmp.eq.s32.totalorder %v2447, 1
      %vm2554 = vcmp.eq.s32.totalorder %v2450, 1
      %vm2555 = vcmp.eq.s32.totalorder %v2453, 1
      %vm2556 = vcmp.eq.s32.totalorder %v2456, 1
      %vm2557 = vcmp.eq.s32.totalorder %v2459, 1
      %vm2558 = vcmp.eq.s32.totalorder %v2462, 1
      %vm2559 = vcmp.eq.s32.totalorder %v2465, 1
      %vm2560 = vcmp.eq.s32.totalorder %v2468, 1
      %vm2561 = vcmp.eq.s32.totalorder %v2471, 1
      %vm2562 = vcmp.eq.s32.totalorder %v2474, 1
      %vm2563 = vcmp.eq.s32.totalorder %v2477, 1
      %vm2564 = vcmp.eq.s32.totalorder %v2480, 1
      %vm2565 = vcmp.eq.s32.totalorder %v2483, 1
      %vm2566 = vcmp.eq.s32.totalorder %v2486, 1
      %vm2567 = vcmp.eq.s32.totalorder %v2489, 1
      %vm2568 = vcmp.eq.s32.totalorder %v2492, 1
      %vm2569 = vcmp.eq.s32.totalorder %v2495, 1
      %vm2570 = vcmp.eq.s32.totalorder %v2498, 1
      %vm2571 = vcmp.eq.s32.totalorder %v2501, 1
      %vm2572 = vcmp.eq.s32.totalorder %v2504, 1
      %vm2573 = vcmp.eq.s32.totalorder %v2507, 1
      %vm2574 = vcmp.eq.s32.totalorder %v2510, 1
      %vm2575 = vcmp.eq.s32.totalorder %v2513, 1
      %vm2576 = vcmp.eq.s32.totalorder %v2516, 1
      %vm2577 = vcmp.eq.s32.totalorder %v2519, 1
      %vm2578 = vcmp.eq.s32.totalorder %v2522, 1
      %vm2579 = vcmp.eq.s32.totalorder %v2525, 1
      %vm2580 = vcmp.eq.s32.totalorder %v2528, 1
      %vm2581 = vcmp.eq.s32.totalorder %v2531, 1
      %vm2582 = vcmp.eq.s32.totalorder %v2534, 1
      %vm2583 = vcmp.eq.s32.totalorder %v2537, 1
      %vm2584 = vcmp.eq.s32.totalorder %v2540, 1
      %vm2585 = vcmp.eq.s32.totalorder %v2543, 1
      %vm2586 = vcmp.eq.s32.totalorder %v2546, 1
      %vm2587 = vcmp.eq.s32.totalorder %v2549, 1
      %vm2588 = vcmp.eq.s32.totalorder %v2552, 1
      %v2589 = vsel %vm2553, %v2258, -1e+30
      %v2590 = vsel %vm2554, %v2261, -1e+30
      %v2591 = vsel %vm2555, %v2266, -1e+30
      %v2592 = vsel %vm2556, %v2269, -1e+30
      %v2593 = vsel %vm2557, %v2274, -1e+30
      %v2594 = vsel %vm2558, %v2277, -1e+30
      %v2595 = vsel %vm2559, %v2282, -1e+30
      %v2596 = vsel %vm2560, %v2285, -1e+30
      %v2597 = vsel %vm2561, %v2290, -1e+30
      %v2598 = vsel %vm2562, %v2293, -1e+30
      %v2599 = vsel %vm2563, %v2298, -1e+30
      %v2600 = vsel %vm2564, %v2301, -1e+30
      %v2601 = vsel %vm2565, %v2306, -1e+30
      %v2602 = vsel %vm2566, %v2309, -1e+30
      %v2603 = vsel %vm2567, %v2314, -1e+30
      %v2604 = vsel %vm2568, %v2317, -1e+30
      %v2605 = vsel %vm2569, %v2322, -1e+30
      %v2606 = vsel %vm2570, %v2325, -1e+30
      %v2607 = vsel %vm2571, %v2330, -1e+30
      %v2608 = vsel %vm2572, %v2333, -1e+30
      %v2609 = vsel %vm2573, %v2338, -1e+30
      %v2610 = vsel %vm2574, %v2341, -1e+30
      %v2611 = vsel %vm2575, %v2346, -1e+30
      %v2612 = vsel %vm2576, %v2349, -1e+30
      %v2613 = vsel %vm2577, %v2354, -1e+30
      %v2614 = vsel %vm2578, %v2357, -1e+30
      %v2615 = vsel %vm2579, %v2362, -1e+30
      %v2616 = vsel %vm2580, %v2365, -1e+30
      %v2617 = vsel %vm2581, %v2370, -1e+30
      %v2618 = vsel %vm2582, %v2373, -1e+30
      %v2619 = vsel %vm2583, %v2378, -1e+30
      %v2620 = vsel %vm2584, %v2381, -1e+30
      %v2621 = vsel %vm2585, %v2386, -1e+30
      %v2622 = vsel %vm2586, %v2389, -1e+30
      %v2623 = vsel %vm2587, %v2394, -1e+30
      %v2624 = vsel %vm2588, %v2397, -1e+30
      %2625 = vst.msk [vmem:[#allocation2 + $0x13] sm:$0xff] %vm1867, %v2589
      %2626 = vst.msk [vmem:[#allocation2 + $0x1b] sm:$0xff] %vm1867, %v2590
      %2627 = vst.msk [vmem:[#allocation2 + $0x23] sm:$0xff] %vm1867, %v2591
      %2628 = vst.msk [vmem:[#allocation2 + $0x2b] sm:$0xff] %vm1867, %v2592
      %2629 = vst.msk [vmem:[#allocation2 + $0x33] sm:$0xff] %vm1867, %v2593
      %2630 = vst.msk [vmem:[#allocation2 + $0x3b] sm:$0xff] %vm1867, %v2594
      %2631 = vst.msk [vmem:[#allocation2 + $0x43] sm:$0xff] %vm1867, %v2595
      %2632 = vst.msk [vmem:[#allocation2 + $0x4b] sm:$0xff] %vm1867, %v2596
      %2633 = vst.msk [vmem:[#allocation2 + $0x53] sm:$0xff] %vm1867, %v2597
      %2634 = vst.msk [vmem:[#allocation2 + $0x5b] sm:$0xff] %vm1867, %v2598
      %2635 = vst.msk [vmem:[#allocation2 + $0x63] sm:$0xff] %vm1867, %v2599
      %2636 = vst.msk [vmem:[#allocation2 + $0x6b] sm:$0xff] %vm1867, %v2600
      %2637 = vst.msk [vmem:[#allocation2 + $0x73] sm:$0xff] %vm1867, %v2601
      %2638 = vst.msk [vmem:[#allocation2 + $0x7b] sm:$0xff] %vm1867, %v2602
      %2639 = vst.msk [vmem:[#allocation2 + $0x83] sm:$0xff] %vm1867, %v2603
      %2640 = vst.msk [vmem:[#allocation2 + $0x8b] sm:$0xff] %vm1867, %v2604
      %2641 = vst.msk [vmem:[#allocation2 + $0x93] sm:$0xff] %vm1867, %v2605
      %2642 = vst.msk [vmem:[#allocation2 + $0x9b] sm:$0xff] %vm1867, %v2606
      %2643 = vst.msk [vmem:[#allocation2 + $0xa3] sm:$0xff] %vm1867, %v2607
      %2644 = vst.msk [vmem:[#allocation2 + $0xab] sm:$0xff] %vm1867, %v2608
      %2645 = vst.msk [vmem:[#allocation2 + $0xb3] sm:$0xff] %vm1867, %v2609
      %2646 = vst.msk [vmem:[#allocation2 + $0xbb] sm:$0xff] %vm1867, %v2610
      %2647 = vst.msk [vmem:[#allocation2 + $0xc3] sm:$0xff] %vm1867, %v2611
      %2648 = vst.msk [vmem:[#allocation2 + $0xcb] sm:$0xff] %vm1867, %v2612
      %2649 = vst.msk [vmem:[#allocation2 + $0xd3] sm:$0xff] %vm1867, %v2613
      %2650 = vst.msk [vmem:[#allocation2 + $0xdb] sm:$0xff] %vm1867, %v2614
      %2651 = vst.msk [vmem:[#allocation2 + $0xe3] sm:$0xff] %vm1867, %v2615
      %2652 = vst.msk [vmem:[#allocation2 + $0xeb] sm:$0xff] %vm1867, %v2616
      %2653 = vst.msk [vmem:[#allocation2 + $0xf3] sm:$0xff] %vm1867, %v2617
      %2654 = vst.msk [vmem:[#allocation2 + $0xfb] sm:$0xff] %vm1867, %v2618
      %2655 = vst.msk [vmem:[#allocation2 + $0x103] sm:$0xff] %vm1867, %v2619
      %2656 = vst.msk [vmem:[#allocation2 + $0x10b] sm:$0xff] %vm1867, %v2620
      %2657 = vst.msk [vmem:[#allocation2 + $0x113] sm:$0xff] %vm1867, %v2621
      %2658 = vst.msk [vmem:[#allocation2 + $0x11b] sm:$0xff] %vm1867, %v2622
      %2659 = vst.msk [vmem:[#allocation2 + $0x123] sm:$0xff] %vm1867, %v2623
      %2660 = vst.msk [vmem:[#allocation2 + $0x12b] sm:$0xff] %vm1867, %v2624
      %v2661 = vld [vmem:[#allocation2] sm:$0xff]
      %v2662 = vld [vmem:[#allocation2 + $0x8] sm:$0xff]
      %v2663 = vld [vmem:[#allocation2 + $0x10] sm:$0xff]
      %v2664 = vld [vmem:[#allocation2 + $0x18] sm:$0xff]
      %v2665 = vld [vmem:[#allocation2 + $0x20] sm:$0xff]
      %v2666 = vld [vmem:[#allocation2 + $0x28] sm:$0xff]
      %v2667 = vld [vmem:[#allocation2 + $0x30] sm:$0xff]
      %v2668 = vld [vmem:[#allocation2 + $0x38] sm:$0xff]
      %v2669 = vld [vmem:[#allocation2 + $0x40] sm:$0xff]
      %v2670 = vld [vmem:[#allocation2 + $0x48] sm:$0xff]
      %v2671 = vld [vmem:[#allocation2 + $0x50] sm:$0xff]
      %v2672 = vld [vmem:[#allocation2 + $0x58] sm:$0xff]
      %v2673 = vld [vmem:[#allocation2 + $0x60] sm:$0xff]
      %v2674 = vld [vmem:[#allocation2 + $0x68] sm:$0xff]
      %v2675 = vld [vmem:[#allocation2 + $0x70] sm:$0xff]
      %v2676 = vld [vmem:[#allocation2 + $0x78] sm:$0xff]
      %v2677 = vld [vmem:[#allocation2 + $0x80] sm:$0xff]
      %v2678 = vld [vmem:[#allocation2 + $0x88] sm:$0xff]
      %v2679 = vld [vmem:[#allocation2 + $0x90] sm:$0xff]
      %v2680 = vld [vmem:[#allocation2 + $0x98] sm:$0xff]
      %v2681 = vld [vmem:[#allocation2 + $0xa0] sm:$0xff]
      %v2682 = vld [vmem:[#allocation2 + $0xa8] sm:$0xff]
      %v2683 = vld [vmem:[#allocation2 + $0xb0] sm:$0xff]
      %v2684 = vld [vmem:[#allocation2 + $0xb8] sm:$0xff]
      %v2685 = vld [vmem:[#allocation2 + $0xc0] sm:$0xff]
      %v2686 = vld [vmem:[#allocation2 + $0xc8] sm:$0xff]
      %v2687 = vld [vmem:[#allocation2 + $0xd0] sm:$0xff]
      %v2688 = vld [vmem:[#allocation2 + $0xd8] sm:$0xff]
      %v2689 = vld [vmem:[#allocation2 + $0xe0] sm:$0xff]
      %v2690 = vld [vmem:[#allocation2 + $0xe8] sm:$0xff]
      %v2691 = vld [vmem:[#allocation2 + $0xf0] sm:$0xff]
      %v2692 = vld [vmem:[#allocation2 + $0xf8] sm:$0xff]
      %v2693 = vld [vmem:[#allocation2 + $0x100] sm:$0xff]
      %v2694 = vld [vmem:[#allocation2 + $0x108] sm:$0xff]
      %v2695 = vld [vmem:[#allocation2 + $0x110] sm:$0xff]
      %v2696 = vld [vmem:[#allocation2 + $0x118] sm:$0xff]
      %v2697 = vld [vmem:[#allocation2 + $0x120] sm:$0xff]
      %v2698 = vld [vmem:[#allocation2 + $0x128] sm:$0xff]
      %v2699 = vld [vmem:[#allocation2 + $0x130] sm:$0xff]
      %v2700 = vld [vmem:[#allocation2 + $0x138] sm:$0xff]
      %v2701 = vld [vmem:[#allocation2 + $0x140] sm:$0xff]
      %v2739 = vrot.slane %v2663, 2
      %v2740 = vrot.slane %v2664, 2
      %v2741 = vsel %vm692, %v2739, %v2740
      %v2742 = vrot.slane %v2665, 2
      %v2743 = vsel %vm692, %v2740, %v2742
      %v2744 = vrot.slane %v2666, 2
      %v2745 = vsel %vm692, %v2742, %v2744
      %v2746 = vrot.slane %v2667, 2
      %v2747 = vsel %vm692, %v2744, %v2746
      %v2748 = vrot.slane %v2668, 2
      %v2749 = vsel %vm692, %v2746, %v2748
      %v2750 = vrot.slane %v2669, 2
      %v2751 = vsel %vm692, %v2748, %v2750
      %v2752 = vrot.slane %v2670, 2
      %v2753 = vsel %vm692, %v2750, %v2752
      %v2754 = vrot.slane %v2671, 2
      %v2755 = vsel %vm692, %v2752, %v2754
      %v2756 = vrot.slane %v2672, 2
      %v2757 = vsel %vm692, %v2754, %v2756
      %v2758 = vrot.slane %v2673, 2
      %v2759 = vsel %vm692, %v2756, %v2758
      %v2760 = vrot.slane %v2674, 2
      %v2761 = vsel %vm692, %v2758, %v2760
      %v2762 = vrot.slane %v2675, 2
      %v2763 = vsel %vm692, %v2760, %v2762
      %v2764 = vrot.slane %v2676, 2
      %v2765 = vsel %vm692, %v2762, %v2764
      %v2766 = vrot.slane %v2677, 2
      %v2767 = vsel %vm692, %v2764, %v2766
      %v2768 = vrot.slane %v2678, 2
      %v2769 = vsel %vm692, %v2766, %v2768
      %v2770 = vrot.slane %v2679, 2
      %v2771 = vsel %vm692, %v2768, %v2770
      %v2772 = vrot.slane %v2680, 2
      %v2773 = vsel %vm692, %v2770, %v2772
      %v2774 = vrot.slane %v2681, 2
      %v2775 = vsel %vm692, %v2772, %v2774
      %v2776 = vrot.slane %v2682, 2
      %v2777 = vsel %vm692, %v2774, %v2776
      %v2778 = vrot.slane %v2683, 2
      %v2779 = vsel %vm692, %v2776, %v2778
      %v2780 = vrot.slane %v2684, 2
      %v2781 = vsel %vm692, %v2778, %v2780
      %v2782 = vrot.slane %v2685, 2
      %v2783 = vsel %vm692, %v2780, %v2782
      %v2784 = vrot.slane %v2686, 2
      %v2785 = vsel %vm692, %v2782, %v2784
      %v2786 = vrot.slane %v2687, 2
      %v2787 = vsel %vm692, %v2784, %v2786
      %v2788 = vrot.slane %v2688, 2
      %v2789 = vsel %vm692, %v2786, %v2788
      %v2790 = vrot.slane %v2689, 2
      %v2791 = vsel %vm692, %v2788, %v2790
      %v2792 = vrot.slane %v2690, 2
      %v2793 = vsel %vm692, %v2790, %v2792
      %v2794 = vrot.slane %v2691, 2
      %v2795 = vsel %vm692, %v2792, %v2794
      %v2796 = vrot.slane %v2692, 2
      %v2797 = vsel %vm692, %v2794, %v2796
      %v2798 = vrot.slane %v2693, 2
      %v2799 = vsel %vm692, %v2796, %v2798
      %v2800 = vrot.slane %v2694, 2
      %v2801 = vsel %vm692, %v2798, %v2800
      %v2802 = vrot.slane %v2695, 2
      %v2803 = vsel %vm692, %v2800, %v2802
      %v2804 = vrot.slane %v2696, 2
      %v2805 = vsel %vm692, %v2802, %v2804
      %v2806 = vrot.slane %v2697, 2
      %v2807 = vsel %vm692, %v2804, %v2806
      %v2808 = vrot.slane %v2698, 2
      %v2809 = vsel %vm692, %v2806, %v2808
      %v2810 = vrot.slane %v2699, 2
      %v2811 = vsel %vm692, %v2808, %v2810
      %v2849 = vmax.f32 %v2661, %v2741
      %v2850 = vmax.f32 %v2662, %v2743
      %v2851 = vmax.f32 %v2663, %v2745
      %v2852 = vmax.f32 %v2664, %v2747
      %v2853 = vmax.f32 %v2665, %v2749
      %v2854 = vmax.f32 %v2666, %v2751
      %v2855 = vmax.f32 %v2667, %v2753
      %v2856 = vmax.f32 %v2668, %v2755
      %v2857 = vmax.f32 %v2669, %v2757
      %v2858 = vmax.f32 %v2670, %v2759
      %v2859 = vmax.f32 %v2671, %v2761
      %v2860 = vmax.f32 %v2672, %v2763
      %v2861 = vmax.f32 %v2673, %v2765
      %v2862 = vmax.f32 %v2674, %v2767
      %v2863 = vmax.f32 %v2675, %v2769
      %v2864 = vmax.f32 %v2676, %v2771
      %v2865 = vmax.f32 %v2677, %v2773
      %v2866 = vmax.f32 %v2678, %v2775
      %v2867 = vmax.f32 %v2679, %v2777
      %v2868 = vmax.f32 %v2680, %v2779
      %v2869 = vmax.f32 %v2681, %v2781
      %v2870 = vmax.f32 %v2682, %v2783
      %v2871 = vmax.f32 %v2683, %v2785
      %v2872 = vmax.f32 %v2684, %v2787
      %v2873 = vmax.f32 %v2685, %v2789
      %v2874 = vmax.f32 %v2686, %v2791
      %v2875 = vmax.f32 %v2687, %v2793
      %v2876 = vmax.f32 %v2688, %v2795
      %v2877 = vmax.f32 %v2689, %v2797
      %v2878 = vmax.f32 %v2690, %v2799
      %v2879 = vmax.f32 %v2691, %v2801
      %v2880 = vmax.f32 %v2692, %v2803
      %v2881 = vmax.f32 %v2693, %v2805
      %v2882 = vmax.f32 %v2694, %v2807
      %v2883 = vmax.f32 %v2695, %v2809
      %v2884 = vmax.f32 %v2696, %v2811
      %v2885 = vmax.f32 %v2697, %v2810
      %v2888 = vrot.slane %v2665, 4
      %v2889 = vrot.slane %v2666, 4
      %v2890 = vsel %vm1170, %v2888, %v2889
      %v2891 = vrot.slane %v2667, 4
      %v2892 = vsel %vm1170, %v2889, %v2891
      %v2893 = vrot.slane %v2668, 4
      %v2894 = vsel %vm1170, %v2891, %v2893
      %v2895 = vrot.slane %v2669, 4
      %v2896 = vsel %vm1170, %v2893, %v2895
      %v2897 = vrot.slane %v2670, 4
      %v2898 = vsel %vm1170, %v2895, %v2897
      %v2899 = vrot.slane %v2671, 4
      %v2900 = vsel %vm1170, %v2897, %v2899
      %v2901 = vrot.slane %v2672, 4
      %v2902 = vsel %vm1170, %v2899, %v2901
      %v2903 = vrot.slane %v2673, 4
      %v2904 = vsel %vm1170, %v2901, %v2903
      %v2905 = vrot.slane %v2674, 4
      %v2906 = vsel %vm1170, %v2903, %v2905
      %v2907 = vrot.slane %v2675, 4
      %v2908 = vsel %vm1170, %v2905, %v2907
      %v2909 = vrot.slane %v2676, 4
      %v2910 = vsel %vm1170, %v2907, %v2909
      %v2911 = vrot.slane %v2677, 4
      %v2912 = vsel %vm1170, %v2909, %v2911
      %v2913 = vrot.slane %v2678, 4
      %v2914 = vsel %vm1170, %v2911, %v2913
      %v2915 = vrot.slane %v2679, 4
      %v2916 = vsel %vm1170, %v2913, %v2915
      %v2917 = vrot.slane %v2680, 4
      %v2918 = vsel %vm1170, %v2915, %v2917
      %v2919 = vrot.slane %v2681, 4
      %v2920 = vsel %vm1170, %v2917, %v2919
      %v2921 = vrot.slane %v2682, 4
      %v2922 = vsel %vm1170, %v2919, %v2921
      %v2923 = vrot.slane %v2683, 4
      %v2924 = vsel %vm1170, %v2921, %v2923
      %v2925 = vrot.slane %v2684, 4
      %v2926 = vsel %vm1170, %v2923, %v2925
      %v2927 = vrot.slane %v2685, 4
      %v2928 = vsel %vm1170, %v2925, %v2927
      %v2929 = vrot.slane %v2686, 4
      %v2930 = vsel %vm1170, %v2927, %v2929
      %v2931 = vrot.slane %v2687, 4
      %v2932 = vsel %vm1170, %v2929, %v2931
      %v2933 = vrot.slane %v2688, 4
      %v2934 = vsel %vm1170, %v2931, %v2933
      %v2935 = vrot.slane %v2689, 4
      %v2936 = vsel %vm1170, %v2933, %v2935
      %v2937 = vrot.slane %v2690, 4
      %v2938 = vsel %vm1170, %v2935, %v2937
      %v2939 = vrot.slane %v2691, 4
      %v2940 = vsel %vm1170, %v2937, %v2939
      %v2941 = vrot.slane %v2692, 4
      %v2942 = vsel %vm1170, %v2939, %v2941
      %v2943 = vrot.slane %v2693, 4
      %v2944 = vsel %vm1170, %v2941, %v2943
      %v2945 = vrot.slane %v2694, 4
      %v2946 = vsel %vm1170, %v2943, %v2945
      %v2947 = vrot.slane %v2695, 4
      %v2948 = vsel %vm1170, %v2945, %v2947
      %v2949 = vrot.slane %v2696, 4
      %v2950 = vsel %vm1170, %v2947, %v2949
      %v2951 = vrot.slane %v2697, 4
      %v2952 = vsel %vm1170, %v2949, %v2951
      %v2953 = vrot.slane %v2698, 4
      %v2954 = vsel %vm1170, %v2951, %v2953
      %v2955 = vrot.slane %v2699, 4
      %v2956 = vsel %vm1170, %v2953, %v2955
      %v2957 = vrot.slane %v2700, 4
      %v2958 = vsel %vm1170, %v2955, %v2957
      %v2959 = vrot.slane %v2701, 4
      %v2960 = vsel %vm1170, %v2957, %v2959
      %v2998 = vmax.f32 %v2849, %v2890
      %v2999 = vmax.f32 %v2850, %v2892
      %v3000 = vmax.f32 %v2851, %v2894
      %v3001 = vmax.f32 %v2852, %v2896
      %v3002 = vmax.f32 %v2853, %v2898
      %v3003 = vmax.f32 %v2854, %v2900
      %v3004 = vmax.f32 %v2855, %v2902
      %v3005 = vmax.f32 %v2856, %v2904
      %v3006 = vmax.f32 %v2857, %v2906
      %v3007 = vmax.f32 %v2858, %v2908
      %v3008 = vmax.f32 %v2859, %v2910
      %v3009 = vmax.f32 %v2860, %v2912
      %v3010 = vmax.f32 %v2861, %v2914
      %v3011 = vmax.f32 %v2862, %v2916
      %v3012 = vmax.f32 %v2863, %v2918
      %v3013 = vmax.f32 %v2864, %v2920
      %v3014 = vmax.f32 %v2865, %v2922
      %v3015 = vmax.f32 %v2866, %v2924
      %v3016 = vmax.f32 %v2867, %v2926
      %v3017 = vmax.f32 %v2868, %v2928
      %v3018 = vmax.f32 %v2869, %v2930
      %v3019 = vmax.f32 %v2870, %v2932
      %v3020 = vmax.f32 %v2871, %v2934
      %v3021 = vmax.f32 %v2872, %v2936
      %v3022 = vmax.f32 %v2873, %v2938
      %v3023 = vmax.f32 %v2874, %v2940
      %v3024 = vmax.f32 %v2875, %v2942
      %v3025 = vmax.f32 %v2876, %v2944
      %v3026 = vmax.f32 %v2877, %v2946
      %v3027 = vmax.f32 %v2878, %v2948
      %v3028 = vmax.f32 %v2879, %v2950
      %v3029 = vmax.f32 %v2880, %v2952
      %v3030 = vmax.f32 %v2881, %v2954
      %v3031 = vmax.f32 %v2882, %v2956
      %v3032 = vmax.f32 %v2883, %v2958
      %v3033 = vmax.f32 %v2884, %v2960
      %v3034 = vmax.f32 %v2885, %v2959
      %v3072 = vrot.slane %v2998, 1
      %v3073 = vrot.slane %v2999, 1
      %v3074 = vsel %vm510, %v3072, %v3073
      %v3075 = vrot.slane %v3000, 1
      %v3076 = vsel %vm510, %v3073, %v3075
      %v3077 = vrot.slane %v3001, 1
      %v3078 = vsel %vm510, %v3075, %v3077
      %v3079 = vrot.slane %v3002, 1
      %v3080 = vsel %vm510, %v3077, %v3079
      %v3081 = vrot.slane %v3003, 1
      %v3082 = vsel %vm510, %v3079, %v3081
      %v3083 = vrot.slane %v3004, 1
      %v3084 = vsel %vm510, %v3081, %v3083
      %v3085 = vrot.slane %v3005, 1
      %v3086 = vsel %vm510, %v3083, %v3085
      %v3087 = vrot.slane %v3006, 1
      %v3088 = vsel %vm510, %v3085, %v3087
      %v3089 = vrot.slane %v3007, 1
      %v3090 = vsel %vm510, %v3087, %v3089
      %v3091 = vrot.slane %v3008, 1
      %v3092 = vsel %vm510, %v3089, %v3091
      %v3093 = vrot.slane %v3009, 1
      %v3094 = vsel %vm510, %v3091, %v3093
      %v3095 = vrot.slane %v3010, 1
      %v3096 = vsel %vm510, %v3093, %v3095
      %v3097 = vrot.slane %v3011, 1
      %v3098 = vsel %vm510, %v3095, %v3097
      %v3099 = vrot.slane %v3012, 1
      %v3100 = vsel %vm510, %v3097, %v3099
      %v3101 = vrot.slane %v3013, 1
      %v3102 = vsel %vm510, %v3099, %v3101
      %v3103 = vrot.slane %v3014, 1
      %v3104 = vsel %vm510, %v3101, %v3103
      %v3105 = vrot.slane %v3015, 1
      %v3106 = vsel %vm510, %v3103, %v3105
      %v3107 = vrot.slane %v3016, 1
      %v3108 = vsel %vm510, %v3105, %v3107
      %v3109 = vrot.slane %v3017, 1
      %v3110 = vsel %vm510, %v3107, %v3109
      %v3111 = vrot.slane %v3018, 1
      %v3112 = vsel %vm510, %v3109, %v3111
      %v3113 = vrot.slane %v3019, 1
      %v3114 = vsel %vm510, %v3111, %v3113
      %v3115 = vrot.slane %v3020, 1
      %v3116 = vsel %vm510, %v3113, %v3115
      %v3117 = vrot.slane %v3021, 1
      %v3118 = vsel %vm510, %v3115, %v3117
      %v3119 = vrot.slane %v3022, 1
      %v3120 = vsel %vm510, %v3117, %v3119
      %v3121 = vrot.slane %v3023, 1
      %v3122 = vsel %vm510, %v3119, %v3121
      %v3123 = vrot.slane %v3024, 1
      %v3124 = vsel %vm510, %v3121, %v3123
      %v3125 = vrot.slane %v3025, 1
      %v3126 = vsel %vm510, %v3123, %v3125
      %v3127 = vrot.slane %v3026, 1
      %v3128 = vsel %vm510, %v3125, %v3127
      %v3129 = vrot.slane %v3027, 1
      %v3130 = vsel %vm510, %v3127, %v3129
      %v3131 = vrot.slane %v3028, 1
      %v3132 = vsel %vm510, %v3129, %v3131
      %v3133 = vrot.slane %v3029, 1
      %v3134 = vsel %vm510, %v3131, %v3133
      %v3135 = vrot.slane %v3030, 1
      %v3136 = vsel %vm510, %v3133, %v3135
      %v3137 = vrot.slane %v3031, 1
      %v3138 = vsel %vm510, %v3135, %v3137
      %v3139 = vrot.slane %v3032, 1
      %v3140 = vsel %vm510, %v3137, %v3139
      %v3141 = vrot.slane %v3033, 1
      %v3142 = vsel %vm510, %v3139, %v3141
      %v3143 = vrot.slane %v3034, 1
      %v3144 = vsel %vm510, %v3141, %v3143
      %v3181 = vmax.f32 %v2998, %v3074
      %v3182 = vmax.f32 %v2999, %v3076
      %v3183 = vmax.f32 %v3000, %v3078
      %v3184 = vmax.f32 %v3001, %v3080
      %v3185 = vmax.f32 %v3002, %v3082
      %v3186 = vmax.f32 %v3003, %v3084
      %v3187 = vmax.f32 %v3004, %v3086
      %v3188 = vmax.f32 %v3005, %v3088
      %v3189 = vmax.f32 %v3006, %v3090
      %v3190 = vmax.f32 %v3007, %v3092
      %v3191 = vmax.f32 %v3008, %v3094
      %v3192 = vmax.f32 %v3009, %v3096
      %v3193 = vmax.f32 %v3010, %v3098
      %v3194 = vmax.f32 %v3011, %v3100
      %v3195 = vmax.f32 %v3012, %v3102
      %v3196 = vmax.f32 %v3013, %v3104
      %v3197 = vmax.f32 %v3014, %v3106
      %v3198 = vmax.f32 %v3015, %v3108
      %v3199 = vmax.f32 %v3016, %v3110
      %v3200 = vmax.f32 %v3017, %v3112
      %v3201 = vmax.f32 %v3018, %v3114
      %v3202 = vmax.f32 %v3019, %v3116
      %v3203 = vmax.f32 %v3020, %v3118
      %v3204 = vmax.f32 %v3021, %v3120
      %v3205 = vmax.f32 %v3022, %v3122
      %v3206 = vmax.f32 %v3023, %v3124
      %v3207 = vmax.f32 %v3024, %v3126
      %v3208 = vmax.f32 %v3025, %v3128
      %v3209 = vmax.f32 %v3026, %v3130
      %v3210 = vmax.f32 %v3027, %v3132
      %v3211 = vmax.f32 %v3028, %v3134
      %v3212 = vmax.f32 %v3029, %v3136
      %v3213 = vmax.f32 %v3030, %v3138
      %v3214 = vmax.f32 %v3031, %v3140
      %v3215 = vmax.f32 %v3032, %v3142
      %v3216 = vmax.f32 %v3033, %v3144
      %v3217 = vrot.slane %v2998, 2
      %v3218 = vrot.slane %v2999, 2
      %v3219 = vsel %vm692, %v3217, %v3218
      %v3220 = vrot.slane %v3000, 2
      %v3221 = vsel %vm692, %v3218, %v3220
      %v3222 = vrot.slane %v3001, 2
      %v3223 = vsel %vm692, %v3220, %v3222
      %v3224 = vrot.slane %v3002, 2
      %v3225 = vsel %vm692, %v3222, %v3224
      %v3226 = vrot.slane %v3003, 2
      %v3227 = vsel %vm692, %v3224, %v3226
      %v3228 = vrot.slane %v3004, 2
      %v3229 = vsel %vm692, %v3226, %v3228
      %v3230 = vrot.slane %v3005, 2
      %v3231 = vsel %vm692, %v3228, %v3230
      %v3232 = vrot.slane %v3006, 2
      %v3233 = vsel %vm692, %v3230, %v3232
      %v3234 = vrot.slane %v3007, 2
      %v3235 = vsel %vm692, %v3232, %v3234
      %v3236 = vrot.slane %v3008, 2
      %v3237 = vsel %vm692, %v3234, %v3236
      %v3238 = vrot.slane %v3009, 2
      %v3239 = vsel %vm692, %v3236, %v3238
      %v3240 = vrot.slane %v3010, 2
      %v3241 = vsel %vm692, %v3238, %v3240
      %v3242 = vrot.slane %v3011, 2
      %v3243 = vsel %vm692, %v3240, %v3242
      %v3244 = vrot.slane %v3012, 2
      %v3245 = vsel %vm692, %v3242, %v3244
      %v3246 = vrot.slane %v3013, 2
      %v3247 = vsel %vm692, %v3244, %v3246
      %v3248 = vrot.slane %v3014, 2
      %v3249 = vsel %vm692, %v3246, %v3248
      %v3250 = vrot.slane %v3015, 2
      %v3251 = vsel %vm692, %v3248, %v3250
      %v3252 = vrot.slane %v3016, 2
      %v3253 = vsel %vm692, %v3250, %v3252
      %v3254 = vrot.slane %v3017, 2
      %v3255 = vsel %vm692, %v3252, %v3254
      %v3256 = vrot.slane %v3018, 2
      %v3257 = vsel %vm692, %v3254, %v3256
      %v3258 = vrot.slane %v3019, 2
      %v3259 = vsel %vm692, %v3256, %v3258
      %v3260 = vrot.slane %v3020, 2
      %v3261 = vsel %vm692, %v3258, %v3260
      %v3262 = vrot.slane %v3021, 2
      %v3263 = vsel %vm692, %v3260, %v3262
      %v3264 = vrot.slane %v3022, 2
      %v3265 = vsel %vm692, %v3262, %v3264
      %v3266 = vrot.slane %v3023, 2
      %v3267 = vsel %vm692, %v3264, %v3266
      %v3268 = vrot.slane %v3024, 2
      %v3269 = vsel %vm692, %v3266, %v3268
      %v3270 = vrot.slane %v3025, 2
      %v3271 = vsel %vm692, %v3268, %v3270
      %v3272 = vrot.slane %v3026, 2
      %v3273 = vsel %vm692, %v3270, %v3272
      %v3274 = vrot.slane %v3027, 2
      %v3275 = vsel %vm692, %v3272, %v3274
      %v3276 = vrot.slane %v3028, 2
      %v3277 = vsel %vm692, %v3274, %v3276
      %v3278 = vrot.slane %v3029, 2
      %v3279 = vsel %vm692, %v3276, %v3278
      %v3280 = vrot.slane %v3030, 2
      %v3281 = vsel %vm692, %v3278, %v3280
      %v3282 = vrot.slane %v3031, 2
      %v3283 = vsel %vm692, %v3280, %v3282
      %v3284 = vrot.slane %v3032, 2
      %v3285 = vsel %vm692, %v3282, %v3284
      %v3286 = vrot.slane %v3033, 2
      %v3287 = vsel %vm692, %v3284, %v3286
      %v3288 = vrot.slane %v3034, 2
      %v3289 = vsel %vm692, %v3286, %v3288
      %v3326 = vmax.f32 %v3181, %v3219
      %v3327 = vmax.f32 %v3182, %v3221
      %v3328 = vmax.f32 %v3183, %v3223
      %v3329 = vmax.f32 %v3184, %v3225
      %v3330 = vmax.f32 %v3185, %v3227
      %v3331 = vmax.f32 %v3186, %v3229
      %v3332 = vmax.f32 %v3187, %v3231
      %v3333 = vmax.f32 %v3188, %v3233
      %v3334 = vmax.f32 %v3189, %v3235
      %v3335 = vmax.f32 %v3190, %v3237
      %v3336 = vmax.f32 %v3191, %v3239
      %v3337 = vmax.f32 %v3192, %v3241
      %v3338 = vmax.f32 %v3193, %v3243
      %v3339 = vmax.f32 %v3194, %v3245
      %v3340 = vmax.f32 %v3195, %v3247
      %v3341 = vmax.f32 %v3196, %v3249
      %v3342 = vmax.f32 %v3197, %v3251
      %v3343 = vmax.f32 %v3198, %v3253
      %v3344 = vmax.f32 %v3199, %v3255
      %v3345 = vmax.f32 %v3200, %v3257
      %v3346 = vmax.f32 %v3201, %v3259
      %v3347 = vmax.f32 %v3202, %v3261
      %v3348 = vmax.f32 %v3203, %v3263
      %v3349 = vmax.f32 %v3204, %v3265
      %v3350 = vmax.f32 %v3205, %v3267
      %v3351 = vmax.f32 %v3206, %v3269
      %v3352 = vmax.f32 %v3207, %v3271
      %v3353 = vmax.f32 %v3208, %v3273
      %v3354 = vmax.f32 %v3209, %v3275
      %v3355 = vmax.f32 %v3210, %v3277
      %v3356 = vmax.f32 %v3211, %v3279
      %v3357 = vmax.f32 %v3212, %v3281
      %v3358 = vmax.f32 %v3213, %v3283
      %v3359 = vmax.f32 %v3214, %v3285
      %v3360 = vmax.f32 %v3215, %v3287
      %v3361 = vmax.f32 %v3216, %v3289
      %v3362 = vld [vmem:[%s7] sm:$0xff]
      %v3363 = vld [vmem:[%s7 + $0x8] sm:$0xff]
      %v3364 = vld [vmem:[%s7 + $0x10] sm:$0xff]
      %v3365 = vld [vmem:[%s7 + $0x18] sm:$0xff]
      %v3366 = vld [vmem:[%s7 + $0x20] sm:$0xff]
      %v3367 = vld [vmem:[%s7 + $0x28] sm:$0xff]
      %v3368 = vld [vmem:[%s7 + $0x30] sm:$0xff]
      %v3369 = vld [vmem:[%s7 + $0x38] sm:$0xff]
      %v3370 = vld [vmem:[%s7 + $0x40] sm:$0xff]
      %v3371 = vld [vmem:[%s7 + $0x48] sm:$0xff]
      %v3372 = vld [vmem:[%s7 + $0x50] sm:$0xff]
      %v3373 = vld [vmem:[%s7 + $0x58] sm:$0xff]
      %v3374 = vld [vmem:[%s7 + $0x60] sm:$0xff]
      %v3375 = vld [vmem:[%s7 + $0x68] sm:$0xff]
      %v3376 = vld [vmem:[%s7 + $0x70] sm:$0xff]
      %v3377 = vld [vmem:[%s7 + $0x78] sm:$0xff]
      %v3378 = vld [vmem:[%s7 + $0x80] sm:$0xff]
      %v3379 = vld [vmem:[%s7 + $0x88] sm:$0xff]
      %v3380 = vld [vmem:[%s7 + $0x90] sm:$0xff]
      %v3381 = vld [vmem:[%s7 + $0x98] sm:$0xff]
      %v3382 = vld [vmem:[%s7 + $0xa0] sm:$0xff]
      %v3383 = vld [vmem:[%s7 + $0xa8] sm:$0xff]
      %v3384 = vld [vmem:[%s7 + $0xb0] sm:$0xff]
      %v3385 = vld [vmem:[%s7 + $0xb8] sm:$0xff]
      %v3386 = vld [vmem:[%s7 + $0xc0] sm:$0xff]
      %v3387 = vld [vmem:[%s7 + $0xc8] sm:$0xff]
      %v3388 = vld [vmem:[%s7 + $0xd0] sm:$0xff]
      %v3389 = vld [vmem:[%s7 + $0xd8] sm:$0xff]
      %v3390 = vld [vmem:[%s7 + $0xe0] sm:$0xff]
      %v3391 = vld [vmem:[%s7 + $0xe8] sm:$0xff]
      %v3393 = vsel %vm2089, %v3364, 0
      %v3396 = vsel %vm2089, %v3367, 0
      %v3399 = vsel %vm2089, %v3370, 0
      %v3402 = vsel %vm2089, %v3373, 0
      %v3405 = vsel %vm2089, %v3376, 0
      %v3408 = vsel %vm2089, %v3379, 0
      %v3411 = vsel %vm2089, %v3382, 0
      %v3414 = vsel %vm2089, %v3385, 0
      %v3417 = vsel %vm2089, %v3388, 0
      %v3420 = vsel %vm2089, %v3391, 0
      %3422 = vmatprep.subr.mxu0 0.0
      %3423 = vmatpush1.msra.mxu0 %v3341
      %3424 = vmatprep.subr.mxu0 0.0
      %3425 = vmatpush1.msra.mxu0 %v3340
      %3426 = vmatprep.subr.mxu0 0.0
      %3427 = vmatpush1.msra.mxu0 %v3339
      %3428 = vmatprep.subr.mxu0 0.0
      %3429 = vmatpush1.msra.mxu0 %v3338
      %3430 = vmatprep.subr.mxu0 0.0
      %3431 = vmatpush1.msra.mxu0 %v3337
      %3432 = vmatprep.subr.mxu0 0.0
      %3433 = vmatpush1.msra.mxu0 %v3336
      %3434 = vmatprep.subr.mxu0 0.0
      %3435 = vmatpush1.msra.mxu0 %v3335
      %3436 = vmatprep.subr.mxu0 0.0
      %3437 = vmatpush1.msra.mxu0 %v3334
      %3438 = vmatprep.subr.mxu0 0.0
      %3439 = vmatpush1.msra.mxu0 %v3333
      %3440 = vmatprep.subr.mxu0 0.0
      %3441 = vmatpush1.msra.mxu0 %v3332
      %3442 = vmatprep.subr.mxu0 0.0
      %3443 = vmatpush1.msra.mxu0 %v3331
      %3444 = vmatprep.subr.mxu0 0.0
      %3445 = vmatpush1.msra.mxu0 %v3330
      %3446 = vmatprep.subr.mxu0 0.0
      %3447 = vmatpush1.msra.mxu0 %v3329
      %3448 = vmatprep.subr.mxu0 0.0
      %3449 = vmatpush1.msra.mxu0 %v3328
      %3450 = vmatprep.subr.mxu0 0.0
      %3451 = vmatpush1.msra.mxu0 %v3327
      %3452 = vmatprep.subr.mxu0 0.0
      %3453 = vmatpush1.msra.mxu0 %v3326
      %3454 = vmatprep.subr.mxu0 0.0
      %3455 = vmatpush2.msra.mxu0 %v3357
      %3456 = vmatprep.subr.mxu0 0.0
      %3457 = vmatpush2.msra.mxu0 %v3356
      %3458 = vmatprep.subr.mxu0 0.0
      %3459 = vmatpush2.msra.mxu0 %v3355
      %3460 = vmatprep.subr.mxu0 0.0
      %3461 = vmatpush2.msra.mxu0 %v3354
      %3462 = vmatprep.subr.mxu0 0.0
      %3463 = vmatpush2.msra.mxu0 %v3353
      %3464 = vmatprep.subr.mxu0 0.0
      %3465 = vmatpush2.msra.mxu0 %v3352
      %3466 = vmatprep.subr.mxu0 0.0
      %3467 = vmatpush2.msra.mxu0 %v3351
      %3468 = vmatprep.subr.mxu0 0.0
      %3469 = vmatpush2.msra.mxu0 %v3350
      %3470 = vmatprep.subr.mxu0 0.0
      %3471 = vmatpush2.msra.mxu0 %v3349
      %3472 = vmatprep.subr.mxu0 0.0
      %3473 = vmatpush2.msra.mxu0 %v3348
      %3474 = vmatprep.subr.mxu0 0.0
      %3475 = vmatpush2.msra.mxu0 %v3347
      %3476 = vmatprep.subr.mxu0 0.0
      %3477 = vmatpush2.msra.mxu0 %v3346
      %3478 = vmatprep.subr.mxu0 0.0
      %3479 = vmatpush2.msra.mxu0 %v3345
      %3480 = vmatprep.subr.mxu0 0.0
      %3481 = vmatpush2.msra.mxu0 %v3344
      %3482 = vmatprep.subr.mxu0 0.0
      %3483 = vmatpush2.msra.mxu0 %v3343
      %3484 = vmatprep.subr.mxu0 0.0
      %3485 = vmatpush2.msra.mxu0 %v3342
      %3486 = vmatprep.mubr.f32.mxu0 %v3363
      %3487 = vmatmul.mubr.f32.gmra.mxu0 %v3362
      %v3488 = vpop.f32.mrf.mxu0
      %v3489 = vadd.f32 0.0, %v3488
      %v3490 = vpop.f32.mrf.mxu0
      %3491 = vmatprep.mubr.f32.mxu0 %v3366
      %3492 = vmatmul.mubr.f32.gmra.mxu0 %v3365
      %v3493 = vpop.f32.mrf.mxu0
      %v3494 = vadd.f32 0.0, %v3493
      %v3495 = vpop.f32.mrf.mxu0
      %3496 = vmatprep.mubr.f32.mxu0 %v3369
      %3497 = vmatmul.mubr.f32.gmra.mxu0 %v3368
      %v3498 = vpop.f32.mrf.mxu0
      %v3499 = vadd.f32 0.0, %v3498
      %v3500 = vpop.f32.mrf.mxu0
      %3501 = vmatprep.mubr.f32.mxu0 %v3372
      %3502 = vmatmul.mubr.f32.gmra.mxu0 %v3371
      %v3503 = vpop.f32.mrf.mxu0
      %v3504 = vadd.f32 0.0, %v3503
      %v3505 = vpop.f32.mrf.mxu0
      %3506 = vmatprep.mubr.f32.mxu0 %v3375
      %3507 = vmatmul.mubr.f32.gmra.mxu0 %v3374
      %v3508 = vpop.f32.mrf.mxu0
      %v3509 = vadd.f32 0.0, %v3508
      %v3510 = vpop.f32.mrf.mxu0
      %3511 = vmatprep.mubr.f32.mxu0 %v3378
      %3512 = vmatmul.mubr.f32.gmra.mxu0 %v3377
      %v3513 = vpop.f32.mrf.mxu0
      %v3514 = vadd.f32 0.0, %v3513
      %v3515 = vpop.f32.mrf.mxu0
      %3516 = vmatprep.mubr.f32.mxu0 %v3381
      %3517 = vmatmul.mubr.f32.gmra.mxu0 %v3380
      %v3518 = vpop.f32.mrf.mxu0
      %v3519 = vadd.f32 0.0, %v3518
      %v3520 = vpop.f32.mrf.mxu0
      %3521 = vmatprep.mubr.f32.mxu0 %v3384
      %3522 = vmatmul.mubr.f32.gmra.mxu0 %v3383
      %v3523 = vpop.f32.mrf.mxu0
      %v3524 = vadd.f32 0.0, %v3523
      %v3525 = vpop.f32.mrf.mxu0
      %3526 = vmatprep.mubr.f32.mxu0 %v3387
      %3527 = vmatmul.mubr.f32.gmra.mxu0 %v3386
      %v3528 = vpop.f32.mrf.mxu0
      %v3529 = vadd.f32 0.0, %v3528
      %v3530 = vpop.f32.mrf.mxu0
      %3531 = vmatprep.mubr.f32.mxu0 %v3390
      %3532 = vmatmul.mubr.f32.gmra.mxu0 %v3389
      %v3533 = vpop.f32.mrf.mxu0
      %v3534 = vadd.f32 0.0, %v3533
      %v3535 = vpop.f32.mrf.mxu0
      %3536 = vdwg.mxu0
      %3537 = vmatprep.subr.mxu0 0.0
      %3538 = vmatpush1.msra.mxu0 0.0
      %3539 = vmatprep.subr.mxu0 0.0
      %3540 = vmatpush1.msra.mxu0 0.0
      %3541 = vmatprep.subr.mxu0 0.0
      %3542 = vmatpush1.msra.mxu0 0.0
      %3543 = vmatprep.subr.mxu0 0.0
      %3544 = vmatpush1.msra.mxu0 0.0
      %3545 = vmatprep.subr.mxu0 0.0
      %3546 = vmatpush1.msra.mxu0 0.0
      %3547 = vmatprep.subr.mxu0 0.0
      %3548 = vmatpush1.msra.mxu0 0.0
      %3549 = vmatprep.subr.mxu0 0.0
      %3550 = vmatpush1.msra.mxu0 0.0
      %3551 = vmatprep.subr.mxu0 0.0
      %3552 = vmatpush1.msra.mxu0 0.0
      %3553 = vmatprep.subr.mxu0 0.0
      %3554 = vmatpush1.msra.mxu0 0.0
      %3555 = vmatprep.subr.mxu0 0.0
      %3556 = vmatpush1.msra.mxu0 0.0
      %3557 = vmatprep.subr.mxu0 0.0
      %3558 = vmatpush1.msra.mxu0 0.0
      %3559 = vmatprep.subr.mxu0 0.0
      %3560 = vmatpush1.msra.mxu0 0.0
      %3561 = vmatprep.subr.mxu0 0.0
      %3562 = vmatpush1.msra.mxu0 %v3361
      %3563 = vmatprep.subr.mxu0 0.0
      %3564 = vmatpush1.msra.mxu0 %v3360
      %3565 = vmatprep.subr.mxu0 0.0
      %3566 = vmatpush1.msra.mxu0 %v3359
      %3567 = vmatprep.subr.mxu0 0.0
      %3568 = vmatpush1.msra.mxu0 %v3358
      %3569 = vmatprep.subr.mxu0 0.0
      %3570 = vmatpush2.msra.mxu0 0.0
      %3571 = vmatprep.subr.mxu0 0.0
      %3572 = vmatpush2.msra.mxu0 0.0
      %3573 = vmatprep.subr.mxu0 0.0
      %3574 = vmatpush2.msra.mxu0 0.0
      %3575 = vmatprep.subr.mxu0 0.0
      %3576 = vmatpush2.msra.mxu0 0.0
      %3577 = vmatprep.subr.mxu0 0.0
      %3578 = vmatpush2.msra.mxu0 0.0
      %3579 = vmatprep.subr.mxu0 0.0
      %3580 = vmatpush2.msra.mxu0 0.0
      %3581 = vmatprep.subr.mxu0 0.0
      %3582 = vmatpush2.msra.mxu0 0.0
      %3583 = vmatprep.subr.mxu0 0.0
      %3584 = vmatpush2.msra.mxu0 0.0
      %3585 = vmatprep.subr.mxu0 0.0
      %3586 = vmatpush2.msra.mxu0 0.0
      %3587 = vmatprep.subr.mxu0 0.0
      %3588 = vmatpush2.msra.mxu0 0.0
      %3589 = vmatprep.subr.mxu0 0.0
      %3590 = vmatpush2.msra.mxu0 0.0
      %3591 = vmatprep.subr.mxu0 0.0
      %3592 = vmatpush2.msra.mxu0 0.0
      %3593 = vmatprep.subr.mxu0 0.0
      %3594 = vmatpush2.msra.mxu0 0.0
      %3595 = vmatprep.subr.mxu0 0.0
      %3596 = vmatpush2.msra.mxu0 0.0
      %3597 = vmatprep.subr.mxu0 0.0
      %3598 = vmatpush2.msra.mxu0 0.0
      %3599 = vmatprep.subr.mxu0 0.0
      %3600 = vmatpush2.msra.mxu0 0.0
      %3601 = vmatprep.mubr.f32.mxu0 0.0
      %3602 = vmatmul.mubr.f32.gmra.mxu0 %v3393
      %v3603 = vpop.f32.mrf.mxu0
      %v3604 = vadd.f32 %v3489, %v3603
      %v3605 = vpop.f32.mrf.mxu0
      %3606 = vmatprep.mubr.f32.mxu0 0.0
      %3607 = vmatmul.mubr.f32.gmra.mxu0 %v3396
      %v3608 = vpop.f32.mrf.mxu0
      %v3609 = vadd.f32 %v3494, %v3608
      %v3610 = vpop.f32.mrf.mxu0
      %3611 = vmatprep.mubr.f32.mxu0 0.0
      %3612 = vmatmul.mubr.f32.gmra.mxu0 %v3399
      %v3613 = vpop.f32.mrf.mxu0
      %v3614 = vadd.f32 %v3499, %v3613
      %v3615 = vpop.f32.mrf.mxu0
      %3616 = vmatprep.mubr.f32.mxu0 0.0
      %3617 = vmatmul.mubr.f32.gmra.mxu0 %v3402
      %v3618 = vpop.f32.mrf.mxu0
      %v3619 = vadd.f32 %v3504, %v3618
      %v3620 = vpop.f32.mrf.mxu0
      %3621 = vmatprep.mubr.f32.mxu0 0.0
      %3622 = vmatmul.mubr.f32.gmra.mxu0 %v3405
      %v3623 = vpop.f32.mrf.mxu0
      %v3624 = vadd.f32 %v3509, %v3623
      %v3625 = vpop.f32.mrf.mxu0
      %3626 = vmatprep.mubr.f32.mxu0 0.0
      %3627 = vmatmul.mubr.f32.gmra.mxu0 %v3408
      %v3628 = vpop.f32.mrf.mxu0
      %v3629 = vadd.f32 %v3514, %v3628
      %v3630 = vpop.f32.mrf.mxu0
      %3631 = vmatprep.mubr.f32.mxu0 0.0
      %3632 = vmatmul.mubr.f32.gmra.mxu0 %v3411
      %v3633 = vpop.f32.mrf.mxu0
      %v3634 = vadd.f32 %v3519, %v3633
      %v3635 = vpop.f32.mrf.mxu0
      %3636 = vmatprep.mubr.f32.mxu0 0.0
      %3637 = vmatmul.mubr.f32.gmra.mxu0 %v3414
      %v3638 = vpop.f32.mrf.mxu0
      %v3639 = vadd.f32 %v3524, %v3638
      %v3640 = vpop.f32.mrf.mxu0
      %3641 = vmatprep.mubr.f32.mxu0 0.0
      %3642 = vmatmul.mubr.f32.gmra.mxu0 %v3417
      %v3643 = vpop.f32.mrf.mxu0
      %v3644 = vadd.f32 %v3529, %v3643
      %v3645 = vpop.f32.mrf.mxu0
      %3646 = vmatprep.mubr.f32.mxu0 0.0
      %3647 = vmatmul.mubr.f32.gmra.mxu0 %v3420
      %v3648 = vpop.f32.mrf.mxu0
      %v3649 = vadd.f32 %v3534, %v3648
      %v3650 = vpop.f32.mrf.mxu0
      %3651 = vdwg.mxu0
      %3652 = vst.msk [vmem:[#allocation3] sm:$0xff] %vm1867, 0.0
      %3653 = vst.msk [vmem:[#allocation3 + $0x8] sm:$0x7] %vm2402, 0.0
      %3654 = vst.msk [vmem:[#allocation3 + $0x5b] sm:$0xff] %vm1867, 0.0
      %3655 = vst.msk [vmem:[#allocation3 + $0x63] sm:$0xff] %vm1867, 0.0
      %3656 = vst.msk [vmem:[#allocation3 + $0x6b] sm:$0x7] %vm2402, 0.0
      %3657 = vst.msk [vmem:[#allocation4] sm:$0xff] %vm1867, 0.0
      %3658 = vst.msk [vmem:[#allocation4 + $0x8] sm:$0x7] %vm2402, 0.0
      %3659 = vst.msk [vmem:[#allocation4 + $0x5b] sm:$0xff] %vm1867, 0.0
      %3660 = vst.msk [vmem:[#allocation4 + $0x63] sm:$0xff] %vm1867, 0.0
      %3661 = vst.msk [vmem:[#allocation4 + $0x6b] sm:$0x7] %vm2402, 0.0
      %3662 = vst.msk [vmem:[#allocation3 + $0xb] sm:$0xff] %vm1867, %v3604
      %3663 = vst.msk [vmem:[#allocation3 + $0x13] sm:$0xff] %vm1867, %v3609
      %3664 = vst.msk [vmem:[#allocation3 + $0x1b] sm:$0xff] %vm1867, %v3614
      %3665 = vst.msk [vmem:[#allocation3 + $0x23] sm:$0xff] %vm1867, %v3619
      %3666 = vst.msk [vmem:[#allocation3 + $0x2b] sm:$0xff] %vm1867, %v3624
      %3667 = vst.msk [vmem:[#allocation3 + $0x33] sm:$0xff] %vm1867, %v3629
      %3668 = vst.msk [vmem:[#allocation3 + $0x3b] sm:$0xff] %vm1867, %v3634
      %3669 = vst.msk [vmem:[#allocation3 + $0x43] sm:$0xff] %vm1867, %v3639
      %3670 = vst.msk [vmem:[#allocation3 + $0x4b] sm:$0xff] %vm1867, %v3644
      %3671 = vst.msk [vmem:[#allocation3 + $0x53] sm:$0xff] %vm1867, %v3649
      %v3672 = vld [vmem:[%s3] sm:$0xf]
      %v3673 = vld [vmem:[%s3 + $0x4] sm:$0xf]
      %v3674 = vld [vmem:[%s3 + $0x8] sm:$0xf]
      %v3675 = vld [vmem:[%s3 + $0xc] sm:$0xf]
      %v3676 = vld [vmem:[%s3 + $0x10] sm:$0xf]
      %v3677 = vld [vmem:[%s3 + $0x14] sm:$0xf]
      %v3678 = vld [vmem:[%s3 + $0x18] sm:$0xf]
      %v3679 = vld [vmem:[%s3 + $0x1c] sm:$0xf]
      %v3680 = vld [vmem:[%s3 + $0x20] sm:$0xf]
      %v3681 = vld [vmem:[%s4] sm:$0x1]
      %s3682 = scalar_lea.vmem %s3, 36
      %v3683 = vld [vmem:[%s3682] sm:$0xf]
      %v3684 = vld [vmem:[%s3682 + $0x4] sm:$0xf]
      %v3685 = vld [vmem:[%s3682 + $0x8] sm:$0xf]
      %v3686 = vld [vmem:[%s3682 + $0xc] sm:$0xf]
      %v3687 = vld [vmem:[%s3682 + $0x10] sm:$0xf]
      %v3688 = vld [vmem:[%s3682 + $0x14] sm:$0xf]
      %v3689 = vld [vmem:[%s3682 + $0x18] sm:$0xf]
      %v3690 = vld [vmem:[%s3682 + $0x1c] sm:$0xf]
      %v3691 = vld [vmem:[%s3682 + $0x20] sm:$0xf]
      %s3692 = scalar_lea.vmem %s4, 1
      %v3693 = vld [vmem:[%s3692] sm:$0x1]
      %v3694 = vld [vmem:[#allocation3] sm:$0xff]
      %v3695 = vld [vmem:[#allocation3 + $0x8] sm:$0xff]
      %v3696 = vld [vmem:[#allocation3 + $0x10] sm:$0xff]
      %v3697 = vld [vmem:[#allocation3 + $0x18] sm:$0xff]
      %v3698 = vld [vmem:[#allocation3 + $0x20] sm:$0xff]
      %v3699 = vld [vmem:[#allocation3 + $0x28] sm:$0xff]
      %v3700 = vld [vmem:[#allocation3 + $0x30] sm:$0xff]
      %v3701 = vld [vmem:[#allocation3 + $0x38] sm:$0xff]
      %v3702 = vld [vmem:[#allocation3 + $0x40] sm:$0xff]
      %v3703 = vld [vmem:[#allocation3 + $0x48] sm:$0xff]
      %v3704 = vld [vmem:[#allocation3 + $0x50] sm:$0xff]
      %v3705 = vld [vmem:[#allocation3 + $0x58] sm:$0xff]
      %v3706 = vld [vmem:[#allocation3 + $0x60] sm:$0xff]
      %v3707 = vmax.f32 %v3694, 0.0
      %v3708 = vmax.f32 %v3695, 0.0
      %v3709 = vmax.f32 %v3696, 0.0
      %v3710 = vmax.f32 %v3697, 0.0
      %v3711 = vmax.f32 %v3698, 0.0
      %v3712 = vmax.f32 %v3699, 0.0
      %v3713 = vmax.f32 %v3700, 0.0
      %v3714 = vmax.f32 %v3701, 0.0
      %v3715 = vmax.f32 %v3702, 0.0
      %v3716 = vmax.f32 %v3703, 0.0
      %v3717 = vmax.f32 %v3704, 0.0
      %v3718 = vmax.f32 %v3705, 0.0
      %v3719 = vmax.f32 %v3706, 0.0
      %v3731 = vrot.slane %v3707, 1
      %v3732 = vrot.slane %v3708, 1
      %v3733 = vsel %vm510, %v3731, %v3732
      %v3734 = vrot.slane %v3709, 1
      %v3735 = vsel %vm510, %v3732, %v3734
      %v3736 = vrot.slane %v3710, 1
      %v3737 = vsel %vm510, %v3734, %v3736
      %v3738 = vrot.slane %v3711, 1
      %v3739 = vsel %vm510, %v3736, %v3738
      %v3740 = vrot.slane %v3712, 1
      %v3741 = vsel %vm510, %v3738, %v3740
      %v3742 = vrot.slane %v3713, 1
      %v3743 = vsel %vm510, %v3740, %v3742
      %v3744 = vrot.slane %v3714, 1
      %v3745 = vsel %vm510, %v3742, %v3744
      %v3746 = vrot.slane %v3715, 1
      %v3747 = vsel %vm510, %v3744, %v3746
      %v3748 = vrot.slane %v3716, 1
      %v3749 = vsel %vm510, %v3746, %v3748
      %v3750 = vrot.slane %v3717, 1
      %v3751 = vsel %vm510, %v3748, %v3750
      %3752 = vrot.lane.b32.xlu0 %v3733, 8
      %v3753 = vpop.permute.xlu0 %3752
      %3754 = vrot.lane.b32.xlu0 %v3735, 8
      %v3755 = vpop.permute.xlu0 %3754
      %3756 = vrot.lane.b32.xlu0 %v3737, 8
      %v3757 = vpop.permute.xlu0 %3756
      %3758 = vrot.lane.b32.xlu0 %v3739, 8
      %v3759 = vpop.permute.xlu0 %3758
      %3760 = vrot.lane.b32.xlu0 %v3741, 8
      %v3761 = vpop.permute.xlu0 %3760
      %3762 = vrot.lane.b32.xlu0 %v3743, 8
      %v3763 = vpop.permute.xlu0 %3762
      %3764 = vrot.lane.b32.xlu0 %v3745, 8
      %v3765 = vpop.permute.xlu0 %3764
      %3766 = vrot.lane.b32.xlu0 %v3747, 8
      %v3767 = vpop.permute.xlu0 %3766
      %3768 = vrot.lane.b32.xlu0 %v3749, 8
      %v3769 = vpop.permute.xlu0 %3768
      %3770 = vrot.lane.b32.xlu0 %v3751, 8
      %v3771 = vpop.permute.xlu0 %3770
      %v3782 = vrot.slane %v3707, 2
      %v3783 = vrot.slane %v3708, 2
      %v3784 = vsel %vm692, %v3782, %v3783
      %v3785 = vrot.slane %v3709, 2
      %v3786 = vsel %vm692, %v3783, %v3785
      %v3787 = vrot.slane %v3710, 2
      %v3788 = vsel %vm692, %v3785, %v3787
      %v3789 = vrot.slane %v3711, 2
      %v3790 = vsel %vm692, %v3787, %v3789
      %v3791 = vrot.slane %v3712, 2
      %v3792 = vsel %vm692, %v3789, %v3791
      %v3793 = vrot.slane %v3713, 2
      %v3794 = vsel %vm692, %v3791, %v3793
      %v3795 = vrot.slane %v3714, 2
      %v3796 = vsel %vm692, %v3793, %v3795
      %v3797 = vrot.slane %v3715, 2
      %v3798 = vsel %vm692, %v3795, %v3797
      %v3799 = vrot.slane %v3716, 2
      %v3800 = vsel %vm692, %v3797, %v3799
      %v3801 = vrot.slane %v3717, 2
      %v3802 = vsel %vm692, %v3799, %v3801
      %3803 = vrot.lane.b32.xlu0 %v3784, 16
      %v3804 = vpop.permute.xlu0 %3803
      %3805 = vrot.lane.b32.xlu0 %v3786, 16
      %v3806 = vpop.permute.xlu0 %3805
      %3807 = vrot.lane.b32.xlu0 %v3788, 16
      %v3808 = vpop.permute.xlu0 %3807
      %3809 = vrot.lane.b32.xlu0 %v3790, 16
      %v3810 = vpop.permute.xlu0 %3809
      %3811 = vrot.lane.b32.xlu0 %v3792, 16
      %v3812 = vpop.permute.xlu0 %3811
      %3813 = vrot.lane.b32.xlu0 %v3794, 16
      %v3814 = vpop.permute.xlu0 %3813
      %3815 = vrot.lane.b32.xlu0 %v3796, 16
      %v3816 = vpop.permute.xlu0 %3815
      %3817 = vrot.lane.b32.xlu0 %v3798, 16
      %v3818 = vpop.permute.xlu0 %3817
      %3819 = vrot.lane.b32.xlu0 %v3800, 16
      %v3820 = vpop.permute.xlu0 %3819
      %3821 = vrot.lane.b32.xlu0 %v3802, 16
      %v3822 = vpop.permute.xlu0 %3821
      %v3834 = vrot.slane %v3718, 2
      %v3835 = vsel %vm692, %v3801, %v3834
      %3836 = vrot.lane.b32.xlu0 %v3786, 24
      %v3837 = vpop.permute.xlu0 %3836
      %3838 = vrot.lane.b32.xlu0 %v3788, 24
      %v3839 = vpop.permute.xlu0 %3838
      %3840 = vrot.lane.b32.xlu0 %v3790, 24
      %v3841 = vpop.permute.xlu0 %3840
      %3842 = vrot.lane.b32.xlu0 %v3792, 24
      %v3843 = vpop.permute.xlu0 %3842
      %3844 = vrot.lane.b32.xlu0 %v3794, 24
      %v3845 = vpop.permute.xlu0 %3844
      %3846 = vrot.lane.b32.xlu0 %v3796, 24
      %v3847 = vpop.permute.xlu0 %3846
      %3848 = vrot.lane.b32.xlu0 %v3798, 24
      %v3849 = vpop.permute.xlu0 %3848
      %3850 = vrot.lane.b32.xlu0 %v3800, 24
      %v3851 = vpop.permute.xlu0 %3850
      %3852 = vrot.lane.b32.xlu0 %v3802, 24
      %v3853 = vpop.permute.xlu0 %3852
      %3854 = vrot.lane.b32.xlu0 %v3835, 24
      %v3855 = vpop.permute.xlu0 %3854
      %v3866 = vrot.slane %v3708, 3
      %v3867 = vrot.slane %v3709, 3
      %v3868 = vsel %vm988, %v3866, %v3867
      %v3869 = vrot.slane %v3710, 3
      %v3870 = vsel %vm988, %v3867, %v3869
      %v3871 = vrot.slane %v3711, 3
      %v3872 = vsel %vm988, %v3869, %v3871
      %v3873 = vrot.slane %v3712, 3
      %v3874 = vsel %vm988, %v3871, %v3873
      %v3875 = vrot.slane %v3713, 3
      %v3876 = vsel %vm988, %v3873, %v3875
      %v3877 = vrot.slane %v3714, 3
      %v3878 = vsel %vm988, %v3875, %v3877
      %v3879 = vrot.slane %v3715, 3
      %v3880 = vsel %vm988, %v3877, %v3879
      %v3881 = vrot.slane %v3716, 3
      %v3882 = vsel %vm988, %v3879, %v3881
      %v3883 = vrot.slane %v3717, 3
      %v3884 = vsel %vm988, %v3881, %v3883
      %v3885 = vrot.slane %v3718, 3
      %v3886 = vsel %vm988, %v3883, %v3885
      %3887 = vrot.lane.b32.xlu0 %v3868, 32
      %v3888 = vpop.permute.xlu0 %3887
      %3889 = vrot.lane.b32.xlu0 %v3870, 32
      %v3890 = vpop.permute.xlu0 %3889
      %3891 = vrot.lane.b32.xlu0 %v3872, 32
      %v3892 = vpop.permute.xlu0 %3891
      %3893 = vrot.lane.b32.xlu0 %v3874, 32
      %v3894 = vpop.permute.xlu0 %3893
      %3895 = vrot.lane.b32.xlu0 %v3876, 32
      %v3896 = vpop.permute.xlu0 %3895
      %3897 = vrot.lane.b32.xlu0 %v3878, 32
      %v3898 = vpop.permute.xlu0 %3897
      %3899 = vrot.lane.b32.xlu0 %v3880, 32
      %v3900 = vpop.permute.xlu0 %3899
      %3901 = vrot.lane.b32.xlu0 %v3882, 32
      %v3902 = vpop.permute.xlu0 %3901
      %3903 = vrot.lane.b32.xlu0 %v3884, 32
      %v3904 = vpop.permute.xlu0 %3903
      %3905 = vrot.lane.b32.xlu0 %v3886, 32
      %v3906 = vpop.permute.xlu0 %3905
      %v3917 = vrot.slane %v3708, 4
      %v3918 = vrot.slane %v3709, 4
      %v3919 = vsel %vm1170, %v3917, %v3918
      %v3920 = vrot.slane %v3710, 4
      %v3921 = vsel %vm1170, %v3918, %v3920
      %v3922 = vrot.slane %v3711, 4
      %v3923 = vsel %vm1170, %v3920, %v3922
      %v3924 = vrot.slane %v3712, 4
      %v3925 = vsel %vm1170, %v3922, %v3924
      %v3926 = vrot.slane %v3713, 4
      %v3927 = vsel %vm1170, %v3924, %v3926
      %v3928 = vrot.slane %v3714, 4
      %v3929 = vsel %vm1170, %v3926, %v3928
      %v3930 = vrot.slane %v3715, 4
      %v3931 = vsel %vm1170, %v3928, %v3930
      %v3932 = vrot.slane %v3716, 4
      %v3933 = vsel %vm1170, %v3930, %v3932
      %v3934 = vrot.slane %v3717, 4
      %v3935 = vsel %vm1170, %v3932, %v3934
      %v3936 = vrot.slane %v3718, 4
      %v3937 = vsel %vm1170, %v3934, %v3936
      %3938 = vrot.lane.b32.xlu0 %v3919, 40
      %v3939 = vpop.permute.xlu0 %3938
      %3940 = vrot.lane.b32.xlu0 %v3921, 40
      %v3941 = vpop.permute.xlu0 %3940
      %3942 = vrot.lane.b32.xlu0 %v3923, 40
      %v3943 = vpop.permute.xlu0 %3942
      %3944 = vrot.lane.b32.xlu0 %v3925, 40
      %v3945 = vpop.permute.xlu0 %3944
      %3946 = vrot.lane.b32.xlu0 %v3927, 40
      %v3947 = vpop.permute.xlu0 %3946
      %3948 = vrot.lane.b32.xlu0 %v3929, 40
      %v3949 = vpop.permute.xlu0 %3948
      %3950 = vrot.lane.b32.xlu0 %v3931, 40
      %v3951 = vpop.permute.xlu0 %3950
      %3952 = vrot.lane.b32.xlu0 %v3933, 40
      %v3953 = vpop.permute.xlu0 %3952
      %3954 = vrot.lane.b32.xlu0 %v3935, 40
      %v3955 = vpop.permute.xlu0 %3954
      %3956 = vrot.lane.b32.xlu0 %v3937, 40
      %v3957 = vpop.permute.xlu0 %3956
      %v3969 = vrot.slane %v3719, 4
      %v3970 = vsel %vm1170, %v3936, %v3969
      %3971 = vrot.lane.b32.xlu0 %v3921, 48
      %v3972 = vpop.permute.xlu0 %3971
      %3973 = vrot.lane.b32.xlu0 %v3923, 48
      %v3974 = vpop.permute.xlu0 %3973
      %3975 = vrot.lane.b32.xlu0 %v3925, 48
      %v3976 = vpop.permute.xlu0 %3975
      %3977 = vrot.lane.b32.xlu0 %v3927, 48
      %v3978 = vpop.permute.xlu0 %3977
      %3979 = vrot.lane.b32.xlu0 %v3929, 48
      %v3980 = vpop.permute.xlu0 %3979
      %3981 = vrot.lane.b32.xlu0 %v3931, 48
      %v3982 = vpop.permute.xlu0 %3981
      %3983 = vrot.lane.b32.xlu0 %v3933, 48
      %v3984 = vpop.permute.xlu0 %3983
      %3985 = vrot.lane.b32.xlu0 %v3935, 48
      %v3986 = vpop.permute.xlu0 %3985
      %3987 = vrot.lane.b32.xlu0 %v3937, 48
      %v3988 = vpop.permute.xlu0 %3987
      %3989 = vrot.lane.b32.xlu0 %v3970, 48
      %v3990 = vpop.permute.xlu0 %3989
      %v4001 = vrot.slane %v3709, 5
      %v4002 = vrot.slane %v3710, 5
      %v4003 = vsel %vm1466, %v4001, %v4002
      %v4004 = vrot.slane %v3711, 5
      %v4005 = vsel %vm1466, %v4002, %v4004
      %v4006 = vrot.slane %v3712, 5
      %v4007 = vsel %vm1466, %v4004, %v4006
      %v4008 = vrot.slane %v3713, 5
      %v4009 = vsel %vm1466, %v4006, %v4008
      %v4010 = vrot.slane %v3714, 5
      %v4011 = vsel %vm1466, %v4008, %v4010
      %v4012 = vrot.slane %v3715, 5
      %v4013 = vsel %vm1466, %v4010, %v4012
      %v4014 = vrot.slane %v3716, 5
      %v4015 = vsel %vm1466, %v4012, %v4014
      %v4016 = vrot.slane %v3717, 5
      %v4017 = vsel %vm1466, %v4014, %v4016
      %v4018 = vrot.slane %v3718, 5
      %v4019 = vsel %vm1466, %v4016, %v4018
      %v4020 = vrot.slane %v3719, 5
      %v4021 = vsel %vm1466, %v4018, %v4020
      %4022 = vrot.lane.b32.xlu0 %v4003, 56
      %v4023 = vpop.permute.xlu0 %4022
      %4024 = vrot.lane.b32.xlu0 %v4005, 56
      %v4025 = vpop.permute.xlu0 %4024
      %4026 = vrot.lane.b32.xlu0 %v4007, 56
      %v4027 = vpop.permute.xlu0 %4026
      %4028 = vrot.lane.b32.xlu0 %v4009, 56
      %v4029 = vpop.permute.xlu0 %4028
      %4030 = vrot.lane.b32.xlu0 %v4011, 56
      %v4031 = vpop.permute.xlu0 %4030
      %4032 = vrot.lane.b32.xlu0 %v4013, 56
      %v4033 = vpop.permute.xlu0 %4032
      %4034 = vrot.lane.b32.xlu0 %v4015, 56
      %v4035 = vpop.permute.xlu0 %4034
      %4036 = vrot.lane.b32.xlu0 %v4017, 56
      %v4037 = vpop.permute.xlu0 %4036
      %4038 = vrot.lane.b32.xlu0 %v4019, 56
      %v4039 = vpop.permute.xlu0 %4038
      %4040 = vrot.lane.b32.xlu0 %v4021, 56
      %v4041 = vpop.permute.xlu0 %4040
      %v4052 = vrot.slane %v3709, 6
      %v4053 = vrot.slane %v3710, 6
      %v4054 = vsel %vm1648, %v4052, %v4053
      %v4055 = vrot.slane %v3711, 6
      %v4056 = vsel %vm1648, %v4053, %v4055
      %v4057 = vrot.slane %v3712, 6
      %v4058 = vsel %vm1648, %v4055, %v4057
      %v4059 = vrot.slane %v3713, 6
      %v4060 = vsel %vm1648, %v4057, %v4059
      %v4061 = vrot.slane %v3714, 6
      %v4062 = vsel %vm1648, %v4059, %v4061
      %v4063 = vrot.slane %v3715, 6
      %v4064 = vsel %vm1648, %v4061, %v4063
      %v4065 = vrot.slane %v3716, 6
      %v4066 = vsel %vm1648, %v4063, %v4065
      %v4067 = vrot.slane %v3717, 6
      %v4068 = vsel %vm1648, %v4065, %v4067
      %v4069 = vrot.slane %v3718, 6
      %v4070 = vsel %vm1648, %v4067, %v4069
      %v4071 = vrot.slane %v3719, 6
      %v4072 = vsel %vm1648, %v4069, %v4071
      %4073 = vrot.lane.b32.xlu0 %v4054, 64
      %v4074 = vpop.permute.xlu0 %4073
      %4075 = vrot.lane.b32.xlu0 %v4056, 64
      %v4076 = vpop.permute.xlu0 %4075
      %4077 = vrot.lane.b32.xlu0 %v4058, 64
      %v4078 = vpop.permute.xlu0 %4077
      %4079 = vrot.lane.b32.xlu0 %v4060, 64
      %v4080 = vpop.permute.xlu0 %4079
      %4081 = vrot.lane.b32.xlu0 %v4062, 64
      %v4082 = vpop.permute.xlu0 %4081
      %4083 = vrot.lane.b32.xlu0 %v4064, 64
      %v4084 = vpop.permute.xlu0 %4083
      %4085 = vrot.lane.b32.xlu0 %v4066, 64
      %v4086 = vpop.permute.xlu0 %4085
      %4087 = vrot.lane.b32.xlu0 %v4068, 64
      %v4088 = vpop.permute.xlu0 %4087
      %4089 = vrot.lane.b32.xlu0 %v4070, 64
      %v4090 = vpop.permute.xlu0 %4089
      %4091 = vrot.lane.b32.xlu0 %v4072, 64
      %v4092 = vpop.permute.xlu0 %4091
      %v4103 = vsel %vm1867, %v3707, %v3753
      %v4104 = vsel %vm1867, %v3708, %v3755
      %v4105 = vsel %vm1867, %v3709, %v3757
      %v4106 = vsel %vm1867, %v3710, %v3759
      %v4107 = vsel %vm1867, %v3711, %v3761
      %v4108 = vsel %vm1867, %v3712, %v3763
      %v4109 = vsel %vm1867, %v3713, %v3765
      %v4110 = vsel %vm1867, %v3714, %v3767
      %v4111 = vsel %vm1867, %v3715, %v3769
      %v4112 = vsel %vm1867, %v3716, %v3771
      %v4113 = vsel %vm1941, %v4103, %v3804
      %v4114 = vsel %vm1941, %v4104, %v3806
      %v4115 = vsel %vm1941, %v4105, %v3808
      %v4116 = vsel %vm1941, %v4106, %v3810
      %v4117 = vsel %vm1941, %v4107, %v3812
      %v4118 = vsel %vm1941, %v4108, %v3814
      %v4119 = vsel %vm1941, %v4109, %v3816
      %v4120 = vsel %vm1941, %v4110, %v3818
      %v4121 = vsel %vm1941, %v4111, %v3820
      %v4122 = vsel %vm1941, %v4112, %v3822
      %v4123 = vsel %vm2015, %v4113, %v3837
      %v4124 = vsel %vm2015, %v4114, %v3839
      %v4125 = vsel %vm2015, %v4115, %v3841
      %v4126 = vsel %vm2015, %v4116, %v3843
      %v4127 = vsel %vm2015, %v4117, %v3845
      %v4128 = vsel %vm2015, %v4118, %v3847
      %v4129 = vsel %vm2015, %v4119, %v3849
      %v4130 = vsel %vm2015, %v4120, %v3851
      %v4131 = vsel %vm2015, %v4121, %v3853
      %v4132 = vsel %vm2015, %v4122, %v3855
      %v4133 = vsel %vm2089, %v4123, %v3888
      %v4134 = vsel %vm2089, %v4124, %v3890
      %v4135 = vsel %vm2089, %v4125, %v3892
      %v4136 = vsel %vm2089, %v4126, %v3894
      %v4137 = vsel %vm2089, %v4127, %v3896
      %v4138 = vsel %vm2089, %v4128, %v3898
      %v4139 = vsel %vm2089, %v4129, %v3900
      %v4140 = vsel %vm2089, %v4130, %v3902
      %v4141 = vsel %vm2089, %v4131, %v3904
      %v4142 = vsel %vm2089, %v4132, %v3906
      %vm4143 = vcmask 326656
      %v4144 = vsel %vm4143, %v4133, %v3939
      %v4145 = vsel %vm4143, %v4134, %v3941
      %v4146 = vsel %vm4143, %v4135, %v3943
      %v4147 = vsel %vm4143, %v4136, %v3945
      %v4148 = vsel %vm4143, %v4137, %v3947
      %v4149 = vsel %vm4143, %v4138, %v3949
      %v4150 = vsel %vm4143, %v4139, %v3951
      %v4151 = vsel %vm4143, %v4140, %v3953
      %v4152 = vsel %vm4143, %v4141, %v3955
      %v4153 = vsel %vm4143, %v4142, %v3957
      %vm4154 = vcmask 392192
      %v4155 = vsel %vm4154, %v4144, %v3972
      %v4156 = vsel %vm4154, %v4145, %v3974
      %v4157 = vsel %vm4154, %v4146, %v3976
      %v4158 = vsel %vm4154, %v4147, %v3978
      %v4159 = vsel %vm4154, %v4148, %v3980
      %v4160 = vsel %vm4154, %v4149, %v3982
      %v4161 = vsel %vm4154, %v4150, %v3984
      %v4162 = vsel %vm4154, %v4151, %v3986
      %v4163 = vsel %vm4154, %v4152, %v3988
      %v4164 = vsel %vm4154, %v4153, %v3990
      %vm4165 = vcmask 457728
      %v4166 = vsel %vm4165, %v4155, %v4023
      %v4167 = vsel %vm4165, %v4156, %v4025
      %v4168 = vsel %vm4165, %v4157, %v4027
      %v4169 = vsel %vm4165, %v4158, %v4029
      %v4170 = vsel %vm4165, %v4159, %v4031
      %v4171 = vsel %vm4165, %v4160, %v4033
      %v4172 = vsel %vm4165, %v4161, %v4035
      %v4173 = vsel %vm4165, %v4162, %v4037
      %v4174 = vsel %vm4165, %v4163, %v4039
      %v4175 = vsel %vm4165, %v4164, %v4041
      %vm4176 = vcmask 523264
      %v4177 = vsel %vm4176, %v4166, %v4074
      %v4178 = vsel %vm4176, %v4167, %v4076
      %v4179 = vsel %vm4176, %v4168, %v4078
      %v4180 = vsel %vm4176, %v4169, %v4080
      %v4181 = vsel %vm4176, %v4170, %v4082
      %v4182 = vsel %vm4176, %v4171, %v4084
      %v4183 = vsel %vm4176, %v4172, %v4086
      %v4184 = vsel %vm4176, %v4173, %v4088
      %v4185 = vsel %vm4176, %v4174, %v4090
      %v4186 = vsel %vm4176, %v4175, %v4092
      %v4187 = vpack.c.bf16 %v4178, %v4177
      %v4188 = vpack.c.bf16 %v4180, %v4179
      %v4189 = vpack.c.bf16 %v4182, %v4181
      %v4190 = vpack.c.bf16 %v4184, %v4183
      %v4191 = vpack.c.bf16 %v4186, %v4185
      %v4193 = vlaneseq
      %v4194 = vshrl.u32 %v4193, 7
      %v4195 = vsub.s32 0, %v4194
      %v4196 = vrot.slane %v3681, %v4195
      %v4207 = vunpack.c.l.b16 %v3672
      %v4208 = vunpack.c.l.b16 %v3673
      %v4209 = vunpack.c.l.b16 %v3674
      %v4210 = vunpack.c.l.b16 %v3675
      %v4211 = vunpack.c.l.b16 %v3676
      %v4212 = vunpack.c.l.b16 %v3677
      %v4213 = vunpack.c.l.b16 %v3678
      %v4214 = vunpack.c.l.b16 %v3679
      %v4215 = vunpack.c.l.b16 %v3680
      %v4216 = vpack.c.b16 %v4208, %v4207
      %v4217 = vpack.c.b16 %v4210, %v4209
      %v4218 = vpack.c.b16 %v4212, %v4211
      %v4219 = vpack.c.b16 %v4214, %v4213
      %v4220 = vpack.c.b16 %v4215, %v4215
      %vm4225 = vcmask 588800
      %v4227 = vsel %vm4225, %v4187, 0
      %v4230 = vsel %vm4225, %v4188, 0
      %v4233 = vsel %vm4225, %v4189, 0
      %v4236 = vsel %vm4225, %v4190, 0
      %v4239 = vsel %vm4225, %v4191, 0
      %v4242 = vsel %vm1170, %v4220, 0
      %4244 = vmatprep.subr.bf16.mxu0 0
      %4245 = vmatpush1.bf16.msra.mxu0 0
      %4246 = vmatprep.subr.bf16.mxu0 0
      %4247 = vmatpush1.bf16.msra.mxu0 0
      %4248 = vmatprep.subr.bf16.mxu0 0
      %4249 = vmatpush1.bf16.msra.mxu0 0
      %4250 = vmatprep.subr.bf16.mxu0 0
      %4251 = vmatpush1.bf16.msra.mxu0 %v4242
      %4252 = vmatprep.subr.bf16.mxu0 0
      %4253 = vmatpush1.bf16.msra.mxu0 %v4219
      %4254 = vmatprep.subr.bf16.mxu0 0
      %4255 = vmatpush1.bf16.msra.mxu0 %v4218
      %4256 = vmatprep.subr.bf16.mxu0 0
      %4257 = vmatpush1.bf16.msra.mxu0 %v4217
      %4258 = vmatprep.subr.bf16.mxu0 0
      %4259 = vmatpush1.bf16.msra.mxu0 %v4216
      %4260 = vmatprep.subr.bf16.mxu0 0
      %4261 = vmatpush2.bf16.msra.mxu0 0
      %4262 = vmatprep.subr.bf16.mxu0 0
      %4263 = vmatpush2.bf16.msra.mxu0 0
      %4264 = vmatprep.subr.bf16.mxu0 0
      %4265 = vmatpush2.bf16.msra.mxu0 0
      %4266 = vmatprep.subr.bf16.mxu0 0
      %4267 = vmatpush2.bf16.msra.mxu0 0
      %4268 = vmatprep.subr.bf16.mxu0 0
      %4269 = vmatpush2.bf16.msra.mxu0 0
      %4270 = vmatprep.subr.bf16.mxu0 0
      %4271 = vmatpush2.bf16.msra.mxu0 0
      %4272 = vmatprep.subr.bf16.mxu0 0
      %4273 = vmatpush2.bf16.msra.mxu0 0
      %4274 = vmatprep.subr.bf16.mxu0 0
      %4275 = vmatpush2.bf16.msra.mxu0 0
      %4276 = vmatprep.mubr.bf16.mxu0 0
      %4277 = vmatmul.mubr.bf16.gmra.mxu0 %v4227
      %v4278 = vpop.f32.mrf.mxu0
      %v4279 = vadd.f32 %v4196, %v4278
      %v4280 = vpop.f32.mrf.mxu0
      %v4281 = vpop.f32.mrf.mxu0
      %v4282 = vadd.f32 %v4196, %v4281
      %v4283 = vpop.f32.mrf.mxu0
      %4284 = vmatprep.mubr.bf16.mxu0 0
      %4285 = vmatmul.mubr.bf16.gmra.mxu0 %v4230
      %v4286 = vpop.f32.mrf.mxu0
      %v4287 = vadd.f32 %v4196, %v4286
      %v4288 = vpop.f32.mrf.mxu0
      %v4289 = vpop.f32.mrf.mxu0
      %v4290 = vadd.f32 %v4196, %v4289
      %v4291 = vpop.f32.mrf.mxu0
      %4292 = vmatprep.mubr.bf16.mxu0 0
      %4293 = vmatmul.mubr.bf16.gmra.mxu0 %v4233
      %v4294 = vpop.f32.mrf.mxu0
      %v4295 = vadd.f32 %v4196, %v4294
      %v4296 = vpop.f32.mrf.mxu0
      %v4297 = vpop.f32.mrf.mxu0
      %v4298 = vadd.f32 %v4196, %v4297
      %v4299 = vpop.f32.mrf.mxu0
      %4300 = vmatprep.mubr.bf16.mxu0 0
      %4301 = vmatmul.mubr.bf16.gmra.mxu0 %v4236
      %v4302 = vpop.f32.mrf.mxu0
      %v4303 = vadd.f32 %v4196, %v4302
      %v4304 = vpop.f32.mrf.mxu0
      %v4305 = vpop.f32.mrf.mxu0
      %v4306 = vadd.f32 %v4196, %v4305
      %v4307 = vpop.f32.mrf.mxu0
      %4308 = vmatprep.mubr.bf16.mxu0 0
      %4309 = vmatmul.mubr.bf16.gmra.mxu0 %v4239
      %v4310 = vpop.f32.mrf.mxu0
      %v4311 = vadd.f32 %v4196, %v4310
      %v4312 = vpop.f32.mrf.mxu0
      %v4313 = vpop.f32.mrf.mxu0
      %v4314 = vadd.f32 %v4196, %v4313
      %v4315 = vpop.f32.mrf.mxu0
      %4316 = vdwg.mxu0
      %v4317 = vsel %vm416, 1, 0
      %v4318 = vsel %vm417, 1, 0
      %v4319 = vsel %vm418, 1, 0
      %v4320 = vsel %vm419, 1, 0
      %v4321 = vsel %vm420, 1, 0
      %v4322 = vsel %vm421, 1, 0
      %v4323 = vsel %vm422, 1, 0
      %v4324 = vsel %vm423, 1, 0
      %v4325 = vsel %vm424, 1, 0
      %v4326 = vsel %vm425, 1, 0
      %4327 = vset.pattern.permute.xlu0 0
      %4328 = vperm.xlu0 %4327, %v4317
      %v4329 = vpop.permute.xlu0 %4328
      %4330 = vset.pattern.permute.xlu0 0
      %4331 = vperm.xlu0 %4330, %v4318
      %v4332 = vpop.permute.xlu0 %4331
      %4333 = vset.pattern.permute.xlu0 0
      %4334 = vperm.xlu0 %4333, %v4319
      %v4335 = vpop.permute.xlu0 %4334
      %4336 = vset.pattern.permute.xlu0 0
      %4337 = vperm.xlu0 %4336, %v4320
      %v4338 = vpop.permute.xlu0 %4337
      %4339 = vset.pattern.permute.xlu0 0
      %4340 = vperm.xlu0 %4339, %v4321
      %v4341 = vpop.permute.xlu0 %4340
      %4342 = vset.pattern.permute.xlu0 0
      %4343 = vperm.xlu0 %4342, %v4322
      %v4344 = vpop.permute.xlu0 %4343
      %4345 = vset.pattern.permute.xlu0 0
      %4346 = vperm.xlu0 %4345, %v4323
      %v4347 = vpop.permute.xlu0 %4346
      %4348 = vset.pattern.permute.xlu0 0
      %4349 = vperm.xlu0 %4348, %v4324
      %v4350 = vpop.permute.xlu0 %4349
      %4351 = vset.pattern.permute.xlu0 0
      %4352 = vperm.xlu0 %4351, %v4325
      %v4353 = vpop.permute.xlu0 %4352
      %4354 = vset.pattern.permute.xlu0 0
      %4355 = vperm.xlu0 %4354, %v4326
      %v4356 = vpop.permute.xlu0 %4355
      %vm4357 = vcmp.eq.s32.totalorder %v4329, 1
      %vm4358 = vcmp.eq.s32.totalorder %v4332, 1
      %vm4359 = vcmp.eq.s32.totalorder %v4335, 1
      %vm4360 = vcmp.eq.s32.totalorder %v4338, 1
      %vm4361 = vcmp.eq.s32.totalorder %v4341, 1
      %vm4362 = vcmp.eq.s32.totalorder %v4344, 1
      %vm4363 = vcmp.eq.s32.totalorder %v4347, 1
      %vm4364 = vcmp.eq.s32.totalorder %v4350, 1
      %vm4365 = vcmp.eq.s32.totalorder %v4353, 1
      %vm4366 = vcmp.eq.s32.totalorder %v4356, 1
      %v4367 = vsel %vm4357, %v4279, 0.0
      %v4368 = vsel %vm4358, %v4282, 0.0
      %v4369 = vsel %vm4359, %v4287, 0.0
      %v4370 = vsel %vm4360, %v4290, 0.0
      %v4371 = vsel %vm4361, %v4295, 0.0
      %v4372 = vsel %vm4362, %v4298, 0.0
      %v4373 = vsel %vm4363, %v4303, 0.0
      %v4374 = vsel %vm4364, %v4306, 0.0
      %v4375 = vsel %vm4365, %v4311, 0.0
      %v4376 = vsel %vm4366, %v4314, 0.0
      %4377 = vst.msk [vmem:[#allocation4 + $0xb] sm:$0xff] %vm1867, %v4367
      %4378 = vst.msk [vmem:[#allocation4 + $0x13] sm:$0xff] %vm1867, %v4368
      %4379 = vst.msk [vmem:[#allocation4 + $0x1b] sm:$0xff] %vm1867, %v4369
      %4380 = vst.msk [vmem:[#allocation4 + $0x23] sm:$0xff] %vm1867, %v4370
      %4381 = vst.msk [vmem:[#allocation4 + $0x2b] sm:$0xff] %vm1867, %v4371
      %4382 = vst.msk [vmem:[#allocation4 + $0x33] sm:$0xff] %vm1867, %v4372
      %4383 = vst.msk [vmem:[#allocation4 + $0x3b] sm:$0xff] %vm1867, %v4373
      %4384 = vst.msk [vmem:[#allocation4 + $0x43] sm:$0xff] %vm1867, %v4374
      %4385 = vst.msk [vmem:[#allocation4 + $0x4b] sm:$0xff] %vm1867, %v4375
      %4386 = vst.msk [vmem:[#allocation4 + $0x53] sm:$0xff] %vm1867, %v4376
      %v4387 = vld [vmem:[#allocation4] sm:$0xff]
      %v4388 = vld [vmem:[#allocation4 + $0x8] sm:$0xff]
      %v4389 = vld [vmem:[#allocation4 + $0x10] sm:$0xff]
      %v4390 = vld [vmem:[#allocation4 + $0x18] sm:$0xff]
      %v4391 = vld [vmem:[#allocation4 + $0x20] sm:$0xff]
      %v4392 = vld [vmem:[#allocation4 + $0x28] sm:$0xff]
      %v4393 = vld [vmem:[#allocation4 + $0x30] sm:$0xff]
      %v4394 = vld [vmem:[#allocation4 + $0x38] sm:$0xff]
      %v4395 = vld [vmem:[#allocation4 + $0x40] sm:$0xff]
      %v4396 = vld [vmem:[#allocation4 + $0x48] sm:$0xff]
      %v4397 = vld [vmem:[#allocation4 + $0x50] sm:$0xff]
      %v4398 = vld [vmem:[#allocation4 + $0x58] sm:$0xff]
      %v4399 = vld [vmem:[#allocation4 + $0x60] sm:$0xff]
      %v4400 = vmax.f32 %v4387, 0.0
      %v4401 = vmax.f32 %v4388, 0.0
      %v4402 = vmax.f32 %v4389, 0.0
      %v4403 = vmax.f32 %v4390, 0.0
      %v4404 = vmax.f32 %v4391, 0.0
      %v4405 = vmax.f32 %v4392, 0.0
      %v4406 = vmax.f32 %v4393, 0.0
      %v4407 = vmax.f32 %v4394, 0.0
      %v4408 = vmax.f32 %v4395, 0.0
      %v4409 = vmax.f32 %v4396, 0.0
      %v4410 = vmax.f32 %v4397, 0.0
      %v4411 = vmax.f32 %v4398, 0.0
      %v4412 = vmax.f32 %v4399, 0.0
      %v4424 = vrot.slane %v4400, 1
      %v4425 = vrot.slane %v4401, 1
      %v4426 = vsel %vm510, %v4424, %v4425
      %v4427 = vrot.slane %v4402, 1
      %v4428 = vsel %vm510, %v4425, %v4427
      %v4429 = vrot.slane %v4403, 1
      %v4430 = vsel %vm510, %v4427, %v4429
      %v4431 = vrot.slane %v4404, 1
      %v4432 = vsel %vm510, %v4429, %v4431
      %v4433 = vrot.slane %v4405, 1
      %v4434 = vsel %vm510, %v4431, %v4433
      %v4435 = vrot.slane %v4406, 1
      %v4436 = vsel %vm510, %v4433, %v4435
      %v4437 = vrot.slane %v4407, 1
      %v4438 = vsel %vm510, %v4435, %v4437
      %v4439 = vrot.slane %v4408, 1
      %v4440 = vsel %vm510, %v4437, %v4439
      %v4441 = vrot.slane %v4409, 1
      %v4442 = vsel %vm510, %v4439, %v4441
      %v4443 = vrot.slane %v4410, 1
      %v4444 = vsel %vm510, %v4441, %v4443
      %4445 = vrot.lane.b32.xlu0 %v4426, 8
      %v4446 = vpop.permute.xlu0 %4445
      %4447 = vrot.lane.b32.xlu0 %v4428, 8
      %v4448 = vpop.permute.xlu0 %4447
      %4449 = vrot.lane.b32.xlu0 %v4430, 8
      %v4450 = vpop.permute.xlu0 %4449
      %4451 = vrot.lane.b32.xlu0 %v4432, 8
      %v4452 = vpop.permute.xlu0 %4451
      %4453 = vrot.lane.b32.xlu0 %v4434, 8
      %v4454 = vpop.permute.xlu0 %4453
      %4455 = vrot.lane.b32.xlu0 %v4436, 8
      %v4456 = vpop.permute.xlu0 %4455
      %4457 = vrot.lane.b32.xlu0 %v4438, 8
      %v4458 = vpop.permute.xlu0 %4457
      %4459 = vrot.lane.b32.xlu0 %v4440, 8
      %v4460 = vpop.permute.xlu0 %4459
      %4461 = vrot.lane.b32.xlu0 %v4442, 8
      %v4462 = vpop.permute.xlu0 %4461
      %4463 = vrot.lane.b32.xlu0 %v4444, 8
      %v4464 = vpop.permute.xlu0 %4463
      %v4475 = vrot.slane %v4400, 2
      %v4476 = vrot.slane %v4401, 2
      %v4477 = vsel %vm692, %v4475, %v4476
      %v4478 = vrot.slane %v4402, 2
      %v4479 = vsel %vm692, %v4476, %v4478
      %v4480 = vrot.slane %v4403, 2
      %v4481 = vsel %vm692, %v4478, %v4480
      %v4482 = vrot.slane %v4404, 2
      %v4483 = vsel %vm692, %v4480, %v4482
      %v4484 = vrot.slane %v4405, 2
      %v4485 = vsel %vm692, %v4482, %v4484
      %v4486 = vrot.slane %v4406, 2
      %v4487 = vsel %vm692, %v4484, %v4486
      %v4488 = vrot.slane %v4407, 2
      %v4489 = vsel %vm692, %v4486, %v4488
      %v4490 = vrot.slane %v4408, 2
      %v4491 = vsel %vm692, %v4488, %v4490
      %v4492 = vrot.slane %v4409, 2
      %v4493 = vsel %vm692, %v4490, %v4492
      %v4494 = vrot.slane %v4410, 2
      %v4495 = vsel %vm692, %v4492, %v4494
      %4496 = vrot.lane.b32.xlu0 %v4477, 16
      %v4497 = vpop.permute.xlu0 %4496
      %4498 = vrot.lane.b32.xlu0 %v4479, 16
      %v4499 = vpop.permute.xlu0 %4498
      %4500 = vrot.lane.b32.xlu0 %v4481, 16
      %v4501 = vpop.permute.xlu0 %4500
      %4502 = vrot.lane.b32.xlu0 %v4483, 16
      %v4503 = vpop.permute.xlu0 %4502
      %4504 = vrot.lane.b32.xlu0 %v4485, 16
      %v4505 = vpop.permute.xlu0 %4504
      %4506 = vrot.lane.b32.xlu0 %v4487, 16
      %v4507 = vpop.permute.xlu0 %4506
      %4508 = vrot.lane.b32.xlu0 %v4489, 16
      %v4509 = vpop.permute.xlu0 %4508
      %4510 = vrot.lane.b32.xlu0 %v4491, 16
      %v4511 = vpop.permute.xlu0 %4510
      %4512 = vrot.lane.b32.xlu0 %v4493, 16
      %v4513 = vpop.permute.xlu0 %4512
      %4514 = vrot.lane.b32.xlu0 %v4495, 16
      %v4515 = vpop.permute.xlu0 %4514
      %v4527 = vrot.slane %v4411, 2
      %v4528 = vsel %vm692, %v4494, %v4527
      %4529 = vrot.lane.b32.xlu0 %v4479, 24
      %v4530 = vpop.permute.xlu0 %4529
      %4531 = vrot.lane.b32.xlu0 %v4481, 24
      %v4532 = vpop.permute.xlu0 %4531
      %4533 = vrot.lane.b32.xlu0 %v4483, 24
      %v4534 = vpop.permute.xlu0 %4533
      %4535 = vrot.lane.b32.xlu0 %v4485, 24
      %v4536 = vpop.permute.xlu0 %4535
      %4537 = vrot.lane.b32.xlu0 %v4487, 24
      %v4538 = vpop.permute.xlu0 %4537
      %4539 = vrot.lane.b32.xlu0 %v4489, 24
      %v4540 = vpop.permute.xlu0 %4539
      %4541 = vrot.lane.b32.xlu0 %v4491, 24
      %v4542 = vpop.permute.xlu0 %4541
      %4543 = vrot.lane.b32.xlu0 %v4493, 24
      %v4544 = vpop.permute.xlu0 %4543
      %4545 = vrot.lane.b32.xlu0 %v4495, 24
      %v4546 = vpop.permute.xlu0 %4545
      %4547 = vrot.lane.b32.xlu0 %v4528, 24
      %v4548 = vpop.permute.xlu0 %4547
      %v4559 = vrot.slane %v4401, 3
      %v4560 = vrot.slane %v4402, 3
      %v4561 = vsel %vm988, %v4559, %v4560
      %v4562 = vrot.slane %v4403, 3
      %v4563 = vsel %vm988, %v4560, %v4562
      %v4564 = vrot.slane %v4404, 3
      %v4565 = vsel %vm988, %v4562, %v4564
      %v4566 = vrot.slane %v4405, 3
      %v4567 = vsel %vm988, %v4564, %v4566
      %v4568 = vrot.slane %v4406, 3
      %v4569 = vsel %vm988, %v4566, %v4568
      %v4570 = vrot.slane %v4407, 3
      %v4571 = vsel %vm988, %v4568, %v4570
      %v4572 = vrot.slane %v4408, 3
      %v4573 = vsel %vm988, %v4570, %v4572
      %v4574 = vrot.slane %v4409, 3
      %v4575 = vsel %vm988, %v4572, %v4574
      %v4576 = vrot.slane %v4410, 3
      %v4577 = vsel %vm988, %v4574, %v4576
      %v4578 = vrot.slane %v4411, 3
      %v4579 = vsel %vm988, %v4576, %v4578
      %4580 = vrot.lane.b32.xlu0 %v4561, 32
      %v4581 = vpop.permute.xlu0 %4580
      %4582 = vrot.lane.b32.xlu0 %v4563, 32
      %v4583 = vpop.permute.xlu0 %4582
      %4584 = vrot.lane.b32.xlu0 %v4565, 32
      %v4585 = vpop.permute.xlu0 %4584
      %4586 = vrot.lane.b32.xlu0 %v4567, 32
      %v4587 = vpop.permute.xlu0 %4586
      %4588 = vrot.lane.b32.xlu0 %v4569, 32
      %v4589 = vpop.permute.xlu0 %4588
      %4590 = vrot.lane.b32.xlu0 %v4571, 32
      %v4591 = vpop.permute.xlu0 %4590
      %4592 = vrot.lane.b32.xlu0 %v4573, 32
      %v4593 = vpop.permute.xlu0 %4592
      %4594 = vrot.lane.b32.xlu0 %v4575, 32
      %v4595 = vpop.permute.xlu0 %4594
      %4596 = vrot.lane.b32.xlu0 %v4577, 32
      %v4597 = vpop.permute.xlu0 %4596
      %4598 = vrot.lane.b32.xlu0 %v4579, 32
      %v4599 = vpop.permute.xlu0 %4598
      %v4610 = vrot.slane %v4401, 4
      %v4611 = vrot.slane %v4402, 4
      %v4612 = vsel %vm1170, %v4610, %v4611
      %v4613 = vrot.slane %v4403, 4
      %v4614 = vsel %vm1170, %v4611, %v4613
      %v4615 = vrot.slane %v4404, 4
      %v4616 = vsel %vm1170, %v4613, %v4615
      %v4617 = vrot.slane %v4405, 4
      %v4618 = vsel %vm1170, %v4615, %v4617
      %v4619 = vrot.slane %v4406, 4
      %v4620 = vsel %vm1170, %v4617, %v4619
      %v4621 = vrot.slane %v4407, 4
      %v4622 = vsel %vm1170, %v4619, %v4621
      %v4623 = vrot.slane %v4408, 4
      %v4624 = vsel %vm1170, %v4621, %v4623
      %v4625 = vrot.slane %v4409, 4
      %v4626 = vsel %vm1170, %v4623, %v4625
      %v4627 = vrot.slane %v4410, 4
      %v4628 = vsel %vm1170, %v4625, %v4627
      %v4629 = vrot.slane %v4411, 4
      %v4630 = vsel %vm1170, %v4627, %v4629
      %4631 = vrot.lane.b32.xlu0 %v4612, 40
      %v4632 = vpop.permute.xlu0 %4631
      %4633 = vrot.lane.b32.xlu0 %v4614, 40
      %v4634 = vpop.permute.xlu0 %4633
      %4635 = vrot.lane.b32.xlu0 %v4616, 40
      %v4636 = vpop.permute.xlu0 %4635
      %4637 = vrot.lane.b32.xlu0 %v4618, 40
      %v4638 = vpop.permute.xlu0 %4637
      %4639 = vrot.lane.b32.xlu0 %v4620, 40
      %v4640 = vpop.permute.xlu0 %4639
      %4641 = vrot.lane.b32.xlu0 %v4622, 40
      %v4642 = vpop.permute.xlu0 %4641
      %4643 = vrot.lane.b32.xlu0 %v4624, 40
      %v4644 = vpop.permute.xlu0 %4643
      %4645 = vrot.lane.b32.xlu0 %v4626, 40
      %v4646 = vpop.permute.xlu0 %4645
      %4647 = vrot.lane.b32.xlu0 %v4628, 40
      %v4648 = vpop.permute.xlu0 %4647
      %4649 = vrot.lane.b32.xlu0 %v4630, 40
      %v4650 = vpop.permute.xlu0 %4649
      %v4662 = vrot.slane %v4412, 4
      %v4663 = vsel %vm1170, %v4629, %v4662
      %4664 = vrot.lane.b32.xlu0 %v4614, 48
      %v4665 = vpop.permute.xlu0 %4664
      %4666 = vrot.lane.b32.xlu0 %v4616, 48
      %v4667 = vpop.permute.xlu0 %4666
      %4668 = vrot.lane.b32.xlu0 %v4618, 48
      %v4669 = vpop.permute.xlu0 %4668
      %4670 = vrot.lane.b32.xlu0 %v4620, 48
      %v4671 = vpop.permute.xlu0 %4670
      %4672 = vrot.lane.b32.xlu0 %v4622, 48
      %v4673 = vpop.permute.xlu0 %4672
      %4674 = vrot.lane.b32.xlu0 %v4624, 48
      %v4675 = vpop.permute.xlu0 %4674
      %4676 = vrot.lane.b32.xlu0 %v4626, 48
      %v4677 = vpop.permute.xlu0 %4676
      %4678 = vrot.lane.b32.xlu0 %v4628, 48
      %v4679 = vpop.permute.xlu0 %4678
      %4680 = vrot.lane.b32.xlu0 %v4630, 48
      %v4681 = vpop.permute.xlu0 %4680
      %4682 = vrot.lane.b32.xlu0 %v4663, 48
      %v4683 = vpop.permute.xlu0 %4682
      %v4694 = vrot.slane %v4402, 5
      %v4695 = vrot.slane %v4403, 5
      %v4696 = vsel %vm1466, %v4694, %v4695
      %v4697 = vrot.slane %v4404, 5
      %v4698 = vsel %vm1466, %v4695, %v4697
      %v4699 = vrot.slane %v4405, 5
      %v4700 = vsel %vm1466, %v4697, %v4699
      %v4701 = vrot.slane %v4406, 5
      %v4702 = vsel %vm1466, %v4699, %v4701
      %v4703 = vrot.slane %v4407, 5
      %v4704 = vsel %vm1466, %v4701, %v4703
      %v4705 = vrot.slane %v4408, 5
      %v4706 = vsel %vm1466, %v4703, %v4705
      %v4707 = vrot.slane %v4409, 5
      %v4708 = vsel %vm1466, %v4705, %v4707
      %v4709 = vrot.slane %v4410, 5
      %v4710 = vsel %vm1466, %v4707, %v4709
      %v4711 = vrot.slane %v4411, 5
      %v4712 = vsel %vm1466, %v4709, %v4711
      %v4713 = vrot.slane %v4412, 5
      %v4714 = vsel %vm1466, %v4711, %v4713
      %4715 = vrot.lane.b32.xlu0 %v4696, 56
      %v4716 = vpop.permute.xlu0 %4715
      %4717 = vrot.lane.b32.xlu0 %v4698, 56
      %v4718 = vpop.permute.xlu0 %4717
      %4719 = vrot.lane.b32.xlu0 %v4700, 56
      %v4720 = vpop.permute.xlu0 %4719
      %4721 = vrot.lane.b32.xlu0 %v4702, 56
      %v4722 = vpop.permute.xlu0 %4721
      %4723 = vrot.lane.b32.xlu0 %v4704, 56
      %v4724 = vpop.permute.xlu0 %4723
      %4725 = vrot.lane.b32.xlu0 %v4706, 56
      %v4726 = vpop.permute.xlu0 %4725
      %4727 = vrot.lane.b32.xlu0 %v4708, 56
      %v4728 = vpop.permute.xlu0 %4727
      %4729 = vrot.lane.b32.xlu0 %v4710, 56
      %v4730 = vpop.permute.xlu0 %4729
      %4731 = vrot.lane.b32.xlu0 %v4712, 56
      %v4732 = vpop.permute.xlu0 %4731
      %4733 = vrot.lane.b32.xlu0 %v4714, 56
      %v4734 = vpop.permute.xlu0 %4733
      %v4745 = vrot.slane %v4402, 6
      %v4746 = vrot.slane %v4403, 6
      %v4747 = vsel %vm1648, %v4745, %v4746
      %v4748 = vrot.slane %v4404, 6
      %v4749 = vsel %vm1648, %v4746, %v4748
      %v4750 = vrot.slane %v4405, 6
      %v4751 = vsel %vm1648, %v4748, %v4750
      %v4752 = vrot.slane %v4406, 6
      %v4753 = vsel %vm1648, %v4750, %v4752
      %v4754 = vrot.slane %v4407, 6
      %v4755 = vsel %vm1648, %v4752, %v4754
      %v4756 = vrot.slane %v4408, 6
      %v4757 = vsel %vm1648, %v4754, %v4756
      %v4758 = vrot.slane %v4409, 6
      %v4759 = vsel %vm1648, %v4756, %v4758
      %v4760 = vrot.slane %v4410, 6
      %v4761 = vsel %vm1648, %v4758, %v4760
      %v4762 = vrot.slane %v4411, 6
      %v4763 = vsel %vm1648, %v4760, %v4762
      %v4764 = vrot.slane %v4412, 6
      %v4765 = vsel %vm1648, %v4762, %v4764
      %4766 = vrot.lane.b32.xlu0 %v4747, 64
      %v4767 = vpop.permute.xlu0 %4766
      %4768 = vrot.lane.b32.xlu0 %v4749, 64
      %v4769 = vpop.permute.xlu0 %4768
      %4770 = vrot.lane.b32.xlu0 %v4751, 64
      %v4771 = vpop.permute.xlu0 %4770
      %4772 = vrot.lane.b32.xlu0 %v4753, 64
      %v4773 = vpop.permute.xlu0 %4772
      %4774 = vrot.lane.b32.xlu0 %v4755, 64
      %v4775 = vpop.permute.xlu0 %4774
      %4776 = vrot.lane.b32.xlu0 %v4757, 64
      %v4777 = vpop.permute.xlu0 %4776
      %4778 = vrot.lane.b32.xlu0 %v4759, 64
      %v4779 = vpop.permute.xlu0 %4778
      %4780 = vrot.lane.b32.xlu0 %v4761, 64
      %v4781 = vpop.permute.xlu0 %4780
      %4782 = vrot.lane.b32.xlu0 %v4763, 64
      %v4783 = vpop.permute.xlu0 %4782
      %4784 = vrot.lane.b32.xlu0 %v4765, 64
      %v4785 = vpop.permute.xlu0 %4784
      %v4796 = vsel %vm1867, %v4400, %v4446
      %v4797 = vsel %vm1867, %v4401, %v4448
      %v4798 = vsel %vm1867, %v4402, %v4450
      %v4799 = vsel %vm1867, %v4403, %v4452
      %v4800 = vsel %vm1867, %v4404, %v4454
      %v4801 = vsel %vm1867, %v4405, %v4456
      %v4802 = vsel %vm1867, %v4406, %v4458
      %v4803 = vsel %vm1867, %v4407, %v4460
      %v4804 = vsel %vm1867, %v4408, %v4462
      %v4805 = vsel %vm1867, %v4409, %v4464
      %v4806 = vsel %vm1941, %v4796, %v4497
      %v4807 = vsel %vm1941, %v4797, %v4499
      %v4808 = vsel %vm1941, %v4798, %v4501
      %v4809 = vsel %vm1941, %v4799, %v4503
      %v4810 = vsel %vm1941, %v4800, %v4505
      %v4811 = vsel %vm1941, %v4801, %v4507
      %v4812 = vsel %vm1941, %v4802, %v4509
      %v4813 = vsel %vm1941, %v4803, %v4511
      %v4814 = vsel %vm1941, %v4804, %v4513
      %v4815 = vsel %vm1941, %v4805, %v4515
      %v4816 = vsel %vm2015, %v4806, %v4530
      %v4817 = vsel %vm2015, %v4807, %v4532
      %v4818 = vsel %vm2015, %v4808, %v4534
      %v4819 = vsel %vm2015, %v4809, %v4536
      %v4820 = vsel %vm2015, %v4810, %v4538
      %v4821 = vsel %vm2015, %v4811, %v4540
      %v4822 = vsel %vm2015, %v4812, %v4542
      %v4823 = vsel %vm2015, %v4813, %v4544
      %v4824 = vsel %vm2015, %v4814, %v4546
      %v4825 = vsel %vm2015, %v4815, %v4548
      %v4826 = vsel %vm2089, %v4816, %v4581
      %v4827 = vsel %vm2089, %v4817, %v4583
      %v4828 = vsel %vm2089, %v4818, %v4585
      %v4829 = vsel %vm2089, %v4819, %v4587
      %v4830 = vsel %vm2089, %v4820, %v4589
      %v4831 = vsel %vm2089, %v4821, %v4591
      %v4832 = vsel %vm2089, %v4822, %v4593
      %v4833 = vsel %vm2089, %v4823, %v4595
      %v4834 = vsel %vm2089, %v4824, %v4597
      %v4835 = vsel %vm2089, %v4825, %v4599
      %v4836 = vsel %vm4143, %v4826, %v4632
      %v4837 = vsel %vm4143, %v4827, %v4634
      %v4838 = vsel %vm4143, %v4828, %v4636
      %v4839 = vsel %vm4143, %v4829, %v4638
      %v4840 = vsel %vm4143, %v4830, %v4640
      %v4841 = vsel %vm4143, %v4831, %v4642
      %v4842 = vsel %vm4143, %v4832, %v4644
      %v4843 = vsel %vm4143, %v4833, %v4646
      %v4844 = vsel %vm4143, %v4834, %v4648
      %v4845 = vsel %vm4143, %v4835, %v4650
      %v4846 = vsel %vm4154, %v4836, %v4665
      %v4847 = vsel %vm4154, %v4837, %v4667
      %v4848 = vsel %vm4154, %v4838, %v4669
      %v4849 = vsel %vm4154, %v4839, %v4671
      %v4850 = vsel %vm4154, %v4840, %v4673
      %v4851 = vsel %vm4154, %v4841, %v4675
      %v4852 = vsel %vm4154, %v4842, %v4677
      %v4853 = vsel %vm4154, %v4843, %v4679
      %v4854 = vsel %vm4154, %v4844, %v4681
      %v4855 = vsel %vm4154, %v4845, %v4683
      %v4856 = vsel %vm4165, %v4846, %v4716
      %v4857 = vsel %vm4165, %v4847, %v4718
      %v4858 = vsel %vm4165, %v4848, %v4720
      %v4859 = vsel %vm4165, %v4849, %v4722
      %v4860 = vsel %vm4165, %v4850, %v4724
      %v4861 = vsel %vm4165, %v4851, %v4726
      %v4862 = vsel %vm4165, %v4852, %v4728
      %v4863 = vsel %vm4165, %v4853, %v4730
      %v4864 = vsel %vm4165, %v4854, %v4732
      %v4865 = vsel %vm4165, %v4855, %v4734
      %v4866 = vsel %vm4176, %v4856, %v4767
      %v4867 = vsel %vm4176, %v4857, %v4769
      %v4868 = vsel %vm4176, %v4858, %v4771
      %v4869 = vsel %vm4176, %v4859, %v4773
      %v4870 = vsel %vm4176, %v4860, %v4775
      %v4871 = vsel %vm4176, %v4861, %v4777
      %v4872 = vsel %vm4176, %v4862, %v4779
      %v4873 = vsel %vm4176, %v4863, %v4781
      %v4874 = vsel %vm4176, %v4864, %v4783
      %v4875 = vsel %vm4176, %v4865, %v4785
      %v4876 = vpack.c.bf16 %v4867, %v4866
      %v4877 = vpack.c.bf16 %v4869, %v4868
      %v4878 = vpack.c.bf16 %v4871, %v4870
      %v4879 = vpack.c.bf16 %v4873, %v4872
      %v4880 = vpack.c.bf16 %v4875, %v4874
      %v4882 = vlaneseq
      %v4883 = vshrl.u32 %v4882, 7
      %v4884 = vsub.s32 0, %v4883
      %v4885 = vrot.slane %v3693, %v4884
      %v4896 = vunpack.c.l.b16 %v3683
      %v4897 = vunpack.c.l.b16 %v3684
      %v4898 = vunpack.c.l.b16 %v3685
      %v4899 = vunpack.c.l.b16 %v3686
      %v4900 = vunpack.c.l.b16 %v3687
      %v4901 = vunpack.c.l.b16 %v3688
      %v4902 = vunpack.c.l.b16 %v3689
      %v4903 = vunpack.c.l.b16 %v3690
      %v4904 = vunpack.c.l.b16 %v3691
      %v4905 = vpack.c.b16 %v4897, %v4896
      %v4906 = vpack.c.b16 %v4899, %v4898
      %v4907 = vpack.c.b16 %v4901, %v4900
      %v4908 = vpack.c.b16 %v4903, %v4902
      %v4909 = vpack.c.b16 %v4904, %v4904
      %v4915 = vsel %vm4225, %v4876, 0
      %v4918 = vsel %vm4225, %v4877, 0
      %v4921 = vsel %vm4225, %v4878, 0
      %v4924 = vsel %vm4225, %v4879, 0
      %v4927 = vsel %vm4225, %v4880, 0
      %v4930 = vsel %vm1170, %v4909, 0
      %4932 = vmatprep.subr.bf16.mxu0 0
      %4933 = vmatpush1.bf16.msra.mxu0 0
      %4934 = vmatprep.subr.bf16.mxu0 0
      %4935 = vmatpush1.bf16.msra.mxu0 0
      %4936 = vmatprep.subr.bf16.mxu0 0
      %4937 = vmatpush1.bf16.msra.mxu0 0
      %4938 = vmatprep.subr.bf16.mxu0 0
      %4939 = vmatpush1.bf16.msra.mxu0 %v4930
      %4940 = vmatprep.subr.bf16.mxu0 0
      %4941 = vmatpush1.bf16.msra.mxu0 %v4908
      %4942 = vmatprep.subr.bf16.mxu0 0
      %4943 = vmatpush1.bf16.msra.mxu0 %v4907
      %4944 = vmatprep.subr.bf16.mxu0 0
      %4945 = vmatpush1.bf16.msra.mxu0 %v4906
      %4946 = vmatprep.subr.bf16.mxu0 0
      %4947 = vmatpush1.bf16.msra.mxu0 %v4905
      %4948 = vmatprep.subr.bf16.mxu0 0
      %4949 = vmatpush2.bf16.msra.mxu0 0
      %4950 = vmatprep.subr.bf16.mxu0 0
      %4951 = vmatpush2.bf16.msra.mxu0 0
      %4952 = vmatprep.subr.bf16.mxu0 0
      %4953 = vmatpush2.bf16.msra.mxu0 0
      %4954 = vmatprep.subr.bf16.mxu0 0
      %4955 = vmatpush2.bf16.msra.mxu0 0
      %4956 = vmatprep.subr.bf16.mxu0 0
      %4957 = vmatpush2.bf16.msra.mxu0 0
      %4958 = vmatprep.subr.bf16.mxu0 0
      %4959 = vmatpush2.bf16.msra.mxu0 0
      %4960 = vmatprep.subr.bf16.mxu0 0
      %4961 = vmatpush2.bf16.msra.mxu0 0
      %4962 = vmatprep.subr.bf16.mxu0 0
      %4963 = vmatpush2.bf16.msra.mxu0 0
      %4964 = vmatprep.mubr.bf16.mxu0 0
      %4965 = vmatmul.mubr.bf16.gmra.mxu0 %v4915
      %v4966 = vpop.f32.mrf.mxu0
      %v4967 = vadd.f32 %v4885, %v4966
      %v4968 = vpop.f32.mrf.mxu0
      %v4969 = vpop.f32.mrf.mxu0
      %v4970 = vadd.f32 %v4885, %v4969
      %v4971 = vpop.f32.mrf.mxu0
      %4972 = vmatprep.mubr.bf16.mxu0 0
      %4973 = vmatmul.mubr.bf16.gmra.mxu0 %v4918
      %v4974 = vpop.f32.mrf.mxu0
      %v4975 = vadd.f32 %v4885, %v4974
      %v4976 = vpop.f32.mrf.mxu0
      %v4977 = vpop.f32.mrf.mxu0
      %v4978 = vadd.f32 %v4885, %v4977
      %v4979 = vpop.f32.mrf.mxu0
      %4980 = vmatprep.mubr.bf16.mxu0 0
      %4981 = vmatmul.mubr.bf16.gmra.mxu0 %v4921
      %v4982 = vpop.f32.mrf.mxu0
      %v4983 = vadd.f32 %v4885, %v4982
      %v4984 = vpop.f32.mrf.mxu0
      %v4985 = vpop.f32.mrf.mxu0
      %v4986 = vadd.f32 %v4885, %v4985
      %v4987 = vpop.f32.mrf.mxu0
      %4988 = vmatprep.mubr.bf16.mxu0 0
      %4989 = vmatmul.mubr.bf16.gmra.mxu0 %v4924
      %v4990 = vpop.f32.mrf.mxu0
      %v4991 = vadd.f32 %v4885, %v4990
      %v4992 = vpop.f32.mrf.mxu0
      %v4993 = vpop.f32.mrf.mxu0
      %v4994 = vadd.f32 %v4885, %v4993
      %v4995 = vpop.f32.mrf.mxu0
      %4996 = vmatprep.mubr.bf16.mxu0 0
      %4997 = vmatmul.mubr.bf16.gmra.mxu0 %v4927
      %v4998 = vpop.f32.mrf.mxu0
      %v4999 = vadd.f32 %v4885, %v4998
      %v5000 = vpop.f32.mrf.mxu0
      %v5001 = vpop.f32.mrf.mxu0
      %v5002 = vadd.f32 %v4885, %v5001
      %v5003 = vpop.f32.mrf.mxu0
      %5004 = vdwg.mxu0
      %v5016 = vrot.slane %v3695, 3
      %v5017 = vrot.slane %v3696, 3
      %v5018 = vsel %vm988, %v5016, %v5017
      %v5019 = vrot.slane %v3697, 3
      %v5020 = vsel %vm988, %v5017, %v5019
      %v5021 = vrot.slane %v3698, 3
      %v5022 = vsel %vm988, %v5019, %v5021
      %v5023 = vrot.slane %v3699, 3
      %v5024 = vsel %vm988, %v5021, %v5023
      %v5025 = vrot.slane %v3700, 3
      %v5026 = vsel %vm988, %v5023, %v5025
      %v5027 = vrot.slane %v3701, 3
      %v5028 = vsel %vm988, %v5025, %v5027
      %v5029 = vrot.slane %v3702, 3
      %v5030 = vsel %vm988, %v5027, %v5029
      %v5031 = vrot.slane %v3703, 3
      %v5032 = vsel %vm988, %v5029, %v5031
      %v5033 = vrot.slane %v3704, 3
      %v5034 = vsel %vm988, %v5031, %v5033
      %v5035 = vrot.slane %v3705, 3
      %v5036 = vsel %vm988, %v5033, %v5035
      %v5047 = vadd.f32 %v4967, %v5018
      %v5048 = vadd.f32 %v4970, %v5020
      %v5049 = vadd.f32 %v4975, %v5022
      %v5050 = vadd.f32 %v4978, %v5024
      %v5051 = vadd.f32 %v4983, %v5026
      %v5052 = vadd.f32 %v4986, %v5028
      %v5053 = vadd.f32 %v4991, %v5030
      %v5054 = vadd.f32 %v4994, %v5032
      %v5055 = vadd.f32 %v4999, %v5034
      %v5056 = vadd.f32 %v5002, %v5036
      %v5057 = vsel %vm4357, %v5047, 0.0
      %v5058 = vsel %vm4358, %v5048, 0.0
      %v5059 = vsel %vm4359, %v5049, 0.0
      %v5060 = vsel %vm4360, %v5050, 0.0
      %v5061 = vsel %vm4361, %v5051, 0.0
      %v5062 = vsel %vm4362, %v5052, 0.0
      %v5063 = vsel %vm4363, %v5053, 0.0
      %v5064 = vsel %vm4364, %v5054, 0.0
      %v5065 = vsel %vm4365, %v5055, 0.0
      %v5066 = vsel %vm4366, %v5056, 0.0
      %5067 = vst.msk [vmem:[#allocation3 + $0xb] sm:$0xff] %vm1867, %v5057
      %5068 = vst.msk [vmem:[#allocation3 + $0x13] sm:$0xff] %vm1867, %v5058
      %5069 = vst.msk [vmem:[#allocation3 + $0x1b] sm:$0xff] %vm1867, %v5059
      %5070 = vst.msk [vmem:[#allocation3 + $0x23] sm:$0xff] %vm1867, %v5060
      %5071 = vst.msk [vmem:[#allocation3 + $0x2b] sm:$0xff] %vm1867, %v5061
      %5072 = vst.msk [vmem:[#allocation3 + $0x33] sm:$0xff] %vm1867, %v5062
      %5073 = vst.msk [vmem:[#allocation3 + $0x3b] sm:$0xff] %vm1867, %v5063
      %5074 = vst.msk [vmem:[#allocation3 + $0x43] sm:$0xff] %vm1867, %v5064
      %5075 = vst.msk [vmem:[#allocation3 + $0x4b] sm:$0xff] %vm1867, %v5065
      %5076 = vst.msk [vmem:[#allocation3 + $0x53] sm:$0xff] %vm1867, %v5066
      %s5077 = scalar_lea.vmem %s3, 72
      %v5078 = vld [vmem:[%s5077] sm:$0xf]
      %v5079 = vld [vmem:[%s5077 + $0x4] sm:$0xf]
      %v5080 = vld [vmem:[%s5077 + $0x8] sm:$0xf]
      %v5081 = vld [vmem:[%s5077 + $0xc] sm:$0xf]
      %v5082 = vld [vmem:[%s5077 + $0x10] sm:$0xf]
      %v5083 = vld [vmem:[%s5077 + $0x14] sm:$0xf]
      %v5084 = vld [vmem:[%s5077 + $0x18] sm:$0xf]
      %v5085 = vld [vmem:[%s5077 + $0x1c] sm:$0xf]
      %v5086 = vld [vmem:[%s5077 + $0x20] sm:$0xf]
      %s5087 = scalar_lea.vmem %s4, 2
      %v5088 = vld [vmem:[%s5087] sm:$0x1]
      %s5089 = scalar_lea.vmem %s3, 108
      %v5090 = vld [vmem:[%s5089] sm:$0xf]
      %v5091 = vld [vmem:[%s5089 + $0x4] sm:$0xf]
      %v5092 = vld [vmem:[%s5089 + $0x8] sm:$0xf]
      %v5093 = vld [vmem:[%s5089 + $0xc] sm:$0xf]
      %v5094 = vld [vmem:[%s5089 + $0x10] sm:$0xf]
      %v5095 = vld [vmem:[%s5089 + $0x14] sm:$0xf]
      %v5096 = vld [vmem:[%s5089 + $0x18] sm:$0xf]
      %v5097 = vld [vmem:[%s5089 + $0x1c] sm:$0xf]
      %v5098 = vld [vmem:[%s5089 + $0x20] sm:$0xf]
      %s5099 = scalar_lea.vmem %s4, 3
      %v5100 = vld [vmem:[%s5099] sm:$0x1]
      %v5101 = vld [vmem:[#allocation3] sm:$0xff]
      %v5102 = vld [vmem:[#allocation3 + $0x8] sm:$0xff]
      %v5103 = vld [vmem:[#allocation3 + $0x10] sm:$0xff]
      %v5104 = vld [vmem:[#allocation3 + $0x18] sm:$0xff]
      %v5105 = vld [vmem:[#allocation3 + $0x20] sm:$0xff]
      %v5106 = vld [vmem:[#allocation3 + $0x28] sm:$0xff]
      %v5107 = vld [vmem:[#allocation3 + $0x30] sm:$0xff]
      %v5108 = vld [vmem:[#allocation3 + $0x38] sm:$0xff]
      %v5109 = vld [vmem:[#allocation3 + $0x40] sm:$0xff]
      %v5110 = vld [vmem:[#allocation3 + $0x48] sm:$0xff]
      %v5111 = vld [vmem:[#allocation3 + $0x50] sm:$0xff]
      %v5112 = vld [vmem:[#allocation3 + $0x58] sm:$0xff]
      %v5113 = vld [vmem:[#allocation3 + $0x60] sm:$0xff]
      %v5114 = vmax.f32 %v5101, 0.0
      %v5115 = vmax.f32 %v5102, 0.0
      %v5116 = vmax.f32 %v5103, 0.0
      %v5117 = vmax.f32 %v5104, 0.0
      %v5118 = vmax.f32 %v5105, 0.0
      %v5119 = vmax.f32 %v5106, 0.0
      %v5120 = vmax.f32 %v5107, 0.0
      %v5121 = vmax.f32 %v5108, 0.0
      %v5122 = vmax.f32 %v5109, 0.0
      %v5123 = vmax.f32 %v5110, 0.0
      %v5124 = vmax.f32 %v5111, 0.0
      %v5125 = vmax.f32 %v5112, 0.0
      %v5126 = vmax.f32 %v5113, 0.0
      %v5138 = vrot.slane %v5114, 1
      %v5139 = vrot.slane %v5115, 1
      %v5140 = vsel %vm510, %v5138, %v5139
      %v5141 = vrot.slane %v5116, 1
      %v5142 = vsel %vm510, %v5139, %v5141
      %v5143 = vrot.slane %v5117, 1
      %v5144 = vsel %vm510, %v5141, %v5143
      %v5145 = vrot.slane %v5118, 1
      %v5146 = vsel %vm510, %v5143, %v5145
      %v5147 = vrot.slane %v5119, 1
      %v5148 = vsel %vm510, %v5145, %v5147
      %v5149 = vrot.slane %v5120, 1
      %v5150 = vsel %vm510, %v5147, %v5149
      %v5151 = vrot.slane %v5121, 1
      %v5152 = vsel %vm510, %v5149, %v5151
      %v5153 = vrot.slane %v5122, 1
      %v5154 = vsel %vm510, %v5151, %v5153
      %v5155 = vrot.slane %v5123, 1
      %v5156 = vsel %vm510, %v5153, %v5155
      %v5157 = vrot.slane %v5124, 1
      %v5158 = vsel %vm510, %v5155, %v5157
      %5159 = vrot.lane.b32.xlu0 %v5140, 8
      %v5160 = vpop.permute.xlu0 %5159
      %5161 = vrot.lane.b32.xlu0 %v5142, 8
      %v5162 = vpop.permute.xlu0 %5161
      %5163 = vrot.lane.b32.xlu0 %v5144, 8
      %v5164 = vpop.permute.xlu0 %5163
      %5165 = vrot.lane.b32.xlu0 %v5146, 8
      %v5166 = vpop.permute.xlu0 %5165
      %5167 = vrot.lane.b32.xlu0 %v5148, 8
      %v5168 = vpop.permute.xlu0 %5167
      %5169 = vrot.lane.b32.xlu0 %v5150, 8
      %v5170 = vpop.permute.xlu0 %5169
      %5171 = vrot.lane.b32.xlu0 %v5152, 8
      %v5172 = vpop.permute.xlu0 %5171
      %5173 = vrot.lane.b32.xlu0 %v5154, 8
      %v5174 = vpop.permute.xlu0 %5173
      %5175 = vrot.lane.b32.xlu0 %v5156, 8
      %v5176 = vpop.permute.xlu0 %5175
      %5177 = vrot.lane.b32.xlu0 %v5158, 8
      %v5178 = vpop.permute.xlu0 %5177
      %v5189 = vrot.slane %v5114, 2
      %v5190 = vrot.slane %v5115, 2
      %v5191 = vsel %vm692, %v5189, %v5190
      %v5192 = vrot.slane %v5116, 2
      %v5193 = vsel %vm692, %v5190, %v5192
      %v5194 = vrot.slane %v5117, 2
      %v5195 = vsel %vm692, %v5192, %v5194
      %v5196 = vrot.slane %v5118, 2
      %v5197 = vsel %vm692, %v5194, %v5196
      %v5198 = vrot.slane %v5119, 2
      %v5199 = vsel %vm692, %v5196, %v5198
      %v5200 = vrot.slane %v5120, 2
      %v5201 = vsel %vm692, %v5198, %v5200
      %v5202 = vrot.slane %v5121, 2
      %v5203 = vsel %vm692, %v5200, %v5202
      %v5204 = vrot.slane %v5122, 2
      %v5205 = vsel %vm692, %v5202, %v5204
      %v5206 = vrot.slane %v5123, 2
      %v5207 = vsel %vm692, %v5204, %v5206
      %v5208 = vrot.slane %v5124, 2
      %v5209 = vsel %vm692, %v5206, %v5208
      %5210 = vrot.lane.b32.xlu0 %v5191, 16
      %v5211 = vpop.permute.xlu0 %5210
      %5212 = vrot.lane.b32.xlu0 %v5193, 16
      %v5213 = vpop.permute.xlu0 %5212
      %5214 = vrot.lane.b32.xlu0 %v5195, 16
      %v5215 = vpop.permute.xlu0 %5214
      %5216 = vrot.lane.b32.xlu0 %v5197, 16
      %v5217 = vpop.permute.xlu0 %5216
      %5218 = vrot.lane.b32.xlu0 %v5199, 16
      %v5219 = vpop.permute.xlu0 %5218
      %5220 = vrot.lane.b32.xlu0 %v5201, 16
      %v5221 = vpop.permute.xlu0 %5220
      %5222 = vrot.lane.b32.xlu0 %v5203, 16
      %v5223 = vpop.permute.xlu0 %5222
      %5224 = vrot.lane.b32.xlu0 %v5205, 16
      %v5225 = vpop.permute.xlu0 %5224
      %5226 = vrot.lane.b32.xlu0 %v5207, 16
      %v5227 = vpop.permute.xlu0 %5226
      %5228 = vrot.lane.b32.xlu0 %v5209, 16
      %v5229 = vpop.permute.xlu0 %5228
      %v5241 = vrot.slane %v5125, 2
      %v5242 = vsel %vm692, %v5208, %v5241
      %5243 = vrot.lane.b32.xlu0 %v5193, 24
      %v5244 = vpop.permute.xlu0 %5243
      %5245 = vrot.lane.b32.xlu0 %v5195, 24
      %v5246 = vpop.permute.xlu0 %5245
      %5247 = vrot.lane.b32.xlu0 %v5197, 24
      %v5248 = vpop.permute.xlu0 %5247
      %5249 = vrot.lane.b32.xlu0 %v5199, 24
      %v5250 = vpop.permute.xlu0 %5249
      %5251 = vrot.lane.b32.xlu0 %v5201, 24
      %v5252 = vpop.permute.xlu0 %5251
      %5253 = vrot.lane.b32.xlu0 %v5203, 24
      %v5254 = vpop.permute.xlu0 %5253
      %5255 = vrot.lane.b32.xlu0 %v5205, 24
      %v5256 = vpop.permute.xlu0 %5255
      %5257 = vrot.lane.b32.xlu0 %v5207, 24
      %v5258 = vpop.permute.xlu0 %5257
      %5259 = vrot.lane.b32.xlu0 %v5209, 24
      %v5260 = vpop.permute.xlu0 %5259
      %5261 = vrot.lane.b32.xlu0 %v5242, 24
      %v5262 = vpop.permute.xlu0 %5261
      %v5273 = vrot.slane %v5115, 3
      %v5274 = vrot.slane %v5116, 3
      %v5275 = vsel %vm988, %v5273, %v5274
      %v5276 = vrot.slane %v5117, 3
      %v5277 = vsel %vm988, %v5274, %v5276
      %v5278 = vrot.slane %v5118, 3
      %v5279 = vsel %vm988, %v5276, %v5278
      %v5280 = vrot.slane %v5119, 3
      %v5281 = vsel %vm988, %v5278, %v5280
      %v5282 = vrot.slane %v5120, 3
      %v5283 = vsel %vm988, %v5280, %v5282
      %v5284 = vrot.slane %v5121, 3
      %v5285 = vsel %vm988, %v5282, %v5284
      %v5286 = vrot.slane %v5122, 3
      %v5287 = vsel %vm988, %v5284, %v5286
      %v5288 = vrot.slane %v5123, 3
      %v5289 = vsel %vm988, %v5286, %v5288
      %v5290 = vrot.slane %v5124, 3
      %v5291 = vsel %vm988, %v5288, %v5290
      %v5292 = vrot.slane %v5125, 3
      %v5293 = vsel %vm988, %v5290, %v5292
      %5294 = vrot.lane.b32.xlu0 %v5275, 32
      %v5295 = vpop.permute.xlu0 %5294
      %5296 = vrot.lane.b32.xlu0 %v5277, 32
      %v5297 = vpop.permute.xlu0 %5296
      %5298 = vrot.lane.b32.xlu0 %v5279, 32
      %v5299 = vpop.permute.xlu0 %5298
      %5300 = vrot.lane.b32.xlu0 %v5281, 32
      %v5301 = vpop.permute.xlu0 %5300
      %5302 = vrot.lane.b32.xlu0 %v5283, 32
      %v5303 = vpop.permute.xlu0 %5302
      %5304 = vrot.lane.b32.xlu0 %v5285, 32
      %v5305 = vpop.permute.xlu0 %5304
      %5306 = vrot.lane.b32.xlu0 %v5287, 32
      %v5307 = vpop.permute.xlu0 %5306
      %5308 = vrot.lane.b32.xlu0 %v5289, 32
      %v5309 = vpop.permute.xlu0 %5308
      %5310 = vrot.lane.b32.xlu0 %v5291, 32
      %v5311 = vpop.permute.xlu0 %5310
      %5312 = vrot.lane.b32.xlu0 %v5293, 32
      %v5313 = vpop.permute.xlu0 %5312
      %v5324 = vrot.slane %v5115, 4
      %v5325 = vrot.slane %v5116, 4
      %v5326 = vsel %vm1170, %v5324, %v5325
      %v5327 = vrot.slane %v5117, 4
      %v5328 = vsel %vm1170, %v5325, %v5327
      %v5329 = vrot.slane %v5118, 4
      %v5330 = vsel %vm1170, %v5327, %v5329
      %v5331 = vrot.slane %v5119, 4
      %v5332 = vsel %vm1170, %v5329, %v5331
      %v5333 = vrot.slane %v5120, 4
      %v5334 = vsel %vm1170, %v5331, %v5333
      %v5335 = vrot.slane %v5121, 4
      %v5336 = vsel %vm1170, %v5333, %v5335
      %v5337 = vrot.slane %v5122, 4
      %v5338 = vsel %vm1170, %v5335, %v5337
      %v5339 = vrot.slane %v5123, 4
      %v5340 = vsel %vm1170, %v5337, %v5339
      %v5341 = vrot.slane %v5124, 4
      %v5342 = vsel %vm1170, %v5339, %v5341
      %v5343 = vrot.slane %v5125, 4
      %v5344 = vsel %vm1170, %v5341, %v5343
      %5345 = vrot.lane.b32.xlu0 %v5326, 40
      %v5346 = vpop.permute.xlu0 %5345
      %5347 = vrot.lane.b32.xlu0 %v5328, 40
      %v5348 = vpop.permute.xlu0 %5347
      %5349 = vrot.lane.b32.xlu0 %v5330, 40
      %v5350 = vpop.permute.xlu0 %5349
      %5351 = vrot.lane.b32.xlu0 %v5332, 40
      %v5352 = vpop.permute.xlu0 %5351
      %5353 = vrot.lane.b32.xlu0 %v5334, 40
      %v5354 = vpop.permute.xlu0 %5353
      %5355 = vrot.lane.b32.xlu0 %v5336, 40
      %v5356 = vpop.permute.xlu0 %5355
      %5357 = vrot.lane.b32.xlu0 %v5338, 40
      %v5358 = vpop.permute.xlu0 %5357
      %5359 = vrot.lane.b32.xlu0 %v5340, 40
      %v5360 = vpop.permute.xlu0 %5359
      %5361 = vrot.lane.b32.xlu0 %v5342, 40
      %v5362 = vpop.permute.xlu0 %5361
      %5363 = vrot.lane.b32.xlu0 %v5344, 40
      %v5364 = vpop.permute.xlu0 %5363
      %v5376 = vrot.slane %v5126, 4
      %v5377 = vsel %vm1170, %v5343, %v5376
      %5378 = vrot.lane.b32.xlu0 %v5328, 48
      %v5379 = vpop.permute.xlu0 %5378
      %5380 = vrot.lane.b32.xlu0 %v5330, 48
      %v5381 = vpop.permute.xlu0 %5380
      %5382 = vrot.lane.b32.xlu0 %v5332, 48
      %v5383 = vpop.permute.xlu0 %5382
      %5384 = vrot.lane.b32.xlu0 %v5334, 48
      %v5385 = vpop.permute.xlu0 %5384
      %5386 = vrot.lane.b32.xlu0 %v5336, 48
      %v5387 = vpop.permute.xlu0 %5386
      %5388 = vrot.lane.b32.xlu0 %v5338, 48
      %v5389 = vpop.permute.xlu0 %5388
      %5390 = vrot.lane.b32.xlu0 %v5340, 48
      %v5391 = vpop.permute.xlu0 %5390
      %5392 = vrot.lane.b32.xlu0 %v5342, 48
      %v5393 = vpop.permute.xlu0 %5392
      %5394 = vrot.lane.b32.xlu0 %v5344, 48
      %v5395 = vpop.permute.xlu0 %5394
      %5396 = vrot.lane.b32.xlu0 %v5377, 48
      %v5397 = vpop.permute.xlu0 %5396
      %v5408 = vrot.slane %v5116, 5
      %v5409 = vrot.slane %v5117, 5
      %v5410 = vsel %vm1466, %v5408, %v5409
      %v5411 = vrot.slane %v5118, 5
      %v5412 = vsel %vm1466, %v5409, %v5411
      %v5413 = vrot.slane %v5119, 5
      %v5414 = vsel %vm1466, %v5411, %v5413
      %v5415 = vrot.slane %v5120, 5
      %v5416 = vsel %vm1466, %v5413, %v5415
      %v5417 = vrot.slane %v5121, 5
      %v5418 = vsel %vm1466, %v5415, %v5417
      %v5419 = vrot.slane %v5122, 5
      %v5420 = vsel %vm1466, %v5417, %v5419
      %v5421 = vrot.slane %v5123, 5
      %v5422 = vsel %vm1466, %v5419, %v5421
      %v5423 = vrot.slane %v5124, 5
      %v5424 = vsel %vm1466, %v5421, %v5423
      %v5425 = vrot.slane %v5125, 5
      %v5426 = vsel %vm1466, %v5423, %v5425
      %v5427 = vrot.slane %v5126, 5
      %v5428 = vsel %vm1466, %v5425, %v5427
      %5429 = vrot.lane.b32.xlu0 %v5410, 56
      %v5430 = vpop.permute.xlu0 %5429
      %5431 = vrot.lane.b32.xlu0 %v5412, 56
      %v5432 = vpop.permute.xlu0 %5431
      %5433 = vrot.lane.b32.xlu0 %v5414, 56
      %v5434 = vpop.permute.xlu0 %5433
      %5435 = vrot.lane.b32.xlu0 %v5416, 56
      %v5436 = vpop.permute.xlu0 %5435
      %5437 = vrot.lane.b32.xlu0 %v5418, 56
      %v5438 = vpop.permute.xlu0 %5437
      %5439 = vrot.lane.b32.xlu0 %v5420, 56
      %v5440 = vpop.permute.xlu0 %5439
      %5441 = vrot.lane.b32.xlu0 %v5422, 56
      %v5442 = vpop.permute.xlu0 %5441
      %5443 = vrot.lane.b32.xlu0 %v5424, 56
      %v5444 = vpop.permute.xlu0 %5443
      %5445 = vrot.lane.b32.xlu0 %v5426, 56
      %v5446 = vpop.permute.xlu0 %5445
      %5447 = vrot.lane.b32.xlu0 %v5428, 56
      %v5448 = vpop.permute.xlu0 %5447
      %v5459 = vrot.slane %v5116, 6
      %v5460 = vrot.slane %v5117, 6
      %v5461 = vsel %vm1648, %v5459, %v5460
      %v5462 = vrot.slane %v5118, 6
      %v5463 = vsel %vm1648, %v5460, %v5462
      %v5464 = vrot.slane %v5119, 6
      %v5465 = vsel %vm1648, %v5462, %v5464
      %v5466 = vrot.slane %v5120, 6
      %v5467 = vsel %vm1648, %v5464, %v5466
      %v5468 = vrot.slane %v5121, 6
      %v5469 = vsel %vm1648, %v5466, %v5468
      %v5470 = vrot.slane %v5122, 6
      %v5471 = vsel %vm1648, %v5468, %v5470
      %v5472 = vrot.slane %v5123, 6
      %v5473 = vsel %vm1648, %v5470, %v5472
      %v5474 = vrot.slane %v5124, 6
      %v5475 = vsel %vm1648, %v5472, %v5474
      %v5476 = vrot.slane %v5125, 6
      %v5477 = vsel %vm1648, %v5474, %v5476
      %v5478 = vrot.slane %v5126, 6
      %v5479 = vsel %vm1648, %v5476, %v5478
      %5480 = vrot.lane.b32.xlu0 %v5461, 64
      %v5481 = vpop.permute.xlu0 %5480
      %5482 = vrot.lane.b32.xlu0 %v5463, 64
      %v5483 = vpop.permute.xlu0 %5482
      %5484 = vrot.lane.b32.xlu0 %v5465, 64
      %v5485 = vpop.permute.xlu0 %5484
      %5486 = vrot.lane.b32.xlu0 %v5467, 64
      %v5487 = vpop.permute.xlu0 %5486
      %5488 = vrot.lane.b32.xlu0 %v5469, 64
      %v5489 = vpop.permute.xlu0 %5488
      %5490 = vrot.lane.b32.xlu0 %v5471, 64
      %v5491 = vpop.permute.xlu0 %5490
      %5492 = vrot.lane.b32.xlu0 %v5473, 64
      %v5493 = vpop.permute.xlu0 %5492
      %5494 = vrot.lane.b32.xlu0 %v5475, 64
      %v5495 = vpop.permute.xlu0 %5494
      %5496 = vrot.lane.b32.xlu0 %v5477, 64
      %v5497 = vpop.permute.xlu0 %5496
      %5498 = vrot.lane.b32.xlu0 %v5479, 64
      %v5499 = vpop.permute.xlu0 %5498
      %v5510 = vsel %vm1867, %v5114, %v5160
      %v5511 = vsel %vm1867, %v5115, %v5162
      %v5512 = vsel %vm1867, %v5116, %v5164
      %v5513 = vsel %vm1867, %v5117, %v5166
      %v5514 = vsel %vm1867, %v5118, %v5168
      %v5515 = vsel %vm1867, %v5119, %v5170
      %v5516 = vsel %vm1867, %v5120, %v5172
      %v5517 = vsel %vm1867, %v5121, %v5174
      %v5518 = vsel %vm1867, %v5122, %v5176
      %v5519 = vsel %vm1867, %v5123, %v5178
      %v5520 = vsel %vm1941, %v5510, %v5211
      %v5521 = vsel %vm1941, %v5511, %v5213
      %v5522 = vsel %vm1941, %v5512, %v5215
      %v5523 = vsel %vm1941, %v5513, %v5217
      %v5524 = vsel %vm1941, %v5514, %v5219
      %v5525 = vsel %vm1941, %v5515, %v5221
      %v5526 = vsel %vm1941, %v5516, %v5223
      %v5527 = vsel %vm1941, %v5517, %v5225
      %v5528 = vsel %vm1941, %v5518, %v5227
      %v5529 = vsel %vm1941, %v5519, %v5229
      %v5530 = vsel %vm2015, %v5520, %v5244
      %v5531 = vsel %vm2015, %v5521, %v5246
      %v5532 = vsel %vm2015, %v5522, %v5248
      %v5533 = vsel %vm2015, %v5523, %v5250
      %v5534 = vsel %vm2015, %v5524, %v5252
      %v5535 = vsel %vm2015, %v5525, %v5254
      %v5536 = vsel %vm2015, %v5526, %v5256
      %v5537 = vsel %vm2015, %v5527, %v5258
      %v5538 = vsel %vm2015, %v5528, %v5260
      %v5539 = vsel %vm2015, %v5529, %v5262
      %v5540 = vsel %vm2089, %v5530, %v5295
      %v5541 = vsel %vm2089, %v5531, %v5297
      %v5542 = vsel %vm2089, %v5532, %v5299
      %v5543 = vsel %vm2089, %v5533, %v5301
      %v5544 = vsel %vm2089, %v5534, %v5303
      %v5545 = vsel %vm2089, %v5535, %v5305
      %v5546 = vsel %vm2089, %v5536, %v5307
      %v5547 = vsel %vm2089, %v5537, %v5309
      %v5548 = vsel %vm2089, %v5538, %v5311
      %v5549 = vsel %vm2089, %v5539, %v5313
      %v5550 = vsel %vm4143, %v5540, %v5346
      %v5551 = vsel %vm4143, %v5541, %v5348
      %v5552 = vsel %vm4143, %v5542, %v5350
      %v5553 = vsel %vm4143, %v5543, %v5352
      %v5554 = vsel %vm4143, %v5544, %v5354
      %v5555 = vsel %vm4143, %v5545, %v5356
      %v5556 = vsel %vm4143, %v5546, %v5358
      %v5557 = vsel %vm4143, %v5547, %v5360
      %v5558 = vsel %vm4143, %v5548, %v5362
      %v5559 = vsel %vm4143, %v5549, %v5364
      %v5560 = vsel %vm4154, %v5550, %v5379
      %v5561 = vsel %vm4154, %v5551, %v5381
      %v5562 = vsel %vm4154, %v5552, %v5383
      %v5563 = vsel %vm4154, %v5553, %v5385
      %v5564 = vsel %vm4154, %v5554, %v5387
      %v5565 = vsel %vm4154, %v5555, %v5389
      %v5566 = vsel %vm4154, %v5556, %v5391
      %v5567 = vsel %vm4154, %v5557, %v5393
      %v5568 = vsel %vm4154, %v5558, %v5395
      %v5569 = vsel %vm4154, %v5559, %v5397
      %v5570 = vsel %vm4165, %v5560, %v5430
      %v5571 = vsel %vm4165, %v5561, %v5432
      %v5572 = vsel %vm4165, %v5562, %v5434
      %v5573 = vsel %vm4165, %v5563, %v5436
      %v5574 = vsel %vm4165, %v5564, %v5438
      %v5575 = vsel %vm4165, %v5565, %v5440
      %v5576 = vsel %vm4165, %v5566, %v5442
      %v5577 = vsel %vm4165, %v5567, %v5444
      %v5578 = vsel %vm4165, %v5568, %v5446
      %v5579 = vsel %vm4165, %v5569, %v5448
      %v5580 = vsel %vm4176, %v5570, %v5481
      %v5581 = vsel %vm4176, %v5571, %v5483
      %v5582 = vsel %vm4176, %v5572, %v5485
      %v5583 = vsel %vm4176, %v5573, %v5487
      %v5584 = vsel %vm4176, %v5574, %v5489
      %v5585 = vsel %vm4176, %v5575, %v5491
      %v5586 = vsel %vm4176, %v5576, %v5493
      %v5587 = vsel %vm4176, %v5577, %v5495
      %v5588 = vsel %vm4176, %v5578, %v5497
      %v5589 = vsel %vm4176, %v5579, %v5499
      %v5590 = vpack.c.bf16 %v5581, %v5580
      %v5591 = vpack.c.bf16 %v5583, %v5582
      %v5592 = vpack.c.bf16 %v5585, %v5584
      %v5593 = vpack.c.bf16 %v5587, %v5586
      %v5594 = vpack.c.bf16 %v5589, %v5588
      %v5596 = vlaneseq
      %v5597 = vshrl.u32 %v5596, 7
      %v5598 = vsub.s32 0, %v5597
      %v5599 = vrot.slane %v5088, %v5598
      %v5610 = vunpack.c.l.b16 %v5078
      %v5611 = vunpack.c.l.b16 %v5079
      %v5612 = vunpack.c.l.b16 %v5080
      %v5613 = vunpack.c.l.b16 %v5081
      %v5614 = vunpack.c.l.b16 %v5082
      %v5615 = vunpack.c.l.b16 %v5083
      %v5616 = vunpack.c.l.b16 %v5084
      %v5617 = vunpack.c.l.b16 %v5085
      %v5618 = vunpack.c.l.b16 %v5086
      %v5619 = vpack.c.b16 %v5611, %v5610
      %v5620 = vpack.c.b16 %v5613, %v5612
      %v5621 = vpack.c.b16 %v5615, %v5614
      %v5622 = vpack.c.b16 %v5617, %v5616
      %v5623 = vpack.c.b16 %v5618, %v5618
      %v5629 = vsel %vm4225, %v5590, 0
      %v5632 = vsel %vm4225, %v5591, 0
      %v5635 = vsel %vm4225, %v5592, 0
      %v5638 = vsel %vm4225, %v5593, 0
      %v5641 = vsel %vm4225, %v5594, 0
      %v5644 = vsel %vm1170, %v5623, 0
      %5646 = vmatprep.subr.bf16.mxu0 0
      %5647 = vmatpush1.bf16.msra.mxu0 0
      %5648 = vmatprep.subr.bf16.mxu0 0
      %5649 = vmatpush1.bf16.msra.mxu0 0
      %5650 = vmatprep.subr.bf16.mxu0 0
      %5651 = vmatpush1.bf16.msra.mxu0 0
      %5652 = vmatprep.subr.bf16.mxu0 0
      %5653 = vmatpush1.bf16.msra.mxu0 %v5644
      %5654 = vmatprep.subr.bf16.mxu0 0
      %5655 = vmatpush1.bf16.msra.mxu0 %v5622
      %5656 = vmatprep.subr.bf16.mxu0 0
      %5657 = vmatpush1.bf16.msra.mxu0 %v5621
      %5658 = vmatprep.subr.bf16.mxu0 0
      %5659 = vmatpush1.bf16.msra.mxu0 %v5620
      %5660 = vmatprep.subr.bf16.mxu0 0
      %5661 = vmatpush1.bf16.msra.mxu0 %v5619
      %5662 = vmatprep.subr.bf16.mxu0 0
      %5663 = vmatpush2.bf16.msra.mxu0 0
      %5664 = vmatprep.subr.bf16.mxu0 0
      %5665 = vmatpush2.bf16.msra.mxu0 0
      %5666 = vmatprep.subr.bf16.mxu0 0
      %5667 = vmatpush2.bf16.msra.mxu0 0
      %5668 = vmatprep.subr.bf16.mxu0 0
      %5669 = vmatpush2.bf16.msra.mxu0 0
      %5670 = vmatprep.subr.bf16.mxu0 0
      %5671 = vmatpush2.bf16.msra.mxu0 0
      %5672 = vmatprep.subr.bf16.mxu0 0
      %5673 = vmatpush2.bf16.msra.mxu0 0
      %5674 = vmatprep.subr.bf16.mxu0 0
      %5675 = vmatpush2.bf16.msra.mxu0 0
      %5676 = vmatprep.subr.bf16.mxu0 0
      %5677 = vmatpush2.bf16.msra.mxu0 0
      %5678 = vmatprep.mubr.bf16.mxu0 0
      %5679 = vmatmul.mubr.bf16.gmra.mxu0 %v5629
      %v5680 = vpop.f32.mrf.mxu0
      %v5681 = vadd.f32 %v5599, %v5680
      %v5682 = vpop.f32.mrf.mxu0
      %v5683 = vpop.f32.mrf.mxu0
      %v5684 = vadd.f32 %v5599, %v5683
      %v5685 = vpop.f32.mrf.mxu0
      %5686 = vmatprep.mubr.bf16.mxu0 0
      %5687 = vmatmul.mubr.bf16.gmra.mxu0 %v5632
      %v5688 = vpop.f32.mrf.mxu0
      %v5689 = vadd.f32 %v5599, %v5688
      %v5690 = vpop.f32.mrf.mxu0
      %v5691 = vpop.f32.mrf.mxu0
      %v5692 = vadd.f32 %v5599, %v5691
      %v5693 = vpop.f32.mrf.mxu0
      %5694 = vmatprep.mubr.bf16.mxu0 0
      %5695 = vmatmul.mubr.bf16.gmra.mxu0 %v5635
      %v5696 = vpop.f32.mrf.mxu0
      %v5697 = vadd.f32 %v5599, %v5696
      %v5698 = vpop.f32.mrf.mxu0
      %v5699 = vpop.f32.mrf.mxu0
      %v5700 = vadd.f32 %v5599, %v5699
      %v5701 = vpop.f32.mrf.mxu0
      %5702 = vmatprep.mubr.bf16.mxu0 0
      %5703 = vmatmul.mubr.bf16.gmra.mxu0 %v5638
      %v5704 = vpop.f32.mrf.mxu0
      %v5705 = vadd.f32 %v5599, %v5704
      %v5706 = vpop.f32.mrf.mxu0
      %v5707 = vpop.f32.mrf.mxu0
      %v5708 = vadd.f32 %v5599, %v5707
      %v5709 = vpop.f32.mrf.mxu0
      %5710 = vmatprep.mubr.bf16.mxu0 0
      %5711 = vmatmul.mubr.bf16.gmra.mxu0 %v5641
      %v5712 = vpop.f32.mrf.mxu0
      %v5713 = vadd.f32 %v5599, %v5712
      %v5714 = vpop.f32.mrf.mxu0
      %v5715 = vpop.f32.mrf.mxu0
      %v5716 = vadd.f32 %v5599, %v5715
      %v5717 = vpop.f32.mrf.mxu0
      %5718 = vdwg.mxu0
      %v5719 = vsel %vm4357, %v5681, 0.0
      %v5720 = vsel %vm4358, %v5684, 0.0
      %v5721 = vsel %vm4359, %v5689, 0.0
      %v5722 = vsel %vm4360, %v5692, 0.0
      %v5723 = vsel %vm4361, %v5697, 0.0
      %v5724 = vsel %vm4362, %v5700, 0.0
      %v5725 = vsel %vm4363, %v5705, 0.0
      %v5726 = vsel %vm4364, %v5708, 0.0
      %v5727 = vsel %vm4365, %v5713, 0.0
      %v5728 = vsel %vm4366, %v5716, 0.0
      %5729 = vst.msk [vmem:[#allocation4 + $0xb] sm:$0xff] %vm1867, %v5719
      %5730 = vst.msk [vmem:[#allocation4 + $0x13] sm:$0xff] %vm1867, %v5720
      %5731 = vst.msk [vmem:[#allocation4 + $0x1b] sm:$0xff] %vm1867, %v5721
      %5732 = vst.msk [vmem:[#allocation4 + $0x23] sm:$0xff] %vm1867, %v5722
      %5733 = vst.msk [vmem:[#allocation4 + $0x2b] sm:$0xff] %vm1867, %v5723
      %5734 = vst.msk [vmem:[#allocation4 + $0x33] sm:$0xff] %vm1867, %v5724
      %5735 = vst.msk [vmem:[#allocation4 + $0x3b] sm:$0xff] %vm1867, %v5725
      %5736 = vst.msk [vmem:[#allocation4 + $0x43] sm:$0xff] %vm1867, %v5726
      %5737 = vst.msk [vmem:[#allocation4 + $0x4b] sm:$0xff] %vm1867, %v5727
      %5738 = vst.msk [vmem:[#allocation4 + $0x53] sm:$0xff] %vm1867, %v5728
      %v5739 = vld [vmem:[#allocation4] sm:$0xff]
      %v5740 = vld [vmem:[#allocation4 + $0x8] sm:$0xff]
      %v5741 = vld [vmem:[#allocation4 + $0x10] sm:$0xff]
      %v5742 = vld [vmem:[#allocation4 + $0x18] sm:$0xff]
      %v5743 = vld [vmem:[#allocation4 + $0x20] sm:$0xff]
      %v5744 = vld [vmem:[#allocation4 + $0x28] sm:$0xff]
      %v5745 = vld [vmem:[#allocation4 + $0x30] sm:$0xff]
      %v5746 = vld [vmem:[#allocation4 + $0x38] sm:$0xff]
      %v5747 = vld [vmem:[#allocation4 + $0x40] sm:$0xff]
      %v5748 = vld [vmem:[#allocation4 + $0x48] sm:$0xff]
      %v5749 = vld [vmem:[#allocation4 + $0x50] sm:$0xff]
      %v5750 = vld [vmem:[#allocation4 + $0x58] sm:$0xff]
      %v5751 = vld [vmem:[#allocation4 + $0x60] sm:$0xff]
      %v5752 = vmax.f32 %v5739, 0.0
      %v5753 = vmax.f32 %v5740, 0.0
      %v5754 = vmax.f32 %v5741, 0.0
      %v5755 = vmax.f32 %v5742, 0.0
      %v5756 = vmax.f32 %v5743, 0.0
      %v5757 = vmax.f32 %v5744, 0.0
      %v5758 = vmax.f32 %v5745, 0.0
      %v5759 = vmax.f32 %v5746, 0.0
      %v5760 = vmax.f32 %v5747, 0.0
      %v5761 = vmax.f32 %v5748, 0.0
      %v5762 = vmax.f32 %v5749, 0.0
      %v5763 = vmax.f32 %v5750, 0.0
      %v5764 = vmax.f32 %v5751, 0.0
      %v5776 = vrot.slane %v5752, 1
      %v5777 = vrot.slane %v5753, 1
      %v5778 = vsel %vm510, %v5776, %v5777
      %v5779 = vrot.slane %v5754, 1
      %v5780 = vsel %vm510, %v5777, %v5779
      %v5781 = vrot.slane %v5755, 1
      %v5782 = vsel %vm510, %v5779, %v5781
      %v5783 = vrot.slane %v5756, 1
      %v5784 = vsel %vm510, %v5781, %v5783
      %v5785 = vrot.slane %v5757, 1
      %v5786 = vsel %vm510, %v5783, %v5785
      %v5787 = vrot.slane %v5758, 1
      %v5788 = vsel %vm510, %v5785, %v5787
      %v5789 = vrot.slane %v5759, 1
      %v5790 = vsel %vm510, %v5787, %v5789
      %v5791 = vrot.slane %v5760, 1
      %v5792 = vsel %vm510, %v5789, %v5791
      %v5793 = vrot.slane %v5761, 1
      %v5794 = vsel %vm510, %v5791, %v5793
      %v5795 = vrot.slane %v5762, 1
      %v5796 = vsel %vm510, %v5793, %v5795
      %5797 = vrot.lane.b32.xlu0 %v5778, 8
      %v5798 = vpop.permute.xlu0 %5797
      %5799 = vrot.lane.b32.xlu0 %v5780, 8
      %v5800 = vpop.permute.xlu0 %5799
      %5801 = vrot.lane.b32.xlu0 %v5782, 8
      %v5802 = vpop.permute.xlu0 %5801
      %5803 = vrot.lane.b32.xlu0 %v5784, 8
      %v5804 = vpop.permute.xlu0 %5803
      %5805 = vrot.lane.b32.xlu0 %v5786, 8
      %v5806 = vpop.permute.xlu0 %5805
      %5807 = vrot.lane.b32.xlu0 %v5788, 8
      %v5808 = vpop.permute.xlu0 %5807
      %5809 = vrot.lane.b32.xlu0 %v5790, 8
      %v5810 = vpop.permute.xlu0 %5809
      %5811 = vrot.lane.b32.xlu0 %v5792, 8
      %v5812 = vpop.permute.xlu0 %5811
      %5813 = vrot.lane.b32.xlu0 %v5794, 8
      %v5814 = vpop.permute.xlu0 %5813
      %5815 = vrot.lane.b32.xlu0 %v5796, 8
      %v5816 = vpop.permute.xlu0 %5815
      %v5827 = vrot.slane %v5752, 2
      %v5828 = vrot.slane %v5753, 2
      %v5829 = vsel %vm692, %v5827, %v5828
      %v5830 = vrot.slane %v5754, 2
      %v5831 = vsel %vm692, %v5828, %v5830
      %v5832 = vrot.slane %v5755, 2
      %v5833 = vsel %vm692, %v5830, %v5832
      %v5834 = vrot.slane %v5756, 2
      %v5835 = vsel %vm692, %v5832, %v5834
      %v5836 = vrot.slane %v5757, 2
      %v5837 = vsel %vm692, %v5834, %v5836
      %v5838 = vrot.slane %v5758, 2
      %v5839 = vsel %vm692, %v5836, %v5838
      %v5840 = vrot.slane %v5759, 2
      %v5841 = vsel %vm692, %v5838, %v5840
      %v5842 = vrot.slane %v5760, 2
      %v5843 = vsel %vm692, %v5840, %v5842
      %v5844 = vrot.slane %v5761, 2
      %v5845 = vsel %vm692, %v5842, %v5844
      %v5846 = vrot.slane %v5762, 2
      %v5847 = vsel %vm692, %v5844, %v5846
      %5848 = vrot.lane.b32.xlu0 %v5829, 16
      %v5849 = vpop.permute.xlu0 %5848
      %5850 = vrot.lane.b32.xlu0 %v5831, 16
      %v5851 = vpop.permute.xlu0 %5850
      %5852 = vrot.lane.b32.xlu0 %v5833, 16
      %v5853 = vpop.permute.xlu0 %5852
      %5854 = vrot.lane.b32.xlu0 %v5835, 16
      %v5855 = vpop.permute.xlu0 %5854
      %5856 = vrot.lane.b32.xlu0 %v5837, 16
      %v5857 = vpop.permute.xlu0 %5856
      %5858 = vrot.lane.b32.xlu0 %v5839, 16
      %v5859 = vpop.permute.xlu0 %5858
      %5860 = vrot.lane.b32.xlu0 %v5841, 16
      %v5861 = vpop.permute.xlu0 %5860
      %5862 = vrot.lane.b32.xlu0 %v5843, 16
      %v5863 = vpop.permute.xlu0 %5862
      %5864 = vrot.lane.b32.xlu0 %v5845, 16
      %v5865 = vpop.permute.xlu0 %5864
      %5866 = vrot.lane.b32.xlu0 %v5847, 16
      %v5867 = vpop.permute.xlu0 %5866
      %v5879 = vrot.slane %v5763, 2
      %v5880 = vsel %vm692, %v5846, %v5879
      %5881 = vrot.lane.b32.xlu0 %v5831, 24
      %v5882 = vpop.permute.xlu0 %5881
      %5883 = vrot.lane.b32.xlu0 %v5833, 24
      %v5884 = vpop.permute.xlu0 %5883
      %5885 = vrot.lane.b32.xlu0 %v5835, 24
      %v5886 = vpop.permute.xlu0 %5885
      %5887 = vrot.lane.b32.xlu0 %v5837, 24
      %v5888 = vpop.permute.xlu0 %5887
      %5889 = vrot.lane.b32.xlu0 %v5839, 24
      %v5890 = vpop.permute.xlu0 %5889
      %5891 = vrot.lane.b32.xlu0 %v5841, 24
      %v5892 = vpop.permute.xlu0 %5891
      %5893 = vrot.lane.b32.xlu0 %v5843, 24
      %v5894 = vpop.permute.xlu0 %5893
      %5895 = vrot.lane.b32.xlu0 %v5845, 24
      %v5896 = vpop.permute.xlu0 %5895
      %5897 = vrot.lane.b32.xlu0 %v5847, 24
      %v5898 = vpop.permute.xlu0 %5897
      %5899 = vrot.lane.b32.xlu0 %v5880, 24
      %v5900 = vpop.permute.xlu0 %5899
      %v5911 = vrot.slane %v5753, 3
      %v5912 = vrot.slane %v5754, 3
      %v5913 = vsel %vm988, %v5911, %v5912
      %v5914 = vrot.slane %v5755, 3
      %v5915 = vsel %vm988, %v5912, %v5914
      %v5916 = vrot.slane %v5756, 3
      %v5917 = vsel %vm988, %v5914, %v5916
      %v5918 = vrot.slane %v5757, 3
      %v5919 = vsel %vm988, %v5916, %v5918
      %v5920 = vrot.slane %v5758, 3
      %v5921 = vsel %vm988, %v5918, %v5920
      %v5922 = vrot.slane %v5759, 3
      %v5923 = vsel %vm988, %v5920, %v5922
      %v5924 = vrot.slane %v5760, 3
      %v5925 = vsel %vm988, %v5922, %v5924
      %v5926 = vrot.slane %v5761, 3
      %v5927 = vsel %vm988, %v5924, %v5926
      %v5928 = vrot.slane %v5762, 3
      %v5929 = vsel %vm988, %v5926, %v5928
      %v5930 = vrot.slane %v5763, 3
      %v5931 = vsel %vm988, %v5928, %v5930
      %5932 = vrot.lane.b32.xlu0 %v5913, 32
      %v5933 = vpop.permute.xlu0 %5932
      %5934 = vrot.lane.b32.xlu0 %v5915, 32
      %v5935 = vpop.permute.xlu0 %5934
      %5936 = vrot.lane.b32.xlu0 %v5917, 32
      %v5937 = vpop.permute.xlu0 %5936
      %5938 = vrot.lane.b32.xlu0 %v5919, 32
      %v5939 = vpop.permute.xlu0 %5938
      %5940 = vrot.lane.b32.xlu0 %v5921, 32
      %v5941 = vpop.permute.xlu0 %5940
      %5942 = vrot.lane.b32.xlu0 %v5923, 32
      %v5943 = vpop.permute.xlu0 %5942
      %5944 = vrot.lane.b32.xlu0 %v5925, 32
      %v5945 = vpop.permute.xlu0 %5944
      %5946 = vrot.lane.b32.xlu0 %v5927, 32
      %v5947 = vpop.permute.xlu0 %5946
      %5948 = vrot.lane.b32.xlu0 %v5929, 32
      %v5949 = vpop.permute.xlu0 %5948
      %5950 = vrot.lane.b32.xlu0 %v5931, 32
      %v5951 = vpop.permute.xlu0 %5950
      %v5962 = vrot.slane %v5753, 4
      %v5963 = vrot.slane %v5754, 4
      %v5964 = vsel %vm1170, %v5962, %v5963
      %v5965 = vrot.slane %v5755, 4
      %v5966 = vsel %vm1170, %v5963, %v5965
      %v5967 = vrot.slane %v5756, 4
      %v5968 = vsel %vm1170, %v5965, %v5967
      %v5969 = vrot.slane %v5757, 4
      %v5970 = vsel %vm1170, %v5967, %v5969
      %v5971 = vrot.slane %v5758, 4
      %v5972 = vsel %vm1170, %v5969, %v5971
      %v5973 = vrot.slane %v5759, 4
      %v5974 = vsel %vm1170, %v5971, %v5973
      %v5975 = vrot.slane %v5760, 4
      %v5976 = vsel %vm1170, %v5973, %v5975
      %v5977 = vrot.slane %v5761, 4
      %v5978 = vsel %vm1170, %v5975, %v5977
      %v5979 = vrot.slane %v5762, 4
      %v5980 = vsel %vm1170, %v5977, %v5979
      %v5981 = vrot.slane %v5763, 4
      %v5982 = vsel %vm1170, %v5979, %v5981
      %5983 = vrot.lane.b32.xlu0 %v5964, 40
      %v5984 = vpop.permute.xlu0 %5983
      %5985 = vrot.lane.b32.xlu0 %v5966, 40
      %v5986 = vpop.permute.xlu0 %5985
      %5987 = vrot.lane.b32.xlu0 %v5968, 40
      %v5988 = vpop.permute.xlu0 %5987
      %5989 = vrot.lane.b32.xlu0 %v5970, 40
      %v5990 = vpop.permute.xlu0 %5989
      %5991 = vrot.lane.b32.xlu0 %v5972, 40
      %v5992 = vpop.permute.xlu0 %5991
      %5993 = vrot.lane.b32.xlu0 %v5974, 40
      %v5994 = vpop.permute.xlu0 %5993
      %5995 = vrot.lane.b32.xlu0 %v5976, 40
      %v5996 = vpop.permute.xlu0 %5995
      %5997 = vrot.lane.b32.xlu0 %v5978, 40
      %v5998 = vpop.permute.xlu0 %5997
      %5999 = vrot.lane.b32.xlu0 %v5980, 40
      %v6000 = vpop.permute.xlu0 %5999
      %6001 = vrot.lane.b32.xlu0 %v5982, 40
      %v6002 = vpop.permute.xlu0 %6001
      %v6014 = vrot.slane %v5764, 4
      %v6015 = vsel %vm1170, %v5981, %v6014
      %6016 = vrot.lane.b32.xlu0 %v5966, 48
      %v6017 = vpop.permute.xlu0 %6016
      %6018 = vrot.lane.b32.xlu0 %v5968, 48
      %v6019 = vpop.permute.xlu0 %6018
      %6020 = vrot.lane.b32.xlu0 %v5970, 48
      %v6021 = vpop.permute.xlu0 %6020
      %6022 = vrot.lane.b32.xlu0 %v5972, 48
      %v6023 = vpop.permute.xlu0 %6022
      %6024 = vrot.lane.b32.xlu0 %v5974, 48
      %v6025 = vpop.permute.xlu0 %6024
      %6026 = vrot.lane.b32.xlu0 %v5976, 48
      %v6027 = vpop.permute.xlu0 %6026
      %6028 = vrot.lane.b32.xlu0 %v5978, 48
      %v6029 = vpop.permute.xlu0 %6028
      %6030 = vrot.lane.b32.xlu0 %v5980, 48
      %v6031 = vpop.permute.xlu0 %6030
      %6032 = vrot.lane.b32.xlu0 %v5982, 48
      %v6033 = vpop.permute.xlu0 %6032
      %6034 = vrot.lane.b32.xlu0 %v6015, 48
      %v6035 = vpop.permute.xlu0 %6034
      %v6046 = vrot.slane %v5754, 5
      %v6047 = vrot.slane %v5755, 5
      %v6048 = vsel %vm1466, %v6046, %v6047
      %v6049 = vrot.slane %v5756, 5
      %v6050 = vsel %vm1466, %v6047, %v6049
      %v6051 = vrot.slane %v5757, 5
      %v6052 = vsel %vm1466, %v6049, %v6051
      %v6053 = vrot.slane %v5758, 5
      %v6054 = vsel %vm1466, %v6051, %v6053
      %v6055 = vrot.slane %v5759, 5
      %v6056 = vsel %vm1466, %v6053, %v6055
      %v6057 = vrot.slane %v5760, 5
      %v6058 = vsel %vm1466, %v6055, %v6057
      %v6059 = vrot.slane %v5761, 5
      %v6060 = vsel %vm1466, %v6057, %v6059
      %v6061 = vrot.slane %v5762, 5
      %v6062 = vsel %vm1466, %v6059, %v6061
      %v6063 = vrot.slane %v5763, 5
      %v6064 = vsel %vm1466, %v6061, %v6063
      %v6065 = vrot.slane %v5764, 5
      %v6066 = vsel %vm1466, %v6063, %v6065
      %6067 = vrot.lane.b32.xlu0 %v6048, 56
      %v6068 = vpop.permute.xlu0 %6067
      %6069 = vrot.lane.b32.xlu0 %v6050, 56
      %v6070 = vpop.permute.xlu0 %6069
      %6071 = vrot.lane.b32.xlu0 %v6052, 56
      %v6072 = vpop.permute.xlu0 %6071
      %6073 = vrot.lane.b32.xlu0 %v6054, 56
      %v6074 = vpop.permute.xlu0 %6073
      %6075 = vrot.lane.b32.xlu0 %v6056, 56
      %v6076 = vpop.permute.xlu0 %6075
      %6077 = vrot.lane.b32.xlu0 %v6058, 56
      %v6078 = vpop.permute.xlu0 %6077
      %6079 = vrot.lane.b32.xlu0 %v6060, 56
      %v6080 = vpop.permute.xlu0 %6079
      %6081 = vrot.lane.b32.xlu0 %v6062, 56
      %v6082 = vpop.permute.xlu0 %6081
      %6083 = vrot.lane.b32.xlu0 %v6064, 56
      %v6084 = vpop.permute.xlu0 %6083
      %6085 = vrot.lane.b32.xlu0 %v6066, 56
      %v6086 = vpop.permute.xlu0 %6085
      %v6097 = vrot.slane %v5754, 6
      %v6098 = vrot.slane %v5755, 6
      %v6099 = vsel %vm1648, %v6097, %v6098
      %v6100 = vrot.slane %v5756, 6
      %v6101 = vsel %vm1648, %v6098, %v6100
      %v6102 = vrot.slane %v5757, 6
      %v6103 = vsel %vm1648, %v6100, %v6102
      %v6104 = vrot.slane %v5758, 6
      %v6105 = vsel %vm1648, %v6102, %v6104
      %v6106 = vrot.slane %v5759, 6
      %v6107 = vsel %vm1648, %v6104, %v6106
      %v6108 = vrot.slane %v5760, 6
      %v6109 = vsel %vm1648, %v6106, %v6108
      %v6110 = vrot.slane %v5761, 6
      %v6111 = vsel %vm1648, %v6108, %v6110
      %v6112 = vrot.slane %v5762, 6
      %v6113 = vsel %vm1648, %v6110, %v6112
      %v6114 = vrot.slane %v5763, 6
      %v6115 = vsel %vm1648, %v6112, %v6114
      %v6116 = vrot.slane %v5764, 6
      %v6117 = vsel %vm1648, %v6114, %v6116
      %6118 = vrot.lane.b32.xlu0 %v6099, 64
      %v6119 = vpop.permute.xlu0 %6118
      %6120 = vrot.lane.b32.xlu0 %v6101, 64
      %v6121 = vpop.permute.xlu0 %6120
      %6122 = vrot.lane.b32.xlu0 %v6103, 64
      %v6123 = vpop.permute.xlu0 %6122
      %6124 = vrot.lane.b32.xlu0 %v6105, 64
      %v6125 = vpop.permute.xlu0 %6124
      %6126 = vrot.lane.b32.xlu0 %v6107, 64
      %v6127 = vpop.permute.xlu0 %6126
      %6128 = vrot.lane.b32.xlu0 %v6109, 64
      %v6129 = vpop.permute.xlu0 %6128
      %6130 = vrot.lane.b32.xlu0 %v6111, 64
      %v6131 = vpop.permute.xlu0 %6130
      %6132 = vrot.lane.b32.xlu0 %v6113, 64
      %v6133 = vpop.permute.xlu0 %6132
      %6134 = vrot.lane.b32.xlu0 %v6115, 64
      %v6135 = vpop.permute.xlu0 %6134
      %6136 = vrot.lane.b32.xlu0 %v6117, 64
      %v6137 = vpop.permute.xlu0 %6136
      %v6148 = vsel %vm1867, %v5752, %v5798
      %v6149 = vsel %vm1867, %v5753, %v5800
      %v6150 = vsel %vm1867, %v5754, %v5802
      %v6151 = vsel %vm1867, %v5755, %v5804
      %v6152 = vsel %vm1867, %v5756, %v5806
      %v6153 = vsel %vm1867, %v5757, %v5808
      %v6154 = vsel %vm1867, %v5758, %v5810
      %v6155 = vsel %vm1867, %v5759, %v5812
      %v6156 = vsel %vm1867, %v5760, %v5814
      %v6157 = vsel %vm1867, %v5761, %v5816
      %v6158 = vsel %vm1941, %v6148, %v5849
      %v6159 = vsel %vm1941, %v6149, %v5851
      %v6160 = vsel %vm1941, %v6150, %v5853
      %v6161 = vsel %vm1941, %v6151, %v5855
      %v6162 = vsel %vm1941, %v6152, %v5857
      %v6163 = vsel %vm1941, %v6153, %v5859
      %v6164 = vsel %vm1941, %v6154, %v5861
      %v6165 = vsel %vm1941, %v6155, %v5863
      %v6166 = vsel %vm1941, %v6156, %v5865
      %v6167 = vsel %vm1941, %v6157, %v5867
      %v6168 = vsel %vm2015, %v6158, %v5882
      %v6169 = vsel %vm2015, %v6159, %v5884
      %v6170 = vsel %vm2015, %v6160, %v5886
      %v6171 = vsel %vm2015, %v6161, %v5888
      %v6172 = vsel %vm2015, %v6162, %v5890
      %v6173 = vsel %vm2015, %v6163, %v5892
      %v6174 = vsel %vm2015, %v6164, %v5894
      %v6175 = vsel %vm2015, %v6165, %v5896
      %v6176 = vsel %vm2015, %v6166, %v5898
      %v6177 = vsel %vm2015, %v6167, %v5900
      %v6178 = vsel %vm2089, %v6168, %v5933
      %v6179 = vsel %vm2089, %v6169, %v5935
      %v6180 = vsel %vm2089, %v6170, %v5937
      %v6181 = vsel %vm2089, %v6171, %v5939
      %v6182 = vsel %vm2089, %v6172, %v5941
      %v6183 = vsel %vm2089, %v6173, %v5943
      %v6184 = vsel %vm2089, %v6174, %v5945
      %v6185 = vsel %vm2089, %v6175, %v5947
      %v6186 = vsel %vm2089, %v6176, %v5949
      %v6187 = vsel %vm2089, %v6177, %v5951
      %v6188 = vsel %vm4143, %v6178, %v5984
      %v6189 = vsel %vm4143, %v6179, %v5986
      %v6190 = vsel %vm4143, %v6180, %v5988
      %v6191 = vsel %vm4143, %v6181, %v5990
      %v6192 = vsel %vm4143, %v6182, %v5992
      %v6193 = vsel %vm4143, %v6183, %v5994
      %v6194 = vsel %vm4143, %v6184, %v5996
      %v6195 = vsel %vm4143, %v6185, %v5998
      %v6196 = vsel %vm4143, %v6186, %v6000
      %v6197 = vsel %vm4143, %v6187, %v6002
      %v6198 = vsel %vm4154, %v6188, %v6017
      %v6199 = vsel %vm4154, %v6189, %v6019
      %v6200 = vsel %vm4154, %v6190, %v6021
      %v6201 = vsel %vm4154, %v6191, %v6023
      %v6202 = vsel %vm4154, %v6192, %v6025
      %v6203 = vsel %vm4154, %v6193, %v6027
      %v6204 = vsel %vm4154, %v6194, %v6029
      %v6205 = vsel %vm4154, %v6195, %v6031
      %v6206 = vsel %vm4154, %v6196, %v6033
      %v6207 = vsel %vm4154, %v6197, %v6035
      %v6208 = vsel %vm4165, %v6198, %v6068
      %v6209 = vsel %vm4165, %v6199, %v6070
      %v6210 = vsel %vm4165, %v6200, %v6072
      %v6211 = vsel %vm4165, %v6201, %v6074
      %v6212 = vsel %vm4165, %v6202, %v6076
      %v6213 = vsel %vm4165, %v6203, %v6078
      %v6214 = vsel %vm4165, %v6204, %v6080
      %v6215 = vsel %vm4165, %v6205, %v6082
      %v6216 = vsel %vm4165, %v6206, %v6084
      %v6217 = vsel %vm4165, %v6207, %v6086
      %v6218 = vsel %vm4176, %v6208, %v6119
      %v6219 = vsel %vm4176, %v6209, %v6121
      %v6220 = vsel %vm4176, %v6210, %v6123
      %v6221 = vsel %vm4176, %v6211, %v6125
      %v6222 = vsel %vm4176, %v6212, %v6127
      %v6223 = vsel %vm4176, %v6213, %v6129
      %v6224 = vsel %vm4176, %v6214, %v6131
      %v6225 = vsel %vm4176, %v6215, %v6133
      %v6226 = vsel %vm4176, %v6216, %v6135
      %v6227 = vsel %vm4176, %v6217, %v6137
      %v6228 = vpack.c.bf16 %v6219, %v6218
      %v6229 = vpack.c.bf16 %v6221, %v6220
      %v6230 = vpack.c.bf16 %v6223, %v6222
      %v6231 = vpack.c.bf16 %v6225, %v6224
      %v6232 = vpack.c.bf16 %v6227, %v6226
      %v6234 = vlaneseq
      %v6235 = vshrl.u32 %v6234, 7
      %v6236 = vsub.s32 0, %v6235
      %v6237 = vrot.slane %v5100, %v6236
      %v6248 = vunpack.c.l.b16 %v5090
      %v6249 = vunpack.c.l.b16 %v5091
      %v6250 = vunpack.c.l.b16 %v5092
      %v6251 = vunpack.c.l.b16 %v5093
      %v6252 = vunpack.c.l.b16 %v5094
      %v6253 = vunpack.c.l.b16 %v5095
      %v6254 = vunpack.c.l.b16 %v5096
      %v6255 = vunpack.c.l.b16 %v5097
      %v6256 = vunpack.c.l.b16 %v5098
      %v6257 = vpack.c.b16 %v6249, %v6248
      %v6258 = vpack.c.b16 %v6251, %v6250
      %v6259 = vpack.c.b16 %v6253, %v6252
      %v6260 = vpack.c.b16 %v6255, %v6254
      %v6261 = vpack.c.b16 %v6256, %v6256
      %v6267 = vsel %vm4225, %v6228, 0
      %v6270 = vsel %vm4225, %v6229, 0
      %v6273 = vsel %vm4225, %v6230, 0
      %v6276 = vsel %vm4225, %v6231, 0
      %v6279 = vsel %vm4225, %v6232, 0
      %v6282 = vsel %vm1170, %v6261, 0
      %6284 = vmatprep.subr.bf16.mxu0 0
      %6285 = vmatpush1.bf16.msra.mxu0 0
      %6286 = vmatprep.subr.bf16.mxu0 0
      %6287 = vmatpush1.bf16.msra.mxu0 0
      %6288 = vmatprep.subr.bf16.mxu0 0
      %6289 = vmatpush1.bf16.msra.mxu0 0
      %6290 = vmatprep.subr.bf16.mxu0 0
      %6291 = vmatpush1.bf16.msra.mxu0 %v6282
      %6292 = vmatprep.subr.bf16.mxu0 0
      %6293 = vmatpush1.bf16.msra.mxu0 %v6260
      %6294 = vmatprep.subr.bf16.mxu0 0
      %6295 = vmatpush1.bf16.msra.mxu0 %v6259
      %6296 = vmatprep.subr.bf16.mxu0 0
      %6297 = vmatpush1.bf16.msra.mxu0 %v6258
      %6298 = vmatprep.subr.bf16.mxu0 0
      %6299 = vmatpush1.bf16.msra.mxu0 %v6257
      %6300 = vmatprep.subr.bf16.mxu0 0
      %6301 = vmatpush2.bf16.msra.mxu0 0
      %6302 = vmatprep.subr.bf16.mxu0 0
      %6303 = vmatpush2.bf16.msra.mxu0 0
      %6304 = vmatprep.subr.bf16.mxu0 0
      %6305 = vmatpush2.bf16.msra.mxu0 0
      %6306 = vmatprep.subr.bf16.mxu0 0
      %6307 = vmatpush2.bf16.msra.mxu0 0
      %6308 = vmatprep.subr.bf16.mxu0 0
      %6309 = vmatpush2.bf16.msra.mxu0 0
      %6310 = vmatprep.subr.bf16.mxu0 0
      %6311 = vmatpush2.bf16.msra.mxu0 0
      %6312 = vmatprep.subr.bf16.mxu0 0
      %6313 = vmatpush2.bf16.msra.mxu0 0
      %6314 = vmatprep.subr.bf16.mxu0 0
      %6315 = vmatpush2.bf16.msra.mxu0 0
      %6316 = vmatprep.mubr.bf16.mxu0 0
      %6317 = vmatmul.mubr.bf16.gmra.mxu0 %v6267
      %v6318 = vpop.f32.mrf.mxu0
      %v6319 = vadd.f32 %v6237, %v6318
      %v6320 = vpop.f32.mrf.mxu0
      %v6321 = vpop.f32.mrf.mxu0
      %v6322 = vadd.f32 %v6237, %v6321
      %v6323 = vpop.f32.mrf.mxu0
      %6324 = vmatprep.mubr.bf16.mxu0 0
      %6325 = vmatmul.mubr.bf16.gmra.mxu0 %v6270
      %v6326 = vpop.f32.mrf.mxu0
      %v6327 = vadd.f32 %v6237, %v6326
      %v6328 = vpop.f32.mrf.mxu0
      %v6329 = vpop.f32.mrf.mxu0
      %v6330 = vadd.f32 %v6237, %v6329
      %v6331 = vpop.f32.mrf.mxu0
      %6332 = vmatprep.mubr.bf16.mxu0 0
      %6333 = vmatmul.mubr.bf16.gmra.mxu0 %v6273
      %v6334 = vpop.f32.mrf.mxu0
      %v6335 = vadd.f32 %v6237, %v6334
      %v6336 = vpop.f32.mrf.mxu0
      %v6337 = vpop.f32.mrf.mxu0
      %v6338 = vadd.f32 %v6237, %v6337
      %v6339 = vpop.f32.mrf.mxu0
      %6340 = vmatprep.mubr.bf16.mxu0 0
      %6341 = vmatmul.mubr.bf16.gmra.mxu0 %v6276
      %v6342 = vpop.f32.mrf.mxu0
      %v6343 = vadd.f32 %v6237, %v6342
      %v6344 = vpop.f32.mrf.mxu0
      %v6345 = vpop.f32.mrf.mxu0
      %v6346 = vadd.f32 %v6237, %v6345
      %v6347 = vpop.f32.mrf.mxu0
      %6348 = vmatprep.mubr.bf16.mxu0 0
      %6349 = vmatmul.mubr.bf16.gmra.mxu0 %v6279
      %v6350 = vpop.f32.mrf.mxu0
      %v6351 = vadd.f32 %v6237, %v6350
      %v6352 = vpop.f32.mrf.mxu0
      %v6353 = vpop.f32.mrf.mxu0
      %v6354 = vadd.f32 %v6237, %v6353
      %v6355 = vpop.f32.mrf.mxu0
      %6356 = vdwg.mxu0
      %v6368 = vrot.slane %v5102, 3
      %v6369 = vrot.slane %v5103, 3
      %v6370 = vsel %vm988, %v6368, %v6369
      %v6371 = vrot.slane %v5104, 3
      %v6372 = vsel %vm988, %v6369, %v6371
      %v6373 = vrot.slane %v5105, 3
      %v6374 = vsel %vm988, %v6371, %v6373
      %v6375 = vrot.slane %v5106, 3
      %v6376 = vsel %vm988, %v6373, %v6375
      %v6377 = vrot.slane %v5107, 3
      %v6378 = vsel %vm988, %v6375, %v6377
      %v6379 = vrot.slane %v5108, 3
      %v6380 = vsel %vm988, %v6377, %v6379
      %v6381 = vrot.slane %v5109, 3
      %v6382 = vsel %vm988, %v6379, %v6381
      %v6383 = vrot.slane %v5110, 3
      %v6384 = vsel %vm988, %v6381, %v6383
      %v6385 = vrot.slane %v5111, 3
      %v6386 = vsel %vm988, %v6383, %v6385
      %v6387 = vrot.slane %v5112, 3
      %v6388 = vsel %vm988, %v6385, %v6387
      %v6399 = vadd.f32 %v6319, %v6370
      %v6400 = vadd.f32 %v6322, %v6372
      %v6401 = vadd.f32 %v6327, %v6374
      %v6402 = vadd.f32 %v6330, %v6376
      %v6403 = vadd.f32 %v6335, %v6378
      %v6404 = vadd.f32 %v6338, %v6380
      %v6405 = vadd.f32 %v6343, %v6382
      %v6406 = vadd.f32 %v6346, %v6384
      %v6407 = vadd.f32 %v6351, %v6386
      %v6408 = vadd.f32 %v6354, %v6388
      %v6409 = vld [vmem:[%s8] sm:$0xff]
      %v6410 = vld [vmem:[%s8 + $0x8] sm:$0xff]
      %v6411 = vld [vmem:[%s8 + $0x10] sm:$0xff]
      %v6412 = vld [vmem:[%s8 + $0x18] sm:$0xff]
      %v6413 = vld [vmem:[%s8 + $0x20] sm:$0xff]
      %v6414 = vld [vmem:[%s8 + $0x28] sm:$0xff]
      %v6415 = vld [vmem:[%s8 + $0x30] sm:$0xff]
      %v6416 = vld [vmem:[%s8 + $0x38] sm:$0xff]
      %vm6417 = vcmask 654336
      %v6419 = vsel %vm6417, %v6409, 0
      %v6422 = vsel %vm6417, %v6410, 0
      %v6425 = vsel %vm6417, %v6411, 0
      %v6428 = vsel %vm6417, %v6412, 0
      %v6431 = vsel %vm6417, %v6413, 0
      %v6434 = vsel %vm6417, %v6414, 0
      %v6437 = vsel %vm6417, %v6415, 0
      %v6440 = vsel %vm6417, %v6416, 0
      %6442 = vmatprep.subr.mxu0 0.0
      %6443 = vmatpush1.msra.mxu0 0.0
      %6444 = vmatprep.subr.mxu0 0.0
      %6445 = vmatpush1.msra.mxu0 0.0
      %6446 = vmatprep.subr.mxu0 0.0
      %6447 = vmatpush1.msra.mxu0 0.0
      %6448 = vmatprep.subr.mxu0 0.0
      %6449 = vmatpush1.msra.mxu0 0.0
      %6450 = vmatprep.subr.mxu0 0.0
      %6451 = vmatpush1.msra.mxu0 0.0
      %6452 = vmatprep.subr.mxu0 0.0
      %6453 = vmatpush1.msra.mxu0 0.0
      %6454 = vmatprep.subr.mxu0 0.0
      %6455 = vmatpush1.msra.mxu0 %v6408
      %6456 = vmatprep.subr.mxu0 0.0
      %6457 = vmatpush1.msra.mxu0 %v6407
      %6458 = vmatprep.subr.mxu0 0.0
      %6459 = vmatpush1.msra.mxu0 %v6406
      %6460 = vmatprep.subr.mxu0 0.0
      %6461 = vmatpush1.msra.mxu0 %v6405
      %6462 = vmatprep.subr.mxu0 0.0
      %6463 = vmatpush1.msra.mxu0 %v6404
      %6464 = vmatprep.subr.mxu0 0.0
      %6465 = vmatpush1.msra.mxu0 %v6403
      %6466 = vmatprep.subr.mxu0 0.0
      %6467 = vmatpush1.msra.mxu0 %v6402
      %6468 = vmatprep.subr.mxu0 0.0
      %6469 = vmatpush1.msra.mxu0 %v6401
      %6470 = vmatprep.subr.mxu0 0.0
      %6471 = vmatpush1.msra.mxu0 %v6400
      %6472 = vmatprep.subr.mxu0 0.0
      %6473 = vmatpush1.msra.mxu0 %v6399
      %6474 = vmatprep.subr.mxu0 0.0
      %6475 = vmatpush2.msra.mxu0 0.0
      %6476 = vmatprep.subr.mxu0 0.0
      %6477 = vmatpush2.msra.mxu0 0.0
      %6478 = vmatprep.subr.mxu0 0.0
      %6479 = vmatpush2.msra.mxu0 0.0
      %6480 = vmatprep.subr.mxu0 0.0
      %6481 = vmatpush2.msra.mxu0 0.0
      %6482 = vmatprep.subr.mxu0 0.0
      %6483 = vmatpush2.msra.mxu0 0.0
      %6484 = vmatprep.subr.mxu0 0.0
      %6485 = vmatpush2.msra.mxu0 0.0
      %6486 = vmatprep.subr.mxu0 0.0
      %6487 = vmatpush2.msra.mxu0 0.0
      %6488 = vmatprep.subr.mxu0 0.0
      %6489 = vmatpush2.msra.mxu0 0.0
      %6490 = vmatprep.subr.mxu0 0.0
      %6491 = vmatpush2.msra.mxu0 0.0
      %6492 = vmatprep.subr.mxu0 0.0
      %6493 = vmatpush2.msra.mxu0 0.0
      %6494 = vmatprep.subr.mxu0 0.0
      %6495 = vmatpush2.msra.mxu0 0.0
      %6496 = vmatprep.subr.mxu0 0.0
      %6497 = vmatpush2.msra.mxu0 0.0
      %6498 = vmatprep.subr.mxu0 0.0
      %6499 = vmatpush2.msra.mxu0 0.0
      %6500 = vmatprep.subr.mxu0 0.0
      %6501 = vmatpush2.msra.mxu0 0.0
      %6502 = vmatprep.subr.mxu0 0.0
      %6503 = vmatpush2.msra.mxu0 0.0
      %6504 = vmatprep.subr.mxu0 0.0
      %6505 = vmatpush2.msra.mxu0 0.0
      %6506 = vmatprep.mubr.f32.mxu0 0.0
      %6507 = vmatmul.mubr.f32.gmra.mxu0 %v6419
      %v6508 = vpop.f32.mrf.mxu0
      %v6509 = vadd.f32 0.0, %v6508
      %v6510 = vpop.f32.mrf.mxu0
      %6511 = vmatprep.mubr.f32.mxu0 0.0
      %6512 = vmatmul.mubr.f32.gmra.mxu0 %v6422
      %v6513 = vpop.f32.mrf.mxu0
      %v6514 = vadd.f32 0.0, %v6513
      %v6515 = vpop.f32.mrf.mxu0
      %6516 = vmatprep.mubr.f32.mxu0 0.0
      %6517 = vmatmul.mubr.f32.gmra.mxu0 %v6425
      %v6518 = vpop.f32.mrf.mxu0
      %v6519 = vadd.f32 0.0, %v6518
      %v6520 = vpop.f32.mrf.mxu0
      %6521 = vmatprep.mubr.f32.mxu0 0.0
      %6522 = vmatmul.mubr.f32.gmra.mxu0 %v6428
      %v6523 = vpop.f32.mrf.mxu0
      %v6524 = vadd.f32 0.0, %v6523
      %v6525 = vpop.f32.mrf.mxu0
      %6526 = vmatprep.mubr.f32.mxu0 0.0
      %6527 = vmatmul.mubr.f32.gmra.mxu0 %v6431
      %v6528 = vpop.f32.mrf.mxu0
      %v6529 = vadd.f32 0.0, %v6528
      %v6530 = vpop.f32.mrf.mxu0
      %6531 = vmatprep.mubr.f32.mxu0 0.0
      %6532 = vmatmul.mubr.f32.gmra.mxu0 %v6434
      %v6533 = vpop.f32.mrf.mxu0
      %v6534 = vadd.f32 0.0, %v6533
      %v6535 = vpop.f32.mrf.mxu0
      %6536 = vmatprep.mubr.f32.mxu0 0.0
      %6537 = vmatmul.mubr.f32.gmra.mxu0 %v6437
      %v6538 = vpop.f32.mrf.mxu0
      %v6539 = vadd.f32 0.0, %v6538
      %v6540 = vpop.f32.mrf.mxu0
      %6541 = vmatprep.mubr.f32.mxu0 0.0
      %6542 = vmatmul.mubr.f32.gmra.mxu0 %v6440
      %v6543 = vpop.f32.mrf.mxu0
      %v6544 = vadd.f32 0.0, %v6543
      %v6545 = vpop.f32.mrf.mxu0
      %6546 = vdwg.mxu0
      %6547 = vst.msk [vmem:[%s332] sm:$0xff] %vm1867, %v6509
      %6548 = vst.msk [vmem:[%s332 + $0x8] sm:$0xff] %vm1867, %v6514
      %6549 = vst.msk [vmem:[%s332 + $0x10] sm:$0xff] %vm1867, %v6519
      %6550 = vst.msk [vmem:[%s332 + $0x18] sm:$0xff] %vm1867, %v6524
      %6551 = vst.msk [vmem:[%s332 + $0x20] sm:$0xff] %vm1867, %v6529
      %6552 = vst.msk [vmem:[%s332 + $0x28] sm:$0xff] %vm1867, %v6534
      %6553 = vst.msk [vmem:[%s332 + $0x30] sm:$0xff] %vm1867, %v6539
      %6554 = vst.msk [vmem:[%s332 + $0x38] sm:$0xff] %vm1867, %v6544
      %p6555 = scmp.lt.s32.totalorder %s20, 1
      %s6556 = scalar_select %p6555, %s20, 1
      %s6557 = smul.addr %s6556, 8
      %s6558 = smul.addr %s6557, 8
      %s6559 = scalar_lea.vmem %s9, %s6558
      // Predicated region
      $region57: #{conv_sequence_forward.1} parent=55 // pred_check
        %p6560 = pneg %p232
      $region58: #{conv_sequence_forward.1} parent=55 // pred_check_branch
        %6562 = sbr.rel (%p6560) target = $region60
      $region59: #{conv_sequence_forward.1} parent=55 // pred_region
        _
      $region60: #{conv_sequence_forward.1} parent=55 // pred_fallthru
        _
    $region56: #{conv_sequence_forward.1} parent=5 // pred_fallthru
      _
    %p6563 = scmp.le.s32.totalorder 2, %s15
    // Predicated region
    $region61: #{conv_sequence_forward.1} parent=5 // pred_check
      %p6564 = pneg %p6563
    $region62: #{conv_sequence_forward.1} parent=5 // pred_check_branch
      %6566 = sbr.rel (%p6564) target = $region64
    $region63: #{conv_sequence_forward.1} parent=5 // pred_region
      %s6567 = ssub.s32 %s15, 2
      // Predicated region
      $region65: #{conv_sequence_forward.1} parent=63 // pred_check
        %p6568 = pneg %p238
      $region66: #{conv_sequence_forward.1} parent=63 // pred_check_branch
        %6570 = sbr.rel (%p6568) target = $region68
      $region67: #{conv_sequence_forward.1} parent=63 // pred_region
        %p6571 = scmp.lt.s32.totalorder %s21, 1
        %s6572 = scalar_select %p6571, %s21, 1
        %s6573 = smul.addr %s6572, 8
        %s6574 = smul.addr %s6573, 8
        %s6575 = scalar_lea.vmem %s9, %s6574
      $region68: #{conv_sequence_forward.1} parent=63 // pred_fallthru
        _
    $region64: #{conv_sequence_forward.1} parent=5 // pred_fallthru
      _
  $region6: #{conv_sequence_forward.1} parent=0 // loop_footer
    %s19 = sadd.s32 1, %s15
  $region7: #{conv_sequence_forward.1} parent=0 // loop_footer_branch
    %14 = sbr.rel target = $region3
  $region8: #{conv_sequence_forward.1} parent=0 // loop_exit
    _

</llo_original>
